<compile_context>
chip_gen: v6e
topology: v6e:2x2x1
jax: 0.10.0
libtpu: 0.0.40
codegen_flags: <defaults>
</compile_context>

<pallas_src>
import math

import jax
import jax.numpy as jnp
from jax.experimental import pallas as pl
from jax.experimental.pallas import tpu as pltpu

_INV_SQRT2 = 1.0 / math.sqrt(2.0)


def mlp_kernel(x_ref, w1_ref, b1_ref, w2_ref, b2_ref, o_ref, acc_ref):
    # x:   (M, C)    bf16, resident across all grid steps
    # w1:  (C, TD)   bf16, streamed tile of the hidden dimension
    # b1:  (1, TD)   f32 tile
    # w2:  (TD, C)   bf16, streamed tile
    # b2:  (1, C)    f32, resident
    # o:   (M, C)    f32, resident
    # acc: (M, C)    f32 scratch accumulator
    k = pl.program_id(0)

    @pl.when(k == 0)
    def _init():
        # Fold the second bias in once (avoids a per-step broadcast).
        acc_ref[...] = jnp.broadcast_to(b2_ref[...], acc_ref.shape)

    # Linear 1: the contraction dim C is NOT tiled, so each hidden tile is fully
    # contracted and the per-tile GELU is exact.
    h = jnp.dot(x_ref[...], w1_ref[...], preferred_element_type=jnp.float32)
    h = h + b1_ref[...]
    # Exact (erf-based) GELU, matching torch GELU(approximate='none').
    h = 0.5 * h * (1.0 + jax.lax.erf(h * _INV_SQRT2))
    # Dropout p=0.0 -> identity.

    # Linear 2: partial sum over this hidden tile, accumulated in f32.
    acc_ref[...] += jnp.dot(
        h.astype(jnp.bfloat16), w2_ref[...], preferred_element_type=jnp.float32
    )
    # Dropout p=0.0 -> identity.

    @pl.when(k == pl.num_programs(0) - 1)
    def _store():
        o_ref[...] = acc_ref[...].astype(o_ref.dtype)


def mlp_pallas(x_nhwc, w1, b1, w2, b2, *, td=1024):
    """x_nhwc: (N, H, W, C); w1: (C, D); b1: (D,); w2: (D, C); b2: (C,)."""
    n, hh, ww, c = x_nhwc.shape
    d = w1.shape[1]
    assert w1.shape == (c, d) and w2.shape == (d, c)
    assert d % td == 0, "hidden dim must be divisible by the tile width"
    m = n * hh * ww

    # bf16 MXU inputs halve the dominant weight-DMA traffic; math stays f32-accumulated.
    x2d = x_nhwc.reshape(m, c).astype(jnp.bfloat16)
    w1_b = w1.astype(jnp.bfloat16)
    w2_b = w2.astype(jnp.bfloat16)
    b1_2d = b1.reshape(1, d).astype(jnp.float32)
    b2_2d = b2.reshape(1, c).astype(jnp.float32)

    out2d = pl.pallas_call(
        mlp_kernel,
        out_shape=jax.ShapeDtypeStruct((m, c), jnp.float32),
        grid_spec=pltpu.PrefetchScalarGridSpec(
            num_scalar_prefetch=0,
            grid=(d // td,),                                   # 3 hidden-dim tiles
            in_specs=[
                pl.BlockSpec((m, c), lambda k: (0, 0)),        # x (resident)
                pl.BlockSpec((c, td), lambda k: (0, k)),       # w1 tile (streamed)
                pl.BlockSpec((1, td), lambda k: (0, k)),       # b1 tile
                pl.BlockSpec((td, c), lambda k: (k, 0)),       # w2 tile (streamed)
                pl.BlockSpec((1, c), lambda k: (0, 0)),        # b2 (resident)
            ],
            out_specs=pl.BlockSpec((m, c), lambda k: (0, 0)),  # resident accumulator target
            scratch_shapes=[pltpu.VMEM((m, c), jnp.float32)],
        ),
        compiler_params=pltpu.CompilerParams(
            dimension_semantics=("arbitrary",),   # reduction over hidden-dim tiles
            vmem_limit_bytes=32 << 20,            # ~7 MiB actually used; safe on v7x
        ),
    )(x2d, w1_b, b1_2d, w2_b, b2_2d)

    return out2d.reshape(n, hh, ww, c).astype(x_nhwc.dtype)


def reference_mlp_f32(x_nhwc, w1, b1, w2, b2):
    """Exact f32 semantics of the torch module."""
    h = jnp.einsum("nhwc,cd->nhwd", x_nhwc, w1,
                   precision=jax.lax.Precision.HIGHEST) + b1
    h = 0.5 * h * (1.0 + jax.lax.erf(h * _INV_SQRT2))
    return jnp.einsum("nhwd,dc->nhwc", h, w2,
                      precision=jax.lax.Precision.HIGHEST) + b2


def reference_mlp_bf16_inputs(x_nhwc, w1, b1, w2, b2):
    """Pure-jnp reference with the same bf16 MXU-input quantization as the kernel."""
    xq = x_nhwc.astype(jnp.bfloat16).astype(jnp.float32)
    w1q = w1.astype(jnp.bfloat16).astype(jnp.float32)
    w2q = w2.astype(jnp.bfloat16).astype(jnp.float32)
    h = jnp.einsum("nhwc,cd->nhwd", xq, w1q,
                   precision=jax.lax.Precision.HIGHEST) + b1
    h = 0.5 * h * (1.0 + jax.lax.erf(h * _INV_SQRT2))
    hq = h.astype(jnp.bfloat16).astype(jnp.float32)
    return jnp.einsum("nhwd,dc->nhwc", hq, w2q,
                      precision=jax.lax.Precision.HIGHEST) + b2


if __name__ == "__main__":
    key = jax.random.PRNGKey(0)
    k_x, k_w1, k_b1, k_w2, k_b2 = jax.random.split(key, 5)

    C_IN, C_HID = 768, 3072
    # Deterministic synthetic parameters (torch Linear weight is (out, in); we store (in, out)).
    w1 = jax.random.normal(k_w1, (C_IN, C_HID), dtype=jnp.float32) * 0.02
    b1 = jax.random.normal(k_b1, (C_HID,), dtype=jnp.float32) * 0.02
    w2 = jax.random.normal(k_w2, (C_HID, C_IN), dtype=jnp.float32) * 0.02
    b2 = jax.random.normal(k_b2, (C_IN,), dtype=jnp.float32) * 0.02

    # Input shaped as the module implies: (1, 7, 7, 768), channels-last.
    x = jax.random.normal(k_x, (1, 7, 7, C_IN), dtype=jnp.float32)

    out = jax.block_until_ready(mlp_pallas(x, w1, b1, w2, b2))
    assert out.shape == (1, 7, 7, C_IN)

    # Tight check: against a reference with identical bf16 MXU-input quantization
    # (validates tiling / accumulation / bias handling of the kernel).
    ref_q = reference_mlp_bf16_inputs(x, w1, b1, w2, b2)
    assert jnp.allclose(out, ref_q, atol=2e-3, rtol=2e-3)

    # Sanity check: against the exact f32 torch semantics; only bf16 weight/activation
    # quantization noise remains, so a looser tolerance applies.
    ref_f32 = reference_mlp_f32(x, w1, b1, w2, b2)
    assert jnp.allclose(out, ref_f32, atol=2e-2, rtol=2e-2)

    print("KERNEL_OK")
</pallas_src>

<mosaic_0001>
module attributes {stable_mosaic.version = 11 : i64} {
  func.func @mlp_kernel(%arg0: i32, %arg1: memref<49x768xbf16, #tpu.memory_space<vmem>>, %arg2: memref<768x1024xbf16, #tpu.memory_space<vmem>>, %arg3: memref<1x1024xf32, #tpu.memory_space<vmem>>, %arg4: memref<1024x768xbf16, #tpu.memory_space<vmem>>, %arg5: memref<1x768xf32, #tpu.memory_space<vmem>>, %arg6: memref<49x768xf32, #tpu.memory_space<vmem>>, %arg7: memref<49x768xf32, #tpu.memory_space<vmem>>) attributes {dimension_semantics = [#tpu.dimension_semantics<arbitrary>], iteration_bounds = array<i64: 3>, scalar_prefetch = 0 : i64, scratch_operands = 1 : i64, tpu.core_type = #tpu.core_type<tc>, window_params = [{pipeline_mode = #tpu.pipeline_mode<synchronous>, transform_indices = @transform_0, window_bounds = array<i64: 49, 768>}, {transform_indices = @transform_1, window_bounds = array<i64: 768, 1024>}, {transform_indices = @transform_2, window_bounds = array<i64: 1, 1024>}, {transform_indices = @transform_3, window_bounds = array<i64: 1024, 768>}, {pipeline_mode = #tpu.pipeline_mode<synchronous>, transform_indices = @transform_4, window_bounds = array<i64: 1, 768>}, {pipeline_mode = #tpu.pipeline_mode<synchronous>, transform_indices = @transform_5, window_bounds = array<i64: 49, 768>}]} {
    %c0_i32 = arith.constant 0 : i32
    %0 = arith.cmpi eq, %arg0, %c0_i32 : i32
    %1 = arith.extui %0 : i1 to i32
    %c0_i32_0 = arith.constant 0 : i32
    %2 = arith.cmpi ne, %1, %c0_i32_0 : i32
    scf.if %2 {
      %c0_17 = arith.constant 0 : index
      %c0_18 = arith.constant 0 : index
      %26 = vector.load %arg5[%c0_17, %c0_18] : memref<1x768xf32, #tpu.memory_space<vmem>>, vector<1x768xf32>
      %27 = vector.shape_cast %26 : vector<1x768xf32> to vector<1x768xf32>
      %28 = vector.broadcast %27 : vector<1x768xf32> to vector<49x768xf32>
      %c0_19 = arith.constant 0 : index
      %c0_20 = arith.constant 0 : index
      %29 = vector.load %arg7[%c0_19, %c0_20] : memref<49x768xf32, #tpu.memory_space<vmem>>, vector<49x768xf32>
      tpu.vector_store %arg7[%c0_19, %c0_20], %28 {strides = array<i32>} : memref<49x768xf32, #tpu.memory_space<vmem>>, vector<49x768xf32>,
    } else {
    }
    %c0 = arith.constant 0 : index
    %c0_1 = arith.constant 0 : index
    %3 = vector.load %arg1[%c0, %c0_1] : memref<49x768xbf16, #tpu.memory_space<vmem>>, vector<49x768xbf16>
    %c0_2 = arith.constant 0 : index
    %c0_3 = arith.constant 0 : index
    %4 = vector.load %arg2[%c0_2, %c0_3] : memref<768x1024xbf16, #tpu.memory_space<vmem>>, vector<768x1024xbf16>
    %cst = arith.constant dense<0.000000e+00> : vector<49x1024xf32>
    %5 = tpu.matmul %3, %4, %cst {dimension_numbers = #tpu.dot_dimension_numbers<[1], [0], [0], [1], [0, 0, 1, 1], [], []>} : vector<49x768xbf16>, vector<768x1024xbf16>, vector<49x1024xf32> -> vector<49x1024xf32>
    %c0_4 = arith.constant 0 : index
    %c0_5 = arith.constant 0 : index
    %6 = vector.load %arg3[%c0_4, %c0_5] : memref<1x1024xf32, #tpu.memory_space<vmem>>, vector<1x1024xf32>
    %7 = vector.broadcast %6 : vector<1x1024xf32> to vector<49x1024xf32>
    %8 = arith.addf %5, %7 : vector<49x1024xf32>
    %cst_6 = arith.constant 5.000000e-01 : f32
    %9 = vector.broadcast %cst_6 : f32 to vector<49x1024xf32>
    %10 = arith.mulf %9, %8 : vector<49x1024xf32>
    %cst_7 = arith.constant 0.707106769 : f32
    %11 = vector.broadcast %cst_7 : f32 to vector<49x1024xf32>
    %12 = arith.mulf %8, %11 : vector<49x1024xf32>
    %13 = math.erf %12 : vector<49x1024xf32>
    %cst_8 = arith.constant 1.000000e+00 : f32
    %14 = vector.broadcast %cst_8 : f32 to vector<49x1024xf32>
    %15 = arith.addf %14, %13 : vector<49x1024xf32>
    %16 = arith.mulf %10, %15 : vector<49x1024xf32>
    %c0_9 = arith.constant 0 : index
    %c0_10 = arith.constant 0 : index
    %17 = vector.load %arg7[%c0_9, %c0_10] : memref<49x768xf32, #tpu.memory_space<vmem>>, vector<49x768xf32>
    %18 = arith.truncf %16 : vector<49x1024xf32> to vector<49x1024xbf16>
    %c0_11 = arith.constant 0 : index
    %c0_12 = arith.constant 0 : index
    %19 = vector.load %arg4[%c0_11, %c0_12] : memref<1024x768xbf16, #tpu.memory_space<vmem>>, vector<1024x768xbf16>
    %cst_13 = arith.constant dense<0.000000e+00> : vector<49x768xf32>
    %20 = tpu.matmul %18, %19, %cst_13 {dimension_numbers = #tpu.dot_dimension_numbers<[1], [0], [0], [1], [0, 0, 1, 1], [], []>} : vector<49x1024xbf16>, vector<1024x768xbf16>, vector<49x768xf32> -> vector<49x768xf32>
    %21 = arith.addf %17, %20 : vector<49x768xf32>
    %c0_14 = arith.constant 0 : index
    %c0_15 = arith.constant 0 : index
    %22 = vector.load %arg7[%c0_14, %c0_15] : memref<49x768xf32, #tpu.memory_space<vmem>>, vector<49x768xf32>
    tpu.vector_store %arg7[%c0_14, %c0_15], %21 {strides = array<i32>} : memref<49x768xf32, #tpu.memory_space<vmem>>, vector<49x768xf32>,
    %c2_i32 = arith.constant 2 : i32
    %23 = arith.cmpi eq, %arg0, %c2_i32 : i32
    %24 = arith.extui %23 : i1 to i32
    %c0_i32_16 = arith.constant 0 : i32
    %25 = arith.cmpi ne, %24, %c0_i32_16 : i32
    scf.if %25 {
      %c0_17 = arith.constant 0 : index
      %c0_18 = arith.constant 0 : index
      %26 = vector.load %arg7[%c0_17, %c0_18] : memref<49x768xf32, #tpu.memory_space<vmem>>, vector<49x768xf32>
      %c0_19 = arith.constant 0 : index
      %c0_20 = arith.constant 0 : index
      %27 = vector.load %arg6[%c0_19, %c0_20] : memref<49x768xf32, #tpu.memory_space<vmem>>, vector<49x768xf32>
      tpu.vector_store %arg6[%c0_19, %c0_20], %26 {strides = array<i32>} : memref<49x768xf32, #tpu.memory_space<vmem>>, vector<49x768xf32>,
    } else {
    }
    return
  }
  func.func @transform_0(%arg0: i32) -> (i32, i32) {
    %c0_i32 = arith.constant 0 : i32
    %c0_i32_0 = arith.constant 0 : i32
    %c0_i32_1 = arith.constant 0 : i32
    return %c0_i32, %c0_i32_0 : i32, i32
  }
  func.func @transform_1(%arg0: i32) -> (i32, i32) {
    %c0_i32 = arith.constant 0 : i32
    %c0_i32_0 = arith.constant 0 : i32
    return %c0_i32, %arg0 : i32, i32
  }
  func.func @transform_2(%arg0: i32) -> (i32, i32) {
    %c0_i32 = arith.constant 0 : i32
    %c0_i32_0 = arith.constant 0 : i32
    return %c0_i32, %arg0 : i32, i32
  }
  func.func @transform_3(%arg0: i32) -> (i32, i32) {
    %c0_i32 = arith.constant 0 : i32
    %c0_i32_0 = arith.constant 0 : i32
    return %arg0, %c0_i32 : i32, i32
  }
  func.func @transform_4(%arg0: i32) -> (i32, i32) {
    %c0_i32 = arith.constant 0 : i32
    %c0_i32_0 = arith.constant 0 : i32
    %c0_i32_1 = arith.constant 0 : i32
    return %c0_i32, %c0_i32_0 : i32, i32
  }
  func.func @transform_5(%arg0: i32) -> (i32, i32) {
    %c0_i32 = arith.constant 0 : i32
    %c0_i32_0 = arith.constant 0 : i32
    %c0_i32_1 = arith.constant 0 : i32
    return %c0_i32, %c0_i32_0 : i32, i32
  }
}

</mosaic_0001>

<llo_original>
// kernel: tpu_custom_call.1
$region0: #{tpu_custom_call.1}
  #allocation0 [shape = 'u32[]', space=smem, size = 0x4, offset = 0x4, fixed_abs, tag = 'smem constant byte address 0x4 - core index']
  #allocation1 [shape = 'u32[144,128]{1,0:T(1,128)}', space=vmem, size = 0x12000, scoped, tag = 'internal scratch']
  #allocation2 [shape = 'f32[49,768]{1,0:T(8,128)}', space=vmem, size = 0x2a000, scoped, tag = 'scratch operand']
  %s0 = inlined_call_operand.hbm [shape: bf16[49,768], index: 0, kind: input, shape index: {}]
  %s1 = inlined_call_operand.hbm [shape: bf16[768,3072], index: 1, kind: input, shape index: {}]
  %s2 = inlined_call_operand.hbm [shape: f32[1,3072], index: 2, kind: input, shape index: {}]
  %s3 = inlined_call_operand.hbm [shape: bf16[3072,768], index: 3, kind: input, shape index: {}]
  %s4 = inlined_call_operand.hbm [shape: f32[1,768], index: 4, kind: input, shape index: {}]
  %s5 = inlined_call_operand.hbm [shape: f32[49,768], index: 5, kind: output, shape index: {}]
  %s6 = sld [smem:[#allocation0]]
  $region81: #{tpu_custom_call.1} parent=0
    _
  %s8 = ssub.s32 1, %s6
  %s9 = scalar_select 0, %s8, %s6
  $region1: #{tpu_custom_call.1} parent=0
    #allocation3 [shape = 'u8[86016]{0}', space=vmem, size = 0x15000, scoped, tag = 'input window, operand 0, single buffered']
    #allocation4 [shape = 's32[2]{0}', space=sflag, size = 0x8, scoped, tag = 'scoped memory for tpu_custom_call.1']
    #allocation5 [shape = 's32[2]{0}', space=sflag, size = 0x8, scoped, tag = 'scoped memory for tpu_custom_call.1']
    #allocation6 [shape = 'u8[3145728]{0}', space=vmem, size = 0x300000, scoped, tag = 'input window, operand 1']
    #allocation7 [shape = 's32[2]{0}', space=sflag, size = 0x8, scoped, tag = 'scoped memory for tpu_custom_call.1']
    #allocation8 [shape = 'u8[8192]{0}', space=vmem, size = 0x2000, scoped, tag = 'input window, operand 2']
    #allocation9 [shape = 'u8[3145728]{0}', space=vmem, size = 0x300000, scoped, tag = 'input window, operand 3']
    #allocation10 [shape = 's32[2]{0}', space=sflag, size = 0x8, scoped, tag = 'scoped memory for tpu_custom_call.1']
    #allocation11 [shape = 'u8[3072]{0}', space=vmem, size = 0xc00, scoped, tag = 'input window, operand 4, single buffered']
    #allocation12 [shape = 'u8[172032]{0}', space=vmem, size = 0x2a000, scoped, tag = 'output window, operand 0, single buffered']
    %10 = vsyncpa [#allocation4], 0
    %11 = vsyncpa [#allocation7], 0
    %s12 = scalar_lea.sflag [#allocation7], 1
    %13 = vsyncpa %s12, 0
    %14 = vsyncpa [#allocation10], 0
    %s15 = scalar_lea.sflag [#allocation10], 1
    %16 = vsyncpa %s15, 0
    %17 = vsyncpa [#allocation5], 0
    loop: start=0, step=1, limit=5
    $region2: #{tpu_custom_call.1} parent=1 // loop_pre_header
      _
    $region3: #{tpu_custom_call.1} parent=1 // loop_header
      %s19 = sphi 0, %s23
      %p20 = scmp.ge.s32.totalorder %s19, 5
      %s27 = sphi 0, %s27
      %s29 = sphi 0, %s27
      %s30 = sphi 0, %s29
      %s44 = sphi 0, %s30
      %s50 = sphi 0, %s52
      %s53 = sphi 0, %s50
      %s54 = sphi 0, %s53
      %s70 = sphi 0, %s54
      %s76 = sphi 0, %s78
      %s79 = sphi 0, %s76
      %s80 = sphi 0, %s79
      %s96 = sphi 0, %s80
      %s102 = sphi 0, %s104
      %s105 = sphi 0, %s102
      %s106 = sphi 0, %s105
      %s122 = sphi 0, %s106
      %s126 = sphi 0, %s126
      %s128 = sphi 0, %s126
      %s129 = sphi 0, %s128
      %s143 = sphi 0, %s129
      %s147 = sphi 0, %s147
      %s149 = sphi 0, %s147
      %s150 = sphi 0, %s149
      %s164 = sphi 0, %s150
    $region4: #{tpu_custom_call.1} parent=1 // loop_header_branch
      %22 = sbr.rel (%p20) target = $region8
    $region5: #{tpu_custom_call.1} parent=1 // loop_body
      %s24 = ssub.s32 %s19, 1
      %s25 = ssub.s32 %s19, 2
      %s26 = sadd.s32 %s19, 1
      %s28 = sadd.s32 %s27, 1
      %p31 = scmp.eq.s32.totalorder %s19, 2
      %p32 = scmp.ne.s32.totalorder %s27, %s29
      %p33 = scmp.eq.s32.totalorder %s19, 0
      %p34 = por %p32, %p33
      %p35 = scmp.ne.s32.totalorder %s27, %s29
      %p36 = scmp.eq.s32.totalorder %s24, 2
      %p37 = por %p35, %p36
      %p38 = scmp.ne.s32.totalorder %s29, %s30
      %p39 = scmp.eq.s32.totalorder %s24, 0
      %p40 = por %p38, %p39
      %p41 = scmp.ne.s32.totalorder %s29, %s30
      %p42 = scmp.eq.s32.totalorder %s25, 2
      %p43 = por %p41, %p42
      %p45 = scmp.ne.s32.totalorder %s30, %s44
      %p46 = scmp.eq.s32.totalorder %s25, 0
      %p47 = por %p45, %p46
      %s48 = ssub.s32 %s19, %s26
      %p49 = scmp.eq.s32.totalorder %s48, 0
      %s51 = sadd.s32 %s50, 1
      %s52 = scalar_select %p49, %s50, %s51
      %p55 = pneg %p49
      %p56 = scmp.eq.s32.totalorder %s19, 2
      %p57 = por %p55, %p56
      %p58 = scmp.ne.s32.totalorder %s50, %s53
      %p59 = scmp.eq.s32.totalorder %s19, 0
      %p60 = por %p58, %p59
      %p61 = scmp.ne.s32.totalorder %s50, %s53
      %p62 = scmp.eq.s32.totalorder %s24, 2
      %p63 = por %p61, %p62
      %p64 = scmp.ne.s32.totalorder %s53, %s54
      %p65 = scmp.eq.s32.totalorder %s24, 0
      %p66 = por %p64, %p65
      %p67 = scmp.ne.s32.totalorder %s53, %s54
      %p68 = scmp.eq.s32.totalorder %s25, 2
      %p69 = por %p67, %p68
      %p71 = scmp.ne.s32.totalorder %s54, %s70
      %p72 = scmp.eq.s32.totalorder %s25, 0
      %p73 = por %p71, %p72
      %s74 = ssub.s32 %s19, %s26
      %p75 = scmp.eq.s32.totalorder %s74, 0
      %s77 = sadd.s32 %s76, 1
      %s78 = scalar_select %p75, %s76, %s77
      %p81 = pneg %p75
      %p82 = scmp.eq.s32.totalorder %s19, 2
      %p83 = por %p81, %p82
      %p84 = scmp.ne.s32.totalorder %s76, %s79
      %p85 = scmp.eq.s32.totalorder %s19, 0
      %p86 = por %p84, %p85
      %p87 = scmp.ne.s32.totalorder %s76, %s79
      %p88 = scmp.eq.s32.totalorder %s24, 2
      %p89 = por %p87, %p88
      %p90 = scmp.ne.s32.totalorder %s79, %s80
      %p91 = scmp.eq.s32.totalorder %s24, 0
      %p92 = por %p90, %p91
      %p93 = scmp.ne.s32.totalorder %s79, %s80
      %p94 = scmp.eq.s32.totalorder %s25, 2
      %p95 = por %p93, %p94
      %p97 = scmp.ne.s32.totalorder %s80, %s96
      %p98 = scmp.eq.s32.totalorder %s25, 0
      %p99 = por %p97, %p98
      %s100 = ssub.s32 %s19, %s26
      %p101 = scmp.eq.s32.totalorder %s100, 0
      %s103 = sadd.s32 %s102, 1
      %s104 = scalar_select %p101, %s102, %s103
      %p107 = pneg %p101
      %p108 = scmp.eq.s32.totalorder %s19, 2
      %p109 = por %p107, %p108
      %p110 = scmp.ne.s32.totalorder %s102, %s105
      %p111 = scmp.eq.s32.totalorder %s19, 0
      %p112 = por %p110, %p111
      %p113 = scmp.ne.s32.totalorder %s102, %s105
      %p114 = scmp.eq.s32.totalorder %s24, 2
      %p115 = por %p113, %p114
      %p116 = scmp.ne.s32.totalorder %s105, %s106
      %p117 = scmp.eq.s32.totalorder %s24, 0
      %p118 = por %p116, %p117
      %p119 = scmp.ne.s32.totalorder %s105, %s106
      %p120 = scmp.eq.s32.totalorder %s25, 2
      %p121 = por %p119, %p120
      %p123 = scmp.ne.s32.totalorder %s106, %s122
      %p124 = scmp.eq.s32.totalorder %s25, 0
      %p125 = por %p123, %p124
      %s127 = sadd.s32 %s126, 1
      %p130 = scmp.eq.s32.totalorder %s19, 2
      %p131 = scmp.ne.s32.totalorder %s126, %s128
      %p132 = scmp.eq.s32.totalorder %s19, 0
      %p133 = por %p131, %p132
      %p134 = scmp.ne.s32.totalorder %s126, %s128
      %p135 = scmp.eq.s32.totalorder %s24, 2
      %p136 = por %p134, %p135
      %p137 = scmp.ne.s32.totalorder %s128, %s129
      %p138 = scmp.eq.s32.totalorder %s24, 0
      %p139 = por %p137, %p138
      %p140 = scmp.ne.s32.totalorder %s128, %s129
      %p141 = scmp.eq.s32.totalorder %s25, 2
      %p142 = por %p140, %p141
      %p144 = scmp.ne.s32.totalorder %s129, %s143
      %p145 = scmp.eq.s32.totalorder %s25, 0
      %p146 = por %p144, %p145
      %s148 = sadd.s32 %s147, 1
      %p151 = scmp.eq.s32.totalorder %s19, 2
      %p152 = scmp.ne.s32.totalorder %s147, %s149
      %p153 = scmp.eq.s32.totalorder %s19, 0
      %p154 = por %p152, %p153
      %p155 = scmp.ne.s32.totalorder %s147, %s149
      %p156 = scmp.eq.s32.totalorder %s24, 2
      %p157 = por %p155, %p156
      %p158 = scmp.ne.s32.totalorder %s149, %s150
      %p159 = scmp.eq.s32.totalorder %s24, 0
      %p160 = por %p158, %p159
      %p161 = scmp.ne.s32.totalorder %s149, %s150
      %p162 = scmp.eq.s32.totalorder %s25, 2
      %p163 = por %p161, %p162
      %p165 = scmp.ne.s32.totalorder %s150, %s164
      %p166 = scmp.eq.s32.totalorder %s25, 0
      %p167 = por %p165, %p166
      %p168 = scmp.le.s32.totalorder 1, %s19
      %p169 = scmp.lt.s32.totalorder %s19, 4
      %p170 = pnand %p168, %p169
      %p171 = pneg %p170
      // Predicated region
      $region9: #{tpu_custom_call.1} parent=5 // pred_check
        _
      $region10: #{tpu_custom_call.1} parent=5 // pred_check_branch
        %173 = sbr.rel (%p170) target = $region12
      $region11: #{tpu_custom_call.1} parent=5 // pred_region
        %s174 = ssub.s32 %s19, 1
        // Predicated region
        $region13: #{tpu_custom_call.1} parent=11 // pred_check
          %p175 = pneg %p40
        $region14: #{tpu_custom_call.1} parent=11 // pred_check_branch
          %177 = sbr.rel (%p175) target = $region16
        $region15: #{tpu_custom_call.1} parent=11 // pred_region
          %s179 = ssub.s32 2688, 2688
          %180 = vsyncadd [#allocation4], %s179
          %s181 = sshll.u32 [#allocation3], 4
          %s182 = int_to_ptr.vmem [resolvable:$true] %s181
          %187 = dma.hbm_to_vmem [thread:$0]  %s0, 2688, %s182, [#allocation4], 384, 384, 24
        $region16: #{tpu_custom_call.1} parent=11 // pred_fallthru
          _
        // Predicated region
        $region17: #{tpu_custom_call.1} parent=11 // pred_check
          %p188 = pneg %p139
        $region18: #{tpu_custom_call.1} parent=11 // pred_check_branch
          %190 = sbr.rel (%p188) target = $region20
        $region19: #{tpu_custom_call.1} parent=11 // pred_region
          %s192 = ssub.s32 96, 96
          %193 = vsyncadd [#allocation10], %s192
          %s195 = sshll.u32 [#allocation11], 4
          %s196 = int_to_ptr.vmem [resolvable:$true] %s195
          %198 = dma.hbm_to_vmem [thread:$0]  %s4, 96, %s196, [#allocation10]
        $region20: #{tpu_custom_call.1} parent=11 // pred_fallthru
          _
      $region12: #{tpu_custom_call.1} parent=5 // pred_fallthru
        _
      %p199 = scmp.lt.s32.totalorder %s19, 3
      // Predicated region
      $region21: #{tpu_custom_call.1} parent=5 // pred_check
        %p200 = pneg %p199
      $region22: #{tpu_custom_call.1} parent=5 // pred_check_branch
        %202 = sbr.rel (%p200) target = $region24
      $region23: #{tpu_custom_call.1} parent=5 // pred_region
        // Predicated region
        $region25: #{tpu_custom_call.1} parent=23 // pred_check
          %p203 = pneg %p60
        $region26: #{tpu_custom_call.1} parent=23 // pred_check_branch
          %205 = sbr.rel (%p203) target = $region28
        $region27: #{tpu_custom_call.1} parent=23 // pred_region
          %s206 = sand.u32 %s19, 1
          %s207 = scalar_lea.sflag [#allocation7], %s206
          %s208 = sand.u32 %s50, 1
          %s209 = smul.addr %s208, 3072
          %s210 = scalar_lea.vmem [#allocation6], %s209
          %s211 = smul.u32 8, %s19
          %s213 = ssub.s32 49152, 49152
          %214 = vsyncadd %s207, %s213
          %s215 = smul.addr %s211, 64
          %s216 = scalar_lea.hbm %s1, %s215
          %s217 = sshll.u32 %s210, 4
          %s218 = int_to_ptr.vmem [resolvable:$true] %s217
          %223 = dma.hbm_to_vmem [thread:$0]  %s216, 49152, %s218, %s207, 1536, 512, 32
        $region28: #{tpu_custom_call.1} parent=23 // pred_fallthru
          _
        // Predicated region
        $region29: #{tpu_custom_call.1} parent=23 // pred_check
          %p224 = pneg %p86
        $region30: #{tpu_custom_call.1} parent=23 // pred_check_branch
          %226 = sbr.rel (%p224) target = $region32
        $region31: #{tpu_custom_call.1} parent=23 // pred_region
          %s227 = sand.u32 %s19, 1
          %s228 = scalar_lea.sflag [#allocation7], %s227
          %s229 = sand.u32 %s76, 1
          %s230 = smul.addr %s229, 8
          %s231 = scalar_lea.vmem [#allocation8], %s230
          %s232 = smul.u32 8, %s19
          %s234 = ssub.s32 128, 128
          %235 = vsyncadd %s228, %s234
          %s236 = smul.addr %s232, 16
          %s237 = scalar_lea.hbm %s2, %s236
          %s239 = sshll.u32 %s231, 4
          %s240 = int_to_ptr.vmem [resolvable:$true] %s239
          %242 = dma.hbm_to_vmem [thread:$0]  %s237, 128, %s240, %s228
        $region32: #{tpu_custom_call.1} parent=23 // pred_fallthru
          _
        // Predicated region
        $region33: #{tpu_custom_call.1} parent=23 // pred_check
          %p243 = pneg %p112
        $region34: #{tpu_custom_call.1} parent=23 // pred_check_branch
          %245 = sbr.rel (%p243) target = $region36
        $region35: #{tpu_custom_call.1} parent=23 // pred_region
          %s246 = sand.u32 %s19, 1
          %s247 = scalar_lea.sflag [#allocation10], %s246
          %s248 = sand.u32 %s102, 1
          %s249 = smul.addr %s248, 3072
          %s250 = scalar_lea.vmem [#allocation9], %s249
          %s251 = smul.u32 128, %s19
          %s253 = ssub.s32 49152, 49152
          %254 = vsyncadd %s247, %s253
          %s255 = smul.addr %s251, 6
          %s256 = smul.addr %s255, 64
          %s257 = scalar_lea.hbm %s3, %s256
          %s258 = sshll.u32 %s250, 4
          %s259 = int_to_ptr.vmem [resolvable:$true] %s258
          %264 = dma.hbm_to_vmem [thread:$0]  %s257, 49152, %s259, %s247, 384, 384, 24
        $region36: #{tpu_custom_call.1} parent=23 // pred_fallthru
          _
      $region24: #{tpu_custom_call.1} parent=5 // pred_fallthru
        _
      %p265 = scmp.le.s32.totalorder 1, %s19
      %p266 = scmp.lt.s32.totalorder %s19, 4
      %p267 = pnand %p265, %p266
      %p268 = pneg %p267
      // Predicated region
      $region37: #{tpu_custom_call.1} parent=5 // pred_check
        _
      $region38: #{tpu_custom_call.1} parent=5 // pred_check_branch
        %270 = sbr.rel (%p267) target = $region40
      $region39: #{tpu_custom_call.1} parent=5 // pred_region
        %s271 = ssub.s32 %s19, 1
        // Predicated region
        $region41: #{tpu_custom_call.1} parent=39 // pred_check
          %p272 = pneg %p40
        $region42: #{tpu_custom_call.1} parent=39 // pred_check_branch
          %274 = sbr.rel (%p272) target = $region44
        $region43: #{tpu_custom_call.1} parent=39 // pred_region
          %275 = dma.done [#allocation4], 2688
        $region44: #{tpu_custom_call.1} parent=39 // pred_fallthru
          _
        %s276 = sand.u32 %s24, 1
        %s277 = scalar_lea.sflag [#allocation7], %s276
        %s278 = sand.u32 %s53, 1
        %s279 = smul.addr %s278, 3072
        %s280 = scalar_lea.vmem [#allocation6], %s279
        // Predicated region
        $region45: #{tpu_custom_call.1} parent=39 // pred_check
          %p281 = pneg %p66
        $region46: #{tpu_custom_call.1} parent=39 // pred_check_branch
          %283 = sbr.rel (%p281) target = $region48
        $region47: #{tpu_custom_call.1} parent=39 // pred_region
          %284 = dma.done %s277, 49152
        $region48: #{tpu_custom_call.1} parent=39 // pred_fallthru
          _
        %s285 = sand.u32 %s24, 1
        %s286 = scalar_lea.sflag [#allocation7], %s285
        %s287 = sand.u32 %s79, 1
        %s288 = smul.addr %s287, 8
        %s289 = scalar_lea.vmem [#allocation8], %s288
        // Predicated region
        $region49: #{tpu_custom_call.1} parent=39 // pred_check
          %p290 = pneg %p92
        $region50: #{tpu_custom_call.1} parent=39 // pred_check_branch
          %292 = sbr.rel (%p290) target = $region52
        $region51: #{tpu_custom_call.1} parent=39 // pred_region
          %293 = dma.done %s286, 128
        $region52: #{tpu_custom_call.1} parent=39 // pred_fallthru
          _
        %s294 = sand.u32 %s24, 1
        %s295 = scalar_lea.sflag [#allocation10], %s294
        %s296 = sand.u32 %s105, 1
        %s297 = smul.addr %s296, 3072
        %s298 = scalar_lea.vmem [#allocation9], %s297
        // Predicated region
        $region53: #{tpu_custom_call.1} parent=39 // pred_check
          %p299 = pneg %p118
        $region54: #{tpu_custom_call.1} parent=39 // pred_check_branch
          %301 = sbr.rel (%p299) target = $region56
        $region55: #{tpu_custom_call.1} parent=39 // pred_region
          %302 = dma.done %s295, 49152
        $region56: #{tpu_custom_call.1} parent=39 // pred_fallthru
          _
        // Predicated region
        $region57: #{tpu_custom_call.1} parent=39 // pred_check
          %p303 = pneg %p139
        $region58: #{tpu_custom_call.1} parent=39 // pred_check_branch
          %305 = sbr.rel (%p303) target = $region60
        $region59: #{tpu_custom_call.1} parent=39 // pred_region
          %306 = dma.done [#allocation10], 96
        $region60: #{tpu_custom_call.1} parent=39 // pred_fallthru
          _
        %p307 = pneg %p40
        %p308 = pneg %p37
        %s309 = sand.u32 %s24, 1
        %s310 = scalar_lea.sflag [#allocation7], %s309
        %s311 = sand.u32 %s53, 1
        %s312 = smul.addr %s311, 3072
        %s313 = scalar_lea.vmem [#allocation6], %s312
        %p314 = pneg %p66
        %p315 = pneg %p63
        %s316 = sand.u32 %s24, 1
        %s317 = scalar_lea.sflag [#allocation7], %s316
        %s318 = sand.u32 %s79, 1
        %s319 = smul.addr %s318, 8
        %s320 = scalar_lea.vmem [#allocation8], %s319
        %p321 = pneg %p92
        %p322 = pneg %p89
        %s323 = sand.u32 %s24, 1
        %s324 = scalar_lea.sflag [#allocation10], %s323
        %s325 = sand.u32 %s105, 1
        %s326 = smul.addr %s325, 3072
        %s327 = scalar_lea.vmem [#allocation9], %s326
        %p328 = pneg %p118
        %p329 = pneg %p115
        %p330 = pneg %p139
        %p331 = pneg %p136
        %p332 = pneg %p160
        %p333 = pneg %p157
        %s334 = smul.u32 8, %s24
        %s335 = smul.u32 8, %s24
        %s336 = smul.u32 128, %s24
        %p337 = scmp.eq.s32.totalorder %s24, 0
        // Predicated region
        $region61: #{tpu_custom_call.1} parent=39 // pred_check
          %p338 = pneg %p337
        $region62: #{tpu_custom_call.1} parent=39 // pred_check_branch
          %340 = sbr.rel (%p338) target = $region64
        $region63: #{tpu_custom_call.1} parent=39 // pred_region
          %v341 = vld [vmem:[#allocation11] sm:$0x3f]
          %v343 = vlaneseq
          %v344 = vshrl.u32 %v343, 7
          %v345 = vsub.s32 0, %v344
          %v346 = vrot.slane %v341, %v345
          %v347 = vlaneseq
          %v348 = vshrl.u32 %v347, 7
          %v349 = vsub.s32 1, %v348
          %v350 = vrot.slane %v341, %v349
          %v351 = vlaneseq
          %v352 = vshrl.u32 %v351, 7
          %v353 = vsub.s32 2, %v352
          %v354 = vrot.slane %v341, %v353
          %v355 = vlaneseq
          %v356 = vshrl.u32 %v355, 7
          %v357 = vsub.s32 3, %v356
          %v358 = vrot.slane %v341, %v357
          %v359 = vlaneseq
          %v360 = vshrl.u32 %v359, 7
          %v361 = vsub.s32 4, %v360
          %v362 = vrot.slane %v341, %v361
          %v363 = vlaneseq
          %v364 = vshrl.u32 %v363, 7
          %v365 = vsub.s32 5, %v364
          %v366 = vrot.slane %v341, %v365
          %373 = vst [vmem:[#allocation2] sm:$0xff] %v346
          %374 = vst [vmem:[#allocation2 + $0x8] sm:$0xff] %v350
          %375 = vst [vmem:[#allocation2 + $0x10] sm:$0xff] %v354
          %376 = vst [vmem:[#allocation2 + $0x18] sm:$0xff] %v358
          %377 = vst [vmem:[#allocation2 + $0x20] sm:$0xff] %v362
          %378 = vst [vmem:[#allocation2 + $0x28] sm:$0xff] %v366
          %379 = vst [vmem:[#allocation2 + $0x30] sm:$0xff] %v346
          %380 = vst [vmem:[#allocation2 + $0x38] sm:$0xff] %v350
          %381 = vst [vmem:[#allocation2 + $0x40] sm:$0xff] %v354
          %382 = vst [vmem:[#allocation2 + $0x48] sm:$0xff] %v358
          %383 = vst [vmem:[#allocation2 + $0x50] sm:$0xff] %v362
          %384 = vst [vmem:[#allocation2 + $0x58] sm:$0xff] %v366
          %385 = vst [vmem:[#allocation2 + $0x60] sm:$0xff] %v346
          %386 = vst [vmem:[#allocation2 + $0x68] sm:$0xff] %v350
          %387 = vst [vmem:[#allocation2 + $0x70] sm:$0xff] %v354
          %388 = vst [vmem:[#allocation2 + $0x78] sm:$0xff] %v358
          %389 = vst [vmem:[#allocation2 + $0x80] sm:$0xff] %v362
          %390 = vst [vmem:[#allocation2 + $0x88] sm:$0xff] %v366
          %391 = vst [vmem:[#allocation2 + $0x90] sm:$0xff] %v346
          %392 = vst [vmem:[#allocation2 + $0x98] sm:$0xff] %v350
          %393 = vst [vmem:[#allocation2 + $0xa0] sm:$0xff] %v354
          %394 = vst [vmem:[#allocation2 + $0xa8] sm:$0xff] %v358
          %395 = vst [vmem:[#allocation2 + $0xb0] sm:$0xff] %v362
          %396 = vst [vmem:[#allocation2 + $0xb8] sm:$0xff] %v366
          %397 = vst [vmem:[#allocation2 + $0xc0] sm:$0xff] %v346
          %398 = vst [vmem:[#allocation2 + $0xc8] sm:$0xff] %v350
          %399 = vst [vmem:[#allocation2 + $0xd0] sm:$0xff] %v354
          %400 = vst [vmem:[#allocation2 + $0xd8] sm:$0xff] %v358
          %401 = vst [vmem:[#allocation2 + $0xe0] sm:$0xff] %v362
          %402 = vst [vmem:[#allocation2 + $0xe8] sm:$0xff] %v366
          %403 = vst [vmem:[#allocation2 + $0xf0] sm:$0xff] %v346
          %404 = vst [vmem:[#allocation2 + $0xf8] sm:$0xff] %v350
          %405 = vst [vmem:[#allocation2 + $0x100] sm:$0xff] %v354
          %406 = vst [vmem:[#allocation2 + $0x108] sm:$0xff] %v358
          %407 = vst [vmem:[#allocation2 + $0x110] sm:$0xff] %v362
          %408 = vst [vmem:[#allocation2 + $0x118] sm:$0xff] %v366
          %409 = vst [vmem:[#allocation2 + $0x120] sm:$0x1] %v346
          %410 = vst [vmem:[#allocation2 + $0x128] sm:$0x1] %v350
          %411 = vst [vmem:[#allocation2 + $0x130] sm:$0x1] %v354
          %412 = vst [vmem:[#allocation2 + $0x138] sm:$0x1] %v358
          %413 = vst [vmem:[#allocation2 + $0x140] sm:$0x1] %v362
          %414 = vst [vmem:[#allocation2 + $0x148] sm:$0x1] %v366
        $region64: #{tpu_custom_call.1} parent=39 // pred_fallthru
          _
        %v415 = vld [vmem:[#allocation3] sm:$0xff]
        %v416 = vld [vmem:[#allocation3 + $0x8] sm:$0xff]
        %v417 = vld [vmem:[#allocation3 + $0x10] sm:$0xff]
        %v418 = vld [vmem:[#allocation3 + $0x18] sm:$0xff]
        %v419 = vld [vmem:[#allocation3 + $0x20] sm:$0xff]
        %v420 = vld [vmem:[#allocation3 + $0x28] sm:$0xff]
        %v421 = vld [vmem:[#allocation3 + $0x30] sm:$0xff]
        %v422 = vld [vmem:[#allocation3 + $0x38] sm:$0xff]
        %v423 = vld [vmem:[#allocation3 + $0x40] sm:$0xff]
        %v424 = vld [vmem:[#allocation3 + $0x48] sm:$0xff]
        %v425 = vld [vmem:[#allocation3 + $0x50] sm:$0xff]
        %v426 = vld [vmem:[#allocation3 + $0x58] sm:$0xff]
        %v427 = vld [vmem:[#allocation3 + $0x60] sm:$0xff]
        %v428 = vld [vmem:[#allocation3 + $0x68] sm:$0xff]
        %v429 = vld [vmem:[#allocation3 + $0x70] sm:$0xff]
        %v430 = vld [vmem:[#allocation3 + $0x78] sm:$0xff]
        %v431 = vld [vmem:[#allocation3 + $0x80] sm:$0xff]
        %v432 = vld [vmem:[#allocation3 + $0x88] sm:$0xff]
        %v433 = vld [vmem:[#allocation3 + $0x90] sm:$0x11]
        %v434 = vld [vmem:[#allocation3 + $0x98] sm:$0x11]
        %v435 = vld [vmem:[#allocation3 + $0xa0] sm:$0x11]
        %v436 = vld [vmem:[%s280] sm:$0xff]
        %v437 = vld [vmem:[%s280 + $0x8] sm:$0xff]
        %v438 = vld [vmem:[%s280 + $0x10] sm:$0xff]
        %v439 = vld [vmem:[%s280 + $0x18] sm:$0xff]
        %v440 = vld [vmem:[%s280 + $0x20] sm:$0xff]
        %v441 = vld [vmem:[%s280 + $0x28] sm:$0xff]
        %v442 = vld [vmem:[%s280 + $0x30] sm:$0xff]
        %v443 = vld [vmem:[%s280 + $0x38] sm:$0xff]
        %v444 = vld [vmem:[%s280 + $0x40] sm:$0xff]
        %v445 = vld [vmem:[%s280 + $0x48] sm:$0xff]
        %v446 = vld [vmem:[%s280 + $0x50] sm:$0xff]
        %v447 = vld [vmem:[%s280 + $0x58] sm:$0xff]
        %v448 = vld [vmem:[%s280 + $0x60] sm:$0xff]
        %v449 = vld [vmem:[%s280 + $0x68] sm:$0xff]
        %v450 = vld [vmem:[%s280 + $0x70] sm:$0xff]
        %v451 = vld [vmem:[%s280 + $0x78] sm:$0xff]
        %v452 = vld [vmem:[%s280 + $0x80] sm:$0xff]
        %v453 = vld [vmem:[%s280 + $0x88] sm:$0xff]
        %v454 = vld [vmem:[%s280 + $0x90] sm:$0xff]
        %v455 = vld [vmem:[%s280 + $0x98] sm:$0xff]
        %v456 = vld [vmem:[%s280 + $0xa0] sm:$0xff]
        %v457 = vld [vmem:[%s280 + $0xa8] sm:$0xff]
        %v458 = vld [vmem:[%s280 + $0xb0] sm:$0xff]
        %v459 = vld [vmem:[%s280 + $0xb8] sm:$0xff]
        %v460 = vld [vmem:[%s280 + $0xc0] sm:$0xff]
        %v461 = vld [vmem:[%s280 + $0xc8] sm:$0xff]
        %v462 = vld [vmem:[%s280 + $0xd0] sm:$0xff]
        %v463 = vld [vmem:[%s280 + $0xd8] sm:$0xff]
        %v464 = vld [vmem:[%s280 + $0xe0] sm:$0xff]
        %v465 = vld [vmem:[%s280 + $0xe8] sm:$0xff]
        %v466 = vld [vmem:[%s280 + $0xf0] sm:$0xff]
        %v467 = vld [vmem:[%s280 + $0xf8] sm:$0xff]
        %v468 = vld [vmem:[%s280 + $0x100] sm:$0xff]
        %v469 = vld [vmem:[%s280 + $0x108] sm:$0xff]
        %v470 = vld [vmem:[%s280 + $0x110] sm:$0xff]
        %v471 = vld [vmem:[%s280 + $0x118] sm:$0xff]
        %v472 = vld [vmem:[%s280 + $0x120] sm:$0xff]
        %v473 = vld [vmem:[%s280 + $0x128] sm:$0xff]
        %v474 = vld [vmem:[%s280 + $0x130] sm:$0xff]
        %v475 = vld [vmem:[%s280 + $0x138] sm:$0xff]
        %v476 = vld [vmem:[%s280 + $0x140] sm:$0xff]
        %v477 = vld [vmem:[%s280 + $0x148] sm:$0xff]
        %v478 = vld [vmem:[%s280 + $0x150] sm:$0xff]
        %v479 = vld [vmem:[%s280 + $0x158] sm:$0xff]
        %v480 = vld [vmem:[%s280 + $0x160] sm:$0xff]
        %v481 = vld [vmem:[%s280 + $0x168] sm:$0xff]
        %v482 = vld [vmem:[%s280 + $0x170] sm:$0xff]
        %v483 = vld [vmem:[%s280 + $0x178] sm:$0xff]
        %v484 = vld [vmem:[%s280 + $0x180] sm:$0xff]
        %v485 = vld [vmem:[%s280 + $0x188] sm:$0xff]
        %v486 = vld [vmem:[%s280 + $0x190] sm:$0xff]
        %v487 = vld [vmem:[%s280 + $0x198] sm:$0xff]
        %v488 = vld [vmem:[%s280 + $0x1a0] sm:$0xff]
        %v489 = vld [vmem:[%s280 + $0x1a8] sm:$0xff]
        %v490 = vld [vmem:[%s280 + $0x1b0] sm:$0xff]
        %v491 = vld [vmem:[%s280 + $0x1b8] sm:$0xff]
        %v492 = vld [vmem:[%s280 + $0x1c0] sm:$0xff]
        %v493 = vld [vmem:[%s280 + $0x1c8] sm:$0xff]
        %v494 = vld [vmem:[%s280 + $0x1d0] sm:$0xff]
        %v495 = vld [vmem:[%s280 + $0x1d8] sm:$0xff]
        %v496 = vld [vmem:[%s280 + $0x1e0] sm:$0xff]
        %v497 = vld [vmem:[%s280 + $0x1e8] sm:$0xff]
        %v498 = vld [vmem:[%s280 + $0x1f0] sm:$0xff]
        %v499 = vld [vmem:[%s280 + $0x1f8] sm:$0xff]
        %v500 = vld [vmem:[%s280 + $0x200] sm:$0xff]
        %v501 = vld [vmem:[%s280 + $0x208] sm:$0xff]
        %v502 = vld [vmem:[%s280 + $0x210] sm:$0xff]
        %v503 = vld [vmem:[%s280 + $0x218] sm:$0xff]
        %v504 = vld [vmem:[%s280 + $0x220] sm:$0xff]
        %v505 = vld [vmem:[%s280 + $0x228] sm:$0xff]
        %v506 = vld [vmem:[%s280 + $0x230] sm:$0xff]
        %v507 = vld [vmem:[%s280 + $0x238] sm:$0xff]
        %v508 = vld [vmem:[%s280 + $0x240] sm:$0xff]
        %v509 = vld [vmem:[%s280 + $0x248] sm:$0xff]
        %v510 = vld [vmem:[%s280 + $0x250] sm:$0xff]
        %v511 = vld [vmem:[%s280 + $0x258] sm:$0xff]
        %v512 = vld [vmem:[%s280 + $0x260] sm:$0xff]
        %v513 = vld [vmem:[%s280 + $0x268] sm:$0xff]
        %v514 = vld [vmem:[%s280 + $0x270] sm:$0xff]
        %v515 = vld [vmem:[%s280 + $0x278] sm:$0xff]
        %v516 = vld [vmem:[%s280 + $0x280] sm:$0xff]
        %v517 = vld [vmem:[%s280 + $0x288] sm:$0xff]
        %v518 = vld [vmem:[%s280 + $0x290] sm:$0xff]
        %v519 = vld [vmem:[%s280 + $0x298] sm:$0xff]
        %v520 = vld [vmem:[%s280 + $0x2a0] sm:$0xff]
        %v521 = vld [vmem:[%s280 + $0x2a8] sm:$0xff]
        %v522 = vld [vmem:[%s280 + $0x2b0] sm:$0xff]
        %v523 = vld [vmem:[%s280 + $0x2b8] sm:$0xff]
        %v524 = vld [vmem:[%s280 + $0x2c0] sm:$0xff]
        %v525 = vld [vmem:[%s280 + $0x2c8] sm:$0xff]
        %v526 = vld [vmem:[%s280 + $0x2d0] sm:$0xff]
        %v527 = vld [vmem:[%s280 + $0x2d8] sm:$0xff]
        %v528 = vld [vmem:[%s280 + $0x2e0] sm:$0xff]
        %v529 = vld [vmem:[%s280 + $0x2e8] sm:$0xff]
        %v530 = vld [vmem:[%s280 + $0x2f0] sm:$0xff]
        %v531 = vld [vmem:[%s280 + $0x2f8] sm:$0xff]
        %v532 = vld [vmem:[%s280 + $0x300] sm:$0xff]
        %v533 = vld [vmem:[%s280 + $0x308] sm:$0xff]
        %v534 = vld [vmem:[%s280 + $0x310] sm:$0xff]
        %v535 = vld [vmem:[%s280 + $0x318] sm:$0xff]
        %v536 = vld [vmem:[%s280 + $0x320] sm:$0xff]
        %v537 = vld [vmem:[%s280 + $0x328] sm:$0xff]
        %v538 = vld [vmem:[%s280 + $0x330] sm:$0xff]
        %v539 = vld [vmem:[%s280 + $0x338] sm:$0xff]
        %v540 = vld [vmem:[%s280 + $0x340] sm:$0xff]
        %v541 = vld [vmem:[%s280 + $0x348] sm:$0xff]
        %v542 = vld [vmem:[%s280 + $0x350] sm:$0xff]
        %v543 = vld [vmem:[%s280 + $0x358] sm:$0xff]
        %v544 = vld [vmem:[%s280 + $0x360] sm:$0xff]
        %v545 = vld [vmem:[%s280 + $0x368] sm:$0xff]
        %v546 = vld [vmem:[%s280 + $0x370] sm:$0xff]
        %v547 = vld [vmem:[%s280 + $0x378] sm:$0xff]
        %v548 = vld [vmem:[%s280 + $0x380] sm:$0xff]
        %v549 = vld [vmem:[%s280 + $0x388] sm:$0xff]
        %v550 = vld [vmem:[%s280 + $0x390] sm:$0xff]
        %v551 = vld [vmem:[%s280 + $0x398] sm:$0xff]
        %v552 = vld [vmem:[%s280 + $0x3a0] sm:$0xff]
        %v553 = vld [vmem:[%s280 + $0x3a8] sm:$0xff]
        %v554 = vld [vmem:[%s280 + $0x3b0] sm:$0xff]
        %v555 = vld [vmem:[%s280 + $0x3b8] sm:$0xff]
        %v556 = vld [vmem:[%s280 + $0x3c0] sm:$0xff]
        %v557 = vld [vmem:[%s280 + $0x3c8] sm:$0xff]
        %v558 = vld [vmem:[%s280 + $0x3d0] sm:$0xff]
        %v559 = vld [vmem:[%s280 + $0x3d8] sm:$0xff]
        %v560 = vld [vmem:[%s280 + $0x3e0] sm:$0xff]
        %v561 = vld [vmem:[%s280 + $0x3e8] sm:$0xff]
        %v562 = vld [vmem:[%s280 + $0x3f0] sm:$0xff]
        %v563 = vld [vmem:[%s280 + $0x3f8] sm:$0xff]
        %v564 = vld [vmem:[%s280 + $0x400] sm:$0xff]
        %v565 = vld [vmem:[%s280 + $0x408] sm:$0xff]
        %v566 = vld [vmem:[%s280 + $0x410] sm:$0xff]
        %v567 = vld [vmem:[%s280 + $0x418] sm:$0xff]
        %v568 = vld [vmem:[%s280 + $0x420] sm:$0xff]
        %v569 = vld [vmem:[%s280 + $0x428] sm:$0xff]
        %v570 = vld [vmem:[%s280 + $0x430] sm:$0xff]
        %v571 = vld [vmem:[%s280 + $0x438] sm:$0xff]
        %v572 = vld [vmem:[%s280 + $0x440] sm:$0xff]
        %v573 = vld [vmem:[%s280 + $0x448] sm:$0xff]
        %v574 = vld [vmem:[%s280 + $0x450] sm:$0xff]
        %v575 = vld [vmem:[%s280 + $0x458] sm:$0xff]
        %v576 = vld [vmem:[%s280 + $0x460] sm:$0xff]
        %v577 = vld [vmem:[%s280 + $0x468] sm:$0xff]
        %v578 = vld [vmem:[%s280 + $0x470] sm:$0xff]
        %v579 = vld [vmem:[%s280 + $0x478] sm:$0xff]
        %v580 = vld [vmem:[%s280 + $0x480] sm:$0xff]
        %v581 = vld [vmem:[%s280 + $0x488] sm:$0xff]
        %v582 = vld [vmem:[%s280 + $0x490] sm:$0xff]
        %v583 = vld [vmem:[%s280 + $0x498] sm:$0xff]
        %v584 = vld [vmem:[%s280 + $0x4a0] sm:$0xff]
        %v585 = vld [vmem:[%s280 + $0x4a8] sm:$0xff]
        %v586 = vld [vmem:[%s280 + $0x4b0] sm:$0xff]
        %v587 = vld [vmem:[%s280 + $0x4b8] sm:$0xff]
        %v588 = vld [vmem:[%s280 + $0x4c0] sm:$0xff]
        %v589 = vld [vmem:[%s280 + $0x4c8] sm:$0xff]
        %v590 = vld [vmem:[%s280 + $0x4d0] sm:$0xff]
        %v591 = vld [vmem:[%s280 + $0x4d8] sm:$0xff]
        %v592 = vld [vmem:[%s280 + $0x4e0] sm:$0xff]
        %v593 = vld [vmem:[%s280 + $0x4e8] sm:$0xff]
        %v594 = vld [vmem:[%s280 + $0x4f0] sm:$0xff]
        %v595 = vld [vmem:[%s280 + $0x4f8] sm:$0xff]
        %v596 = vld [vmem:[%s280 + $0x500] sm:$0xff]
        %v597 = vld [vmem:[%s280 + $0x508] sm:$0xff]
        %v598 = vld [vmem:[%s280 + $0x510] sm:$0xff]
        %v599 = vld [vmem:[%s280 + $0x518] sm:$0xff]
        %v600 = vld [vmem:[%s280 + $0x520] sm:$0xff]
        %v601 = vld [vmem:[%s280 + $0x528] sm:$0xff]
        %v602 = vld [vmem:[%s280 + $0x530] sm:$0xff]
        %v603 = vld [vmem:[%s280 + $0x538] sm:$0xff]
        %v604 = vld [vmem:[%s280 + $0x540] sm:$0xff]
        %v605 = vld [vmem:[%s280 + $0x548] sm:$0xff]
        %v606 = vld [vmem:[%s280 + $0x550] sm:$0xff]
        %v607 = vld [vmem:[%s280 + $0x558] sm:$0xff]
        %v608 = vld [vmem:[%s280 + $0x560] sm:$0xff]
        %v609 = vld [vmem:[%s280 + $0x568] sm:$0xff]
        %v610 = vld [vmem:[%s280 + $0x570] sm:$0xff]
        %v611 = vld [vmem:[%s280 + $0x578] sm:$0xff]
        %v612 = vld [vmem:[%s280 + $0x580] sm:$0xff]
        %v613 = vld [vmem:[%s280 + $0x588] sm:$0xff]
        %v614 = vld [vmem:[%s280 + $0x590] sm:$0xff]
        %v615 = vld [vmem:[%s280 + $0x598] sm:$0xff]
        %v616 = vld [vmem:[%s280 + $0x5a0] sm:$0xff]
        %v617 = vld [vmem:[%s280 + $0x5a8] sm:$0xff]
        %v618 = vld [vmem:[%s280 + $0x5b0] sm:$0xff]
        %v619 = vld [vmem:[%s280 + $0x5b8] sm:$0xff]
        %v620 = vld [vmem:[%s280 + $0x5c0] sm:$0xff]
        %v621 = vld [vmem:[%s280 + $0x5c8] sm:$0xff]
        %v622 = vld [vmem:[%s280 + $0x5d0] sm:$0xff]
        %v623 = vld [vmem:[%s280 + $0x5d8] sm:$0xff]
        %v624 = vld [vmem:[%s280 + $0x5e0] sm:$0xff]
        %v625 = vld [vmem:[%s280 + $0x5e8] sm:$0xff]
        %v626 = vld [vmem:[%s280 + $0x5f0] sm:$0xff]
        %v627 = vld [vmem:[%s280 + $0x5f8] sm:$0xff]
        %v628 = vld [vmem:[%s280 + $0x600] sm:$0xff]
        %v629 = vld [vmem:[%s280 + $0x608] sm:$0xff]
        %v630 = vld [vmem:[%s280 + $0x610] sm:$0xff]
        %v631 = vld [vmem:[%s280 + $0x618] sm:$0xff]
        %v632 = vld [vmem:[%s280 + $0x620] sm:$0xff]
        %v633 = vld [vmem:[%s280 + $0x628] sm:$0xff]
        %v634 = vld [vmem:[%s280 + $0x630] sm:$0xff]
        %v635 = vld [vmem:[%s280 + $0x638] sm:$0xff]
        %v636 = vld [vmem:[%s280 + $0x640] sm:$0xff]
        %v637 = vld [vmem:[%s280 + $0x648] sm:$0xff]
        %v638 = vld [vmem:[%s280 + $0x650] sm:$0xff]
        %v639 = vld [vmem:[%s280 + $0x658] sm:$0xff]
        %v640 = vld [vmem:[%s280 + $0x660] sm:$0xff]
        %v641 = vld [vmem:[%s280 + $0x668] sm:$0xff]
        %v642 = vld [vmem:[%s280 + $0x670] sm:$0xff]
        %v643 = vld [vmem:[%s280 + $0x678] sm:$0xff]
        %v644 = vld [vmem:[%s280 + $0x680] sm:$0xff]
        %v645 = vld [vmem:[%s280 + $0x688] sm:$0xff]
        %v646 = vld [vmem:[%s280 + $0x690] sm:$0xff]
        %v647 = vld [vmem:[%s280 + $0x698] sm:$0xff]
        %v648 = vld [vmem:[%s280 + $0x6a0] sm:$0xff]
        %v649 = vld [vmem:[%s280 + $0x6a8] sm:$0xff]
        %v650 = vld [vmem:[%s280 + $0x6b0] sm:$0xff]
        %v651 = vld [vmem:[%s280 + $0x6b8] sm:$0xff]
        %v652 = vld [vmem:[%s280 + $0x6c0] sm:$0xff]
        %v653 = vld [vmem:[%s280 + $0x6c8] sm:$0xff]
        %v654 = vld [vmem:[%s280 + $0x6d0] sm:$0xff]
        %v655 = vld [vmem:[%s280 + $0x6d8] sm:$0xff]
        %v656 = vld [vmem:[%s280 + $0x6e0] sm:$0xff]
        %v657 = vld [vmem:[%s280 + $0x6e8] sm:$0xff]
        %v658 = vld [vmem:[%s280 + $0x6f0] sm:$0xff]
        %v659 = vld [vmem:[%s280 + $0x6f8] sm:$0xff]
        %v660 = vld [vmem:[%s280 + $0x700] sm:$0xff]
        %v661 = vld [vmem:[%s280 + $0x708] sm:$0xff]
        %v662 = vld [vmem:[%s280 + $0x710] sm:$0xff]
        %v663 = vld [vmem:[%s280 + $0x718] sm:$0xff]
        %v664 = vld [vmem:[%s280 + $0x720] sm:$0xff]
        %v665 = vld [vmem:[%s280 + $0x728] sm:$0xff]
        %v666 = vld [vmem:[%s280 + $0x730] sm:$0xff]
        %v667 = vld [vmem:[%s280 + $0x738] sm:$0xff]
        %v668 = vld [vmem:[%s280 + $0x740] sm:$0xff]
        %v669 = vld [vmem:[%s280 + $0x748] sm:$0xff]
        %v670 = vld [vmem:[%s280 + $0x750] sm:$0xff]
        %v671 = vld [vmem:[%s280 + $0x758] sm:$0xff]
        %v672 = vld [vmem:[%s280 + $0x760] sm:$0xff]
        %v673 = vld [vmem:[%s280 + $0x768] sm:$0xff]
        %v674 = vld [vmem:[%s280 + $0x770] sm:$0xff]
        %v675 = vld [vmem:[%s280 + $0x778] sm:$0xff]
        %v676 = vld [vmem:[%s280 + $0x780] sm:$0xff]
        %v677 = vld [vmem:[%s280 + $0x788] sm:$0xff]
        %v678 = vld [vmem:[%s280 + $0x790] sm:$0xff]
        %v679 = vld [vmem:[%s280 + $0x798] sm:$0xff]
        %v680 = vld [vmem:[%s280 + $0x7a0] sm:$0xff]
        %v681 = vld [vmem:[%s280 + $0x7a8] sm:$0xff]
        %v682 = vld [vmem:[%s280 + $0x7b0] sm:$0xff]
        %v683 = vld [vmem:[%s280 + $0x7b8] sm:$0xff]
        %v684 = vld [vmem:[%s280 + $0x7c0] sm:$0xff]
        %v685 = vld [vmem:[%s280 + $0x7c8] sm:$0xff]
        %v686 = vld [vmem:[%s280 + $0x7d0] sm:$0xff]
        %v687 = vld [vmem:[%s280 + $0x7d8] sm:$0xff]
        %v688 = vld [vmem:[%s280 + $0x7e0] sm:$0xff]
        %v689 = vld [vmem:[%s280 + $0x7e8] sm:$0xff]
        %v690 = vld [vmem:[%s280 + $0x7f0] sm:$0xff]
        %v691 = vld [vmem:[%s280 + $0x7f8] sm:$0xff]
        %v692 = vld [vmem:[%s280 + $0x800] sm:$0xff]
        %v693 = vld [vmem:[%s280 + $0x808] sm:$0xff]
        %v694 = vld [vmem:[%s280 + $0x810] sm:$0xff]
        %v695 = vld [vmem:[%s280 + $0x818] sm:$0xff]
        %v696 = vld [vmem:[%s280 + $0x820] sm:$0xff]
        %v697 = vld [vmem:[%s280 + $0x828] sm:$0xff]
        %v698 = vld [vmem:[%s280 + $0x830] sm:$0xff]
        %v699 = vld [vmem:[%s280 + $0x838] sm:$0xff]
        %v700 = vld [vmem:[%s280 + $0x840] sm:$0xff]
        %v701 = vld [vmem:[%s280 + $0x848] sm:$0xff]
        %v702 = vld [vmem:[%s280 + $0x850] sm:$0xff]
        %v703 = vld [vmem:[%s280 + $0x858] sm:$0xff]
        %v704 = vld [vmem:[%s280 + $0x860] sm:$0xff]
        %v705 = vld [vmem:[%s280 + $0x868] sm:$0xff]
        %v706 = vld [vmem:[%s280 + $0x870] sm:$0xff]
        %v707 = vld [vmem:[%s280 + $0x878] sm:$0xff]
        %v708 = vld [vmem:[%s280 + $0x880] sm:$0xff]
        %v709 = vld [vmem:[%s280 + $0x888] sm:$0xff]
        %v710 = vld [vmem:[%s280 + $0x890] sm:$0xff]
        %v711 = vld [vmem:[%s280 + $0x898] sm:$0xff]
        %v712 = vld [vmem:[%s280 + $0x8a0] sm:$0xff]
        %v713 = vld [vmem:[%s280 + $0x8a8] sm:$0xff]
        %v714 = vld [vmem:[%s280 + $0x8b0] sm:$0xff]
        %v715 = vld [vmem:[%s280 + $0x8b8] sm:$0xff]
        %v716 = vld [vmem:[%s280 + $0x8c0] sm:$0xff]
        %v717 = vld [vmem:[%s280 + $0x8c8] sm:$0xff]
        %v718 = vld [vmem:[%s280 + $0x8d0] sm:$0xff]
        %v719 = vld [vmem:[%s280 + $0x8d8] sm:$0xff]
        %v720 = vld [vmem:[%s280 + $0x8e0] sm:$0xff]
        %v721 = vld [vmem:[%s280 + $0x8e8] sm:$0xff]
        %v722 = vld [vmem:[%s280 + $0x8f0] sm:$0xff]
        %v723 = vld [vmem:[%s280 + $0x8f8] sm:$0xff]
        %v724 = vld [vmem:[%s280 + $0x900] sm:$0xff]
        %v725 = vld [vmem:[%s280 + $0x908] sm:$0xff]
        %v726 = vld [vmem:[%s280 + $0x910] sm:$0xff]
        %v727 = vld [vmem:[%s280 + $0x918] sm:$0xff]
        %v728 = vld [vmem:[%s280 + $0x920] sm:$0xff]
        %v729 = vld [vmem:[%s280 + $0x928] sm:$0xff]
        %v730 = vld [vmem:[%s280 + $0x930] sm:$0xff]
        %v731 = vld [vmem:[%s280 + $0x938] sm:$0xff]
        %v732 = vld [vmem:[%s280 + $0x940] sm:$0xff]
        %v733 = vld [vmem:[%s280 + $0x948] sm:$0xff]
        %v734 = vld [vmem:[%s280 + $0x950] sm:$0xff]
        %v735 = vld [vmem:[%s280 + $0x958] sm:$0xff]
        %v736 = vld [vmem:[%s280 + $0x960] sm:$0xff]
        %v737 = vld [vmem:[%s280 + $0x968] sm:$0xff]
        %v738 = vld [vmem:[%s280 + $0x970] sm:$0xff]
        %v739 = vld [vmem:[%s280 + $0x978] sm:$0xff]
        %v740 = vld [vmem:[%s280 + $0x980] sm:$0xff]
        %v741 = vld [vmem:[%s280 + $0x988] sm:$0xff]
        %v742 = vld [vmem:[%s280 + $0x990] sm:$0xff]
        %v743 = vld [vmem:[%s280 + $0x998] sm:$0xff]
        %v744 = vld [vmem:[%s280 + $0x9a0] sm:$0xff]
        %v745 = vld [vmem:[%s280 + $0x9a8] sm:$0xff]
        %v746 = vld [vmem:[%s280 + $0x9b0] sm:$0xff]
        %v747 = vld [vmem:[%s280 + $0x9b8] sm:$0xff]
        %v748 = vld [vmem:[%s280 + $0x9c0] sm:$0xff]
        %v749 = vld [vmem:[%s280 + $0x9c8] sm:$0xff]
        %v750 = vld [vmem:[%s280 + $0x9d0] sm:$0xff]
        %v751 = vld [vmem:[%s280 + $0x9d8] sm:$0xff]
        %v752 = vld [vmem:[%s280 + $0x9e0] sm:$0xff]
        %v753 = vld [vmem:[%s280 + $0x9e8] sm:$0xff]
        %v754 = vld [vmem:[%s280 + $0x9f0] sm:$0xff]
        %v755 = vld [vmem:[%s280 + $0x9f8] sm:$0xff]
        %v756 = vld [vmem:[%s280 + $0xa00] sm:$0xff]
        %v757 = vld [vmem:[%s280 + $0xa08] sm:$0xff]
        %v758 = vld [vmem:[%s280 + $0xa10] sm:$0xff]
        %v759 = vld [vmem:[%s280 + $0xa18] sm:$0xff]
        %v760 = vld [vmem:[%s280 + $0xa20] sm:$0xff]
        %v761 = vld [vmem:[%s280 + $0xa28] sm:$0xff]
        %v762 = vld [vmem:[%s280 + $0xa30] sm:$0xff]
        %v763 = vld [vmem:[%s280 + $0xa38] sm:$0xff]
        %v764 = vld [vmem:[%s280 + $0xa40] sm:$0xff]
        %v765 = vld [vmem:[%s280 + $0xa48] sm:$0xff]
        %v766 = vld [vmem:[%s280 + $0xa50] sm:$0xff]
        %v767 = vld [vmem:[%s280 + $0xa58] sm:$0xff]
        %v768 = vld [vmem:[%s280 + $0xa60] sm:$0xff]
        %v769 = vld [vmem:[%s280 + $0xa68] sm:$0xff]
        %v770 = vld [vmem:[%s280 + $0xa70] sm:$0xff]
        %v771 = vld [vmem:[%s280 + $0xa78] sm:$0xff]
        %v772 = vld [vmem:[%s280 + $0xa80] sm:$0xff]
        %v773 = vld [vmem:[%s280 + $0xa88] sm:$0xff]
        %v774 = vld [vmem:[%s280 + $0xa90] sm:$0xff]
        %v775 = vld [vmem:[%s280 + $0xa98] sm:$0xff]
        %v776 = vld [vmem:[%s280 + $0xaa0] sm:$0xff]
        %v777 = vld [vmem:[%s280 + $0xaa8] sm:$0xff]
        %v778 = vld [vmem:[%s280 + $0xab0] sm:$0xff]
        %v779 = vld [vmem:[%s280 + $0xab8] sm:$0xff]
        %v780 = vld [vmem:[%s280 + $0xac0] sm:$0xff]
        %v781 = vld [vmem:[%s280 + $0xac8] sm:$0xff]
        %v782 = vld [vmem:[%s280 + $0xad0] sm:$0xff]
        %v783 = vld [vmem:[%s280 + $0xad8] sm:$0xff]
        %v784 = vld [vmem:[%s280 + $0xae0] sm:$0xff]
        %v785 = vld [vmem:[%s280 + $0xae8] sm:$0xff]
        %v786 = vld [vmem:[%s280 + $0xaf0] sm:$0xff]
        %v787 = vld [vmem:[%s280 + $0xaf8] sm:$0xff]
        %v788 = vld [vmem:[%s280 + $0xb00] sm:$0xff]
        %v789 = vld [vmem:[%s280 + $0xb08] sm:$0xff]
        %v790 = vld [vmem:[%s280 + $0xb10] sm:$0xff]
        %v791 = vld [vmem:[%s280 + $0xb18] sm:$0xff]
        %v792 = vld [vmem:[%s280 + $0xb20] sm:$0xff]
        %v793 = vld [vmem:[%s280 + $0xb28] sm:$0xff]
        %v794 = vld [vmem:[%s280 + $0xb30] sm:$0xff]
        %v795 = vld [vmem:[%s280 + $0xb38] sm:$0xff]
        %v796 = vld [vmem:[%s280 + $0xb40] sm:$0xff]
        %v797 = vld [vmem:[%s280 + $0xb48] sm:$0xff]
        %v798 = vld [vmem:[%s280 + $0xb50] sm:$0xff]
        %v799 = vld [vmem:[%s280 + $0xb58] sm:$0xff]
        %v800 = vld [vmem:[%s280 + $0xb60] sm:$0xff]
        %v801 = vld [vmem:[%s280 + $0xb68] sm:$0xff]
        %v802 = vld [vmem:[%s280 + $0xb70] sm:$0xff]
        %v803 = vld [vmem:[%s280 + $0xb78] sm:$0xff]
        %v804 = vld [vmem:[%s280 + $0xb80] sm:$0xff]
        %v805 = vld [vmem:[%s280 + $0xb88] sm:$0xff]
        %v806 = vld [vmem:[%s280 + $0xb90] sm:$0xff]
        %v807 = vld [vmem:[%s280 + $0xb98] sm:$0xff]
        %v808 = vld [vmem:[%s280 + $0xba0] sm:$0xff]
        %v809 = vld [vmem:[%s280 + $0xba8] sm:$0xff]
        %v810 = vld [vmem:[%s280 + $0xbb0] sm:$0xff]
        %v811 = vld [vmem:[%s280 + $0xbb8] sm:$0xff]
        %v812 = vld [vmem:[%s280 + $0xbc0] sm:$0xff]
        %v813 = vld [vmem:[%s280 + $0xbc8] sm:$0xff]
        %v814 = vld [vmem:[%s280 + $0xbd0] sm:$0xff]
        %v815 = vld [vmem:[%s280 + $0xbd8] sm:$0xff]
        %v816 = vld [vmem:[%s280 + $0xbe0] sm:$0xff]
        %v817 = vld [vmem:[%s280 + $0xbe8] sm:$0xff]
        %v818 = vld [vmem:[%s280 + $0xbf0] sm:$0xff]
        %v819 = vld [vmem:[%s280 + $0xbf8] sm:$0xff]
        %v820 = vld [vmem:[%s289] sm:$0xff]
        %v822 = vlaneseq
        %v823 = vshrl.u32 %v822, 7
        %v824 = vsub.s32 0, %v823
        %v825 = vrot.slane %v820, %v824
        %v826 = vlaneseq
        %v827 = vshrl.u32 %v826, 7
        %v828 = vsub.s32 1, %v827
        %v829 = vrot.slane %v820, %v828
        %v830 = vlaneseq
        %v831 = vshrl.u32 %v830, 7
        %v832 = vsub.s32 2, %v831
        %v833 = vrot.slane %v820, %v832
        %v834 = vlaneseq
        %v835 = vshrl.u32 %v834, 7
        %v836 = vsub.s32 3, %v835
        %v837 = vrot.slane %v820, %v836
        %v838 = vlaneseq
        %v839 = vshrl.u32 %v838, 7
        %v840 = vsub.s32 4, %v839
        %v841 = vrot.slane %v820, %v840
        %v842 = vlaneseq
        %v843 = vshrl.u32 %v842, 7
        %v844 = vsub.s32 5, %v843
        %v845 = vrot.slane %v820, %v844
        %v846 = vlaneseq
        %v847 = vshrl.u32 %v846, 7
        %v848 = vsub.s32 6, %v847
        %v849 = vrot.slane %v820, %v848
        %v850 = vlaneseq
        %v851 = vshrl.u32 %v850, 7
        %v852 = vsub.s32 7, %v851
        %v853 = vrot.slane %v820, %v852
        %v883 = vunpack.c.l.b16 %v415
        %v884 = vunpack.c.h.b16 %v415
        %v885 = vunpack.c.l.b16 %v416
        %v886 = vunpack.c.h.b16 %v416
        %v887 = vunpack.c.l.b16 %v417
        %v888 = vunpack.c.h.b16 %v417
        %v889 = vunpack.c.l.b16 %v418
        %v890 = vunpack.c.h.b16 %v418
        %v891 = vunpack.c.l.b16 %v419
        %v892 = vunpack.c.h.b16 %v419
        %v893 = vunpack.c.l.b16 %v420
        %v894 = vunpack.c.h.b16 %v420
        %v895 = vunpack.c.l.b16 %v421
        %v896 = vunpack.c.h.b16 %v421
        %v897 = vunpack.c.l.b16 %v422
        %v898 = vunpack.c.h.b16 %v422
        %v899 = vunpack.c.l.b16 %v423
        %v900 = vunpack.c.h.b16 %v423
        %v901 = vunpack.c.l.b16 %v424
        %v902 = vunpack.c.h.b16 %v424
        %v903 = vunpack.c.l.b16 %v425
        %v904 = vunpack.c.h.b16 %v425
        %v905 = vunpack.c.l.b16 %v426
        %v906 = vunpack.c.h.b16 %v426
        %v907 = vunpack.c.l.b16 %v427
        %v908 = vunpack.c.h.b16 %v427
        %v909 = vunpack.c.l.b16 %v428
        %v910 = vunpack.c.h.b16 %v428
        %v911 = vunpack.c.l.b16 %v429
        %v912 = vunpack.c.h.b16 %v429
        %v913 = vunpack.c.l.b16 %v430
        %v914 = vunpack.c.h.b16 %v430
        %v915 = vunpack.c.l.b16 %v431
        %v916 = vunpack.c.h.b16 %v431
        %v917 = vunpack.c.l.b16 %v432
        %v918 = vunpack.c.h.b16 %v432
        %v919 = vunpack.c.l.b16 %v433
        %v920 = vunpack.c.h.b16 %v433
        %v921 = vunpack.c.l.b16 %v434
        %v922 = vunpack.c.h.b16 %v434
        %v923 = vunpack.c.l.b16 %v435
        %v924 = vunpack.c.h.b16 %v435
        %v925 = vpack.c.b16 %v889, %v883
        %v926 = vpack.c.b16 %v890, %v884
        %v927 = vpack.c.b16 %v891, %v885
        %v928 = vpack.c.b16 %v892, %v886
        %v929 = vpack.c.b16 %v893, %v887
        %v930 = vpack.c.b16 %v894, %v888
        %v931 = vpack.c.b16 %v901, %v895
        %v932 = vpack.c.b16 %v902, %v896
        %v933 = vpack.c.b16 %v903, %v897
        %v934 = vpack.c.b16 %v904, %v898
        %v935 = vpack.c.b16 %v905, %v899
        %v936 = vpack.c.b16 %v906, %v900
        %v937 = vpack.c.b16 %v913, %v907
        %v938 = vpack.c.b16 %v914, %v908
        %v939 = vpack.c.b16 %v915, %v909
        %v940 = vpack.c.b16 %v916, %v910
        %v941 = vpack.c.b16 %v917, %v911
        %v942 = vpack.c.b16 %v918, %v912
        %v943 = vpack.c.b16 %v919, %v919
        %v944 = vpack.c.b16 %v920, %v920
        %v945 = vpack.c.b16 %v921, %v921
        %v946 = vpack.c.b16 %v922, %v922
        %v947 = vpack.c.b16 %v923, %v923
        %v948 = vpack.c.b16 %v924, %v924
        %v1357 = vunpack.c.l.b16 %v436
        %v1358 = vunpack.c.h.b16 %v436
        %v1359 = vunpack.c.l.b16 %v437
        %v1360 = vunpack.c.h.b16 %v437
        %v1361 = vunpack.c.l.b16 %v438
        %v1362 = vunpack.c.h.b16 %v438
        %v1363 = vunpack.c.l.b16 %v439
        %v1364 = vunpack.c.h.b16 %v439
        %v1365 = vunpack.c.l.b16 %v440
        %v1366 = vunpack.c.h.b16 %v440
        %v1367 = vunpack.c.l.b16 %v441
        %v1368 = vunpack.c.h.b16 %v441
        %v1369 = vunpack.c.l.b16 %v442
        %v1370 = vunpack.c.h.b16 %v442
        %v1371 = vunpack.c.l.b16 %v443
        %v1372 = vunpack.c.h.b16 %v443
        %v1373 = vunpack.c.l.b16 %v444
        %v1374 = vunpack.c.h.b16 %v444
        %v1375 = vunpack.c.l.b16 %v445
        %v1376 = vunpack.c.h.b16 %v445
        %v1377 = vunpack.c.l.b16 %v446
        %v1378 = vunpack.c.h.b16 %v446
        %v1379 = vunpack.c.l.b16 %v447
        %v1380 = vunpack.c.h.b16 %v447
        %v1381 = vunpack.c.l.b16 %v448
        %v1382 = vunpack.c.h.b16 %v448
        %v1383 = vunpack.c.l.b16 %v449
        %v1384 = vunpack.c.h.b16 %v449
        %v1385 = vunpack.c.l.b16 %v450
        %v1386 = vunpack.c.h.b16 %v450
        %v1387 = vunpack.c.l.b16 %v451
        %v1388 = vunpack.c.h.b16 %v451
        %v1389 = vunpack.c.l.b16 %v452
        %v1390 = vunpack.c.h.b16 %v452
        %v1391 = vunpack.c.l.b16 %v453
        %v1392 = vunpack.c.h.b16 %v453
        %v1393 = vunpack.c.l.b16 %v454
        %v1394 = vunpack.c.h.b16 %v454
        %v1395 = vunpack.c.l.b16 %v455
        %v1396 = vunpack.c.h.b16 %v455
        %v1397 = vunpack.c.l.b16 %v456
        %v1398 = vunpack.c.h.b16 %v456
        %v1399 = vunpack.c.l.b16 %v457
        %v1400 = vunpack.c.h.b16 %v457
        %v1401 = vunpack.c.l.b16 %v458
        %v1402 = vunpack.c.h.b16 %v458
        %v1403 = vunpack.c.l.b16 %v459
        %v1404 = vunpack.c.h.b16 %v459
        %v1405 = vunpack.c.l.b16 %v460
        %v1406 = vunpack.c.h.b16 %v460
        %v1407 = vunpack.c.l.b16 %v461
        %v1408 = vunpack.c.h.b16 %v461
        %v1409 = vunpack.c.l.b16 %v462
        %v1410 = vunpack.c.h.b16 %v462
        %v1411 = vunpack.c.l.b16 %v463
        %v1412 = vunpack.c.h.b16 %v463
        %v1413 = vunpack.c.l.b16 %v464
        %v1414 = vunpack.c.h.b16 %v464
        %v1415 = vunpack.c.l.b16 %v465
        %v1416 = vunpack.c.h.b16 %v465
        %v1417 = vunpack.c.l.b16 %v466
        %v1418 = vunpack.c.h.b16 %v466
        %v1419 = vunpack.c.l.b16 %v467
        %v1420 = vunpack.c.h.b16 %v467
        %v1421 = vunpack.c.l.b16 %v468
        %v1422 = vunpack.c.h.b16 %v468
        %v1423 = vunpack.c.l.b16 %v469
        %v1424 = vunpack.c.h.b16 %v469
        %v1425 = vunpack.c.l.b16 %v470
        %v1426 = vunpack.c.h.b16 %v470
        %v1427 = vunpack.c.l.b16 %v471
        %v1428 = vunpack.c.h.b16 %v471
        %v1429 = vunpack.c.l.b16 %v472
        %v1430 = vunpack.c.h.b16 %v472
        %v1431 = vunpack.c.l.b16 %v473
        %v1432 = vunpack.c.h.b16 %v473
        %v1433 = vunpack.c.l.b16 %v474
        %v1434 = vunpack.c.h.b16 %v474
        %v1435 = vunpack.c.l.b16 %v475
        %v1436 = vunpack.c.h.b16 %v475
        %v1437 = vunpack.c.l.b16 %v476
        %v1438 = vunpack.c.h.b16 %v476
        %v1439 = vunpack.c.l.b16 %v477
        %v1440 = vunpack.c.h.b16 %v477
        %v1441 = vunpack.c.l.b16 %v478
        %v1442 = vunpack.c.h.b16 %v478
        %v1443 = vunpack.c.l.b16 %v479
        %v1444 = vunpack.c.h.b16 %v479
        %v1445 = vunpack.c.l.b16 %v480
        %v1446 = vunpack.c.h.b16 %v480
        %v1447 = vunpack.c.l.b16 %v481
        %v1448 = vunpack.c.h.b16 %v481
        %v1449 = vunpack.c.l.b16 %v482
        %v1450 = vunpack.c.h.b16 %v482
        %v1451 = vunpack.c.l.b16 %v483
        %v1452 = vunpack.c.h.b16 %v483
        %v1453 = vunpack.c.l.b16 %v484
        %v1454 = vunpack.c.h.b16 %v484
        %v1455 = vunpack.c.l.b16 %v485
        %v1456 = vunpack.c.h.b16 %v485
        %v1457 = vunpack.c.l.b16 %v486
        %v1458 = vunpack.c.h.b16 %v486
        %v1459 = vunpack.c.l.b16 %v487
        %v1460 = vunpack.c.h.b16 %v487
        %v1461 = vunpack.c.l.b16 %v488
        %v1462 = vunpack.c.h.b16 %v488
        %v1463 = vunpack.c.l.b16 %v489
        %v1464 = vunpack.c.h.b16 %v489
        %v1465 = vunpack.c.l.b16 %v490
        %v1466 = vunpack.c.h.b16 %v490
        %v1467 = vunpack.c.l.b16 %v491
        %v1468 = vunpack.c.h.b16 %v491
        %v1469 = vunpack.c.l.b16 %v492
        %v1470 = vunpack.c.h.b16 %v492
        %v1471 = vunpack.c.l.b16 %v493
        %v1472 = vunpack.c.h.b16 %v493
        %v1473 = vunpack.c.l.b16 %v494
        %v1474 = vunpack.c.h.b16 %v494
        %v1475 = vunpack.c.l.b16 %v495
        %v1476 = vunpack.c.h.b16 %v495
        %v1477 = vunpack.c.l.b16 %v496
        %v1478 = vunpack.c.h.b16 %v496
        %v1479 = vunpack.c.l.b16 %v497
        %v1480 = vunpack.c.h.b16 %v497
        %v1481 = vunpack.c.l.b16 %v498
        %v1482 = vunpack.c.h.b16 %v498
        %v1483 = vunpack.c.l.b16 %v499
        %v1484 = vunpack.c.h.b16 %v499
        %v1485 = vunpack.c.l.b16 %v500
        %v1486 = vunpack.c.h.b16 %v500
        %v1487 = vunpack.c.l.b16 %v501
        %v1488 = vunpack.c.h.b16 %v501
        %v1489 = vunpack.c.l.b16 %v502
        %v1490 = vunpack.c.h.b16 %v502
        %v1491 = vunpack.c.l.b16 %v503
        %v1492 = vunpack.c.h.b16 %v503
        %v1493 = vunpack.c.l.b16 %v504
        %v1494 = vunpack.c.h.b16 %v504
        %v1495 = vunpack.c.l.b16 %v505
        %v1496 = vunpack.c.h.b16 %v505
        %v1497 = vunpack.c.l.b16 %v506
        %v1498 = vunpack.c.h.b16 %v506
        %v1499 = vunpack.c.l.b16 %v507
        %v1500 = vunpack.c.h.b16 %v507
        %v1501 = vunpack.c.l.b16 %v508
        %v1502 = vunpack.c.h.b16 %v508
        %v1503 = vunpack.c.l.b16 %v509
        %v1504 = vunpack.c.h.b16 %v509
        %v1505 = vunpack.c.l.b16 %v510
        %v1506 = vunpack.c.h.b16 %v510
        %v1507 = vunpack.c.l.b16 %v511
        %v1508 = vunpack.c.h.b16 %v511
        %v1509 = vunpack.c.l.b16 %v512
        %v1510 = vunpack.c.h.b16 %v512
        %v1511 = vunpack.c.l.b16 %v513
        %v1512 = vunpack.c.h.b16 %v513
        %v1513 = vunpack.c.l.b16 %v514
        %v1514 = vunpack.c.h.b16 %v514
        %v1515 = vunpack.c.l.b16 %v515
        %v1516 = vunpack.c.h.b16 %v515
        %v1517 = vunpack.c.l.b16 %v516
        %v1518 = vunpack.c.h.b16 %v516
        %v1519 = vunpack.c.l.b16 %v517
        %v1520 = vunpack.c.h.b16 %v517
        %v1521 = vunpack.c.l.b16 %v518
        %v1522 = vunpack.c.h.b16 %v518
        %v1523 = vunpack.c.l.b16 %v519
        %v1524 = vunpack.c.h.b16 %v519
        %v1525 = vunpack.c.l.b16 %v520
        %v1526 = vunpack.c.h.b16 %v520
        %v1527 = vunpack.c.l.b16 %v521
        %v1528 = vunpack.c.h.b16 %v521
        %v1529 = vunpack.c.l.b16 %v522
        %v1530 = vunpack.c.h.b16 %v522
        %v1531 = vunpack.c.l.b16 %v523
        %v1532 = vunpack.c.h.b16 %v523
        %v1533 = vunpack.c.l.b16 %v524
        %v1534 = vunpack.c.h.b16 %v524
        %v1535 = vunpack.c.l.b16 %v525
        %v1536 = vunpack.c.h.b16 %v525
        %v1537 = vunpack.c.l.b16 %v526
        %v1538 = vunpack.c.h.b16 %v526
        %v1539 = vunpack.c.l.b16 %v527
        %v1540 = vunpack.c.h.b16 %v527
        %v1541 = vunpack.c.l.b16 %v528
        %v1542 = vunpack.c.h.b16 %v528
        %v1543 = vunpack.c.l.b16 %v529
        %v1544 = vunpack.c.h.b16 %v529
        %v1545 = vunpack.c.l.b16 %v530
        %v1546 = vunpack.c.h.b16 %v530
        %v1547 = vunpack.c.l.b16 %v531
        %v1548 = vunpack.c.h.b16 %v531
        %v1549 = vunpack.c.l.b16 %v532
        %v1550 = vunpack.c.h.b16 %v532
        %v1551 = vunpack.c.l.b16 %v533
        %v1552 = vunpack.c.h.b16 %v533
        %v1553 = vunpack.c.l.b16 %v534
        %v1554 = vunpack.c.h.b16 %v534
        %v1555 = vunpack.c.l.b16 %v535
        %v1556 = vunpack.c.h.b16 %v535
        %v1557 = vunpack.c.l.b16 %v536
        %v1558 = vunpack.c.h.b16 %v536
        %v1559 = vunpack.c.l.b16 %v537
        %v1560 = vunpack.c.h.b16 %v537
        %v1561 = vunpack.c.l.b16 %v538
        %v1562 = vunpack.c.h.b16 %v538
        %v1563 = vunpack.c.l.b16 %v539
        %v1564 = vunpack.c.h.b16 %v539
        %v1565 = vunpack.c.l.b16 %v540
        %v1566 = vunpack.c.h.b16 %v540
        %v1567 = vunpack.c.l.b16 %v541
        %v1568 = vunpack.c.h.b16 %v541
        %v1569 = vunpack.c.l.b16 %v542
        %v1570 = vunpack.c.h.b16 %v542
        %v1571 = vunpack.c.l.b16 %v543
        %v1572 = vunpack.c.h.b16 %v543
        %v1573 = vunpack.c.l.b16 %v544
        %v1574 = vunpack.c.h.b16 %v544
        %v1575 = vunpack.c.l.b16 %v545
        %v1576 = vunpack.c.h.b16 %v545
        %v1577 = vunpack.c.l.b16 %v546
        %v1578 = vunpack.c.h.b16 %v546
        %v1579 = vunpack.c.l.b16 %v547
        %v1580 = vunpack.c.h.b16 %v547
        %v1581 = vunpack.c.l.b16 %v548
        %v1582 = vunpack.c.h.b16 %v548
        %v1583 = vunpack.c.l.b16 %v549
        %v1584 = vunpack.c.h.b16 %v549
        %v1585 = vunpack.c.l.b16 %v550
        %v1586 = vunpack.c.h.b16 %v550
        %v1587 = vunpack.c.l.b16 %v551
        %v1588 = vunpack.c.h.b16 %v551
        %v1589 = vunpack.c.l.b16 %v552
        %v1590 = vunpack.c.h.b16 %v552
        %v1591 = vunpack.c.l.b16 %v553
        %v1592 = vunpack.c.h.b16 %v553
        %v1593 = vunpack.c.l.b16 %v554
        %v1594 = vunpack.c.h.b16 %v554
        %v1595 = vunpack.c.l.b16 %v555
        %v1596 = vunpack.c.h.b16 %v555
        %v1597 = vunpack.c.l.b16 %v556
        %v1598 = vunpack.c.h.b16 %v556
        %v1599 = vunpack.c.l.b16 %v557
        %v1600 = vunpack.c.h.b16 %v557
        %v1601 = vunpack.c.l.b16 %v558
        %v1602 = vunpack.c.h.b16 %v558
        %v1603 = vunpack.c.l.b16 %v559
        %v1604 = vunpack.c.h.b16 %v559
        %v1605 = vunpack.c.l.b16 %v560
        %v1606 = vunpack.c.h.b16 %v560
        %v1607 = vunpack.c.l.b16 %v561
        %v1608 = vunpack.c.h.b16 %v561
        %v1609 = vunpack.c.l.b16 %v562
        %v1610 = vunpack.c.h.b16 %v562
        %v1611 = vunpack.c.l.b16 %v563
        %v1612 = vunpack.c.h.b16 %v563
        %v1613 = vunpack.c.l.b16 %v564
        %v1614 = vunpack.c.h.b16 %v564
        %v1615 = vunpack.c.l.b16 %v565
        %v1616 = vunpack.c.h.b16 %v565
        %v1617 = vunpack.c.l.b16 %v566
        %v1618 = vunpack.c.h.b16 %v566
        %v1619 = vunpack.c.l.b16 %v567
        %v1620 = vunpack.c.h.b16 %v567
        %v1621 = vunpack.c.l.b16 %v568
        %v1622 = vunpack.c.h.b16 %v568
        %v1623 = vunpack.c.l.b16 %v569
        %v1624 = vunpack.c.h.b16 %v569
        %v1625 = vunpack.c.l.b16 %v570
        %v1626 = vunpack.c.h.b16 %v570
        %v1627 = vunpack.c.l.b16 %v571
        %v1628 = vunpack.c.h.b16 %v571
        %v1629 = vunpack.c.l.b16 %v572
        %v1630 = vunpack.c.h.b16 %v572
        %v1631 = vunpack.c.l.b16 %v573
        %v1632 = vunpack.c.h.b16 %v573
        %v1633 = vunpack.c.l.b16 %v574
        %v1634 = vunpack.c.h.b16 %v574
        %v1635 = vunpack.c.l.b16 %v575
        %v1636 = vunpack.c.h.b16 %v575
        %v1637 = vunpack.c.l.b16 %v576
        %v1638 = vunpack.c.h.b16 %v576
        %v1639 = vunpack.c.l.b16 %v577
        %v1640 = vunpack.c.h.b16 %v577
        %v1641 = vunpack.c.l.b16 %v578
        %v1642 = vunpack.c.h.b16 %v578
        %v1643 = vunpack.c.l.b16 %v579
        %v1644 = vunpack.c.h.b16 %v579
        %v1645 = vunpack.c.l.b16 %v580
        %v1646 = vunpack.c.h.b16 %v580
        %v1647 = vunpack.c.l.b16 %v581
        %v1648 = vunpack.c.h.b16 %v581
        %v1649 = vunpack.c.l.b16 %v582
        %v1650 = vunpack.c.h.b16 %v582
        %v1651 = vunpack.c.l.b16 %v583
        %v1652 = vunpack.c.h.b16 %v583
        %v1653 = vunpack.c.l.b16 %v584
        %v1654 = vunpack.c.h.b16 %v584
        %v1655 = vunpack.c.l.b16 %v585
        %v1656 = vunpack.c.h.b16 %v585
        %v1657 = vunpack.c.l.b16 %v586
        %v1658 = vunpack.c.h.b16 %v586
        %v1659 = vunpack.c.l.b16 %v587
        %v1660 = vunpack.c.h.b16 %v587
        %v1661 = vunpack.c.l.b16 %v588
        %v1662 = vunpack.c.h.b16 %v588
        %v1663 = vunpack.c.l.b16 %v589
        %v1664 = vunpack.c.h.b16 %v589
        %v1665 = vunpack.c.l.b16 %v590
        %v1666 = vunpack.c.h.b16 %v590
        %v1667 = vunpack.c.l.b16 %v591
        %v1668 = vunpack.c.h.b16 %v591
        %v1669 = vunpack.c.l.b16 %v592
        %v1670 = vunpack.c.h.b16 %v592
        %v1671 = vunpack.c.l.b16 %v593
        %v1672 = vunpack.c.h.b16 %v593
        %v1673 = vunpack.c.l.b16 %v594
        %v1674 = vunpack.c.h.b16 %v594
        %v1675 = vunpack.c.l.b16 %v595
        %v1676 = vunpack.c.h.b16 %v595
        %v1677 = vunpack.c.l.b16 %v596
        %v1678 = vunpack.c.h.b16 %v596
        %v1679 = vunpack.c.l.b16 %v597
        %v1680 = vunpack.c.h.b16 %v597
        %v1681 = vunpack.c.l.b16 %v598
        %v1682 = vunpack.c.h.b16 %v598
        %v1683 = vunpack.c.l.b16 %v599
        %v1684 = vunpack.c.h.b16 %v599
        %v1685 = vunpack.c.l.b16 %v600
        %v1686 = vunpack.c.h.b16 %v600
        %v1687 = vunpack.c.l.b16 %v601
        %v1688 = vunpack.c.h.b16 %v601
        %v1689 = vunpack.c.l.b16 %v602
        %v1690 = vunpack.c.h.b16 %v602
        %v1691 = vunpack.c.l.b16 %v603
        %v1692 = vunpack.c.h.b16 %v603
        %v1693 = vunpack.c.l.b16 %v604
        %v1694 = vunpack.c.h.b16 %v604
        %v1695 = vunpack.c.l.b16 %v605
        %v1696 = vunpack.c.h.b16 %v605
        %v1697 = vunpack.c.l.b16 %v606
        %v1698 = vunpack.c.h.b16 %v606
        %v1699 = vunpack.c.l.b16 %v607
        %v1700 = vunpack.c.h.b16 %v607
        %v1701 = vunpack.c.l.b16 %v608
        %v1702 = vunpack.c.h.b16 %v608
        %v1703 = vunpack.c.l.b16 %v609
        %v1704 = vunpack.c.h.b16 %v609
        %v1705 = vunpack.c.l.b16 %v610
        %v1706 = vunpack.c.h.b16 %v610
        %v1707 = vunpack.c.l.b16 %v611
        %v1708 = vunpack.c.h.b16 %v611
        %v1709 = vunpack.c.l.b16 %v612
        %v1710 = vunpack.c.h.b16 %v612
        %v1711 = vunpack.c.l.b16 %v613
        %v1712 = vunpack.c.h.b16 %v613
        %v1713 = vunpack.c.l.b16 %v614
        %v1714 = vunpack.c.h.b16 %v614
        %v1715 = vunpack.c.l.b16 %v615
        %v1716 = vunpack.c.h.b16 %v615
        %v1717 = vunpack.c.l.b16 %v616
        %v1718 = vunpack.c.h.b16 %v616
        %v1719 = vunpack.c.l.b16 %v617
        %v1720 = vunpack.c.h.b16 %v617
        %v1721 = vunpack.c.l.b16 %v618
        %v1722 = vunpack.c.h.b16 %v618
        %v1723 = vunpack.c.l.b16 %v619
        %v1724 = vunpack.c.h.b16 %v619
        %v1725 = vunpack.c.l.b16 %v620
        %v1726 = vunpack.c.h.b16 %v620
        %v1727 = vunpack.c.l.b16 %v621
        %v1728 = vunpack.c.h.b16 %v621
        %v1729 = vunpack.c.l.b16 %v622
        %v1730 = vunpack.c.h.b16 %v622
        %v1731 = vunpack.c.l.b16 %v623
        %v1732 = vunpack.c.h.b16 %v623
        %v1733 = vunpack.c.l.b16 %v624
        %v1734 = vunpack.c.h.b16 %v624
        %v1735 = vunpack.c.l.b16 %v625
        %v1736 = vunpack.c.h.b16 %v625
        %v1737 = vunpack.c.l.b16 %v626
        %v1738 = vunpack.c.h.b16 %v626
        %v1739 = vunpack.c.l.b16 %v627
        %v1740 = vunpack.c.h.b16 %v627
        %v1741 = vunpack.c.l.b16 %v628
        %v1742 = vunpack.c.h.b16 %v628
        %v1743 = vunpack.c.l.b16 %v629
        %v1744 = vunpack.c.h.b16 %v629
        %v1745 = vunpack.c.l.b16 %v630
        %v1746 = vunpack.c.h.b16 %v630
        %v1747 = vunpack.c.l.b16 %v631
        %v1748 = vunpack.c.h.b16 %v631
        %v1749 = vunpack.c.l.b16 %v632
        %v1750 = vunpack.c.h.b16 %v632
        %v1751 = vunpack.c.l.b16 %v633
        %v1752 = vunpack.c.h.b16 %v633
        %v1753 = vunpack.c.l.b16 %v634
        %v1754 = vunpack.c.h.b16 %v634
        %v1755 = vunpack.c.l.b16 %v635
        %v1756 = vunpack.c.h.b16 %v635
        %v1757 = vunpack.c.l.b16 %v636
        %v1758 = vunpack.c.h.b16 %v636
        %v1759 = vunpack.c.l.b16 %v637
        %v1760 = vunpack.c.h.b16 %v637
        %v1761 = vunpack.c.l.b16 %v638
        %v1762 = vunpack.c.h.b16 %v638
        %v1763 = vunpack.c.l.b16 %v639
        %v1764 = vunpack.c.h.b16 %v639
        %v1765 = vunpack.c.l.b16 %v640
        %v1766 = vunpack.c.h.b16 %v640
        %v1767 = vunpack.c.l.b16 %v641
        %v1768 = vunpack.c.h.b16 %v641
        %v1769 = vunpack.c.l.b16 %v642
        %v1770 = vunpack.c.h.b16 %v642
        %v1771 = vunpack.c.l.b16 %v643
        %v1772 = vunpack.c.h.b16 %v643
        %v1773 = vunpack.c.l.b16 %v644
        %v1774 = vunpack.c.h.b16 %v644
        %v1775 = vunpack.c.l.b16 %v645
        %v1776 = vunpack.c.h.b16 %v645
        %v1777 = vunpack.c.l.b16 %v646
        %v1778 = vunpack.c.h.b16 %v646
        %v1779 = vunpack.c.l.b16 %v647
        %v1780 = vunpack.c.h.b16 %v647
        %v1781 = vunpack.c.l.b16 %v648
        %v1782 = vunpack.c.h.b16 %v648
        %v1783 = vunpack.c.l.b16 %v649
        %v1784 = vunpack.c.h.b16 %v649
        %v1785 = vunpack.c.l.b16 %v650
        %v1786 = vunpack.c.h.b16 %v650
        %v1787 = vunpack.c.l.b16 %v651
        %v1788 = vunpack.c.h.b16 %v651
        %v1789 = vunpack.c.l.b16 %v652
        %v1790 = vunpack.c.h.b16 %v652
        %v1791 = vunpack.c.l.b16 %v653
        %v1792 = vunpack.c.h.b16 %v653
        %v1793 = vunpack.c.l.b16 %v654
        %v1794 = vunpack.c.h.b16 %v654
        %v1795 = vunpack.c.l.b16 %v655
        %v1796 = vunpack.c.h.b16 %v655
        %v1797 = vunpack.c.l.b16 %v656
        %v1798 = vunpack.c.h.b16 %v656
        %v1799 = vunpack.c.l.b16 %v657
        %v1800 = vunpack.c.h.b16 %v657
        %v1801 = vunpack.c.l.b16 %v658
        %v1802 = vunpack.c.h.b16 %v658
        %v1803 = vunpack.c.l.b16 %v659
        %v1804 = vunpack.c.h.b16 %v659
        %v1805 = vunpack.c.l.b16 %v660
        %v1806 = vunpack.c.h.b16 %v660
        %v1807 = vunpack.c.l.b16 %v661
        %v1808 = vunpack.c.h.b16 %v661
        %v1809 = vunpack.c.l.b16 %v662
        %v1810 = vunpack.c.h.b16 %v662
        %v1811 = vunpack.c.l.b16 %v663
        %v1812 = vunpack.c.h.b16 %v663
        %v1813 = vunpack.c.l.b16 %v664
        %v1814 = vunpack.c.h.b16 %v664
        %v1815 = vunpack.c.l.b16 %v665
        %v1816 = vunpack.c.h.b16 %v665
        %v1817 = vunpack.c.l.b16 %v666
        %v1818 = vunpack.c.h.b16 %v666
        %v1819 = vunpack.c.l.b16 %v667
        %v1820 = vunpack.c.h.b16 %v667
        %v1821 = vunpack.c.l.b16 %v668
        %v1822 = vunpack.c.h.b16 %v668
        %v1823 = vunpack.c.l.b16 %v669
        %v1824 = vunpack.c.h.b16 %v669
        %v1825 = vunpack.c.l.b16 %v670
        %v1826 = vunpack.c.h.b16 %v670
        %v1827 = vunpack.c.l.b16 %v671
        %v1828 = vunpack.c.h.b16 %v671
        %v1829 = vunpack.c.l.b16 %v672
        %v1830 = vunpack.c.h.b16 %v672
        %v1831 = vunpack.c.l.b16 %v673
        %v1832 = vunpack.c.h.b16 %v673
        %v1833 = vunpack.c.l.b16 %v674
        %v1834 = vunpack.c.h.b16 %v674
        %v1835 = vunpack.c.l.b16 %v675
        %v1836 = vunpack.c.h.b16 %v675
        %v1837 = vunpack.c.l.b16 %v676
        %v1838 = vunpack.c.h.b16 %v676
        %v1839 = vunpack.c.l.b16 %v677
        %v1840 = vunpack.c.h.b16 %v677
        %v1841 = vunpack.c.l.b16 %v678
        %v1842 = vunpack.c.h.b16 %v678
        %v1843 = vunpack.c.l.b16 %v679
        %v1844 = vunpack.c.h.b16 %v679
        %v1845 = vunpack.c.l.b16 %v680
        %v1846 = vunpack.c.h.b16 %v680
        %v1847 = vunpack.c.l.b16 %v681
        %v1848 = vunpack.c.h.b16 %v681
        %v1849 = vunpack.c.l.b16 %v682
        %v1850 = vunpack.c.h.b16 %v682
        %v1851 = vunpack.c.l.b16 %v683
        %v1852 = vunpack.c.h.b16 %v683
        %v1853 = vunpack.c.l.b16 %v684
        %v1854 = vunpack.c.h.b16 %v684
        %v1855 = vunpack.c.l.b16 %v685
        %v1856 = vunpack.c.h.b16 %v685
        %v1857 = vunpack.c.l.b16 %v686
        %v1858 = vunpack.c.h.b16 %v686
        %v1859 = vunpack.c.l.b16 %v687
        %v1860 = vunpack.c.h.b16 %v687
        %v1861 = vunpack.c.l.b16 %v688
        %v1862 = vunpack.c.h.b16 %v688
        %v1863 = vunpack.c.l.b16 %v689
        %v1864 = vunpack.c.h.b16 %v689
        %v1865 = vunpack.c.l.b16 %v690
        %v1866 = vunpack.c.h.b16 %v690
        %v1867 = vunpack.c.l.b16 %v691
        %v1868 = vunpack.c.h.b16 %v691
        %v1869 = vunpack.c.l.b16 %v692
        %v1870 = vunpack.c.h.b16 %v692
        %v1871 = vunpack.c.l.b16 %v693
        %v1872 = vunpack.c.h.b16 %v693
        %v1873 = vunpack.c.l.b16 %v694
        %v1874 = vunpack.c.h.b16 %v694
        %v1875 = vunpack.c.l.b16 %v695
        %v1876 = vunpack.c.h.b16 %v695
        %v1877 = vunpack.c.l.b16 %v696
        %v1878 = vunpack.c.h.b16 %v696
        %v1879 = vunpack.c.l.b16 %v697
        %v1880 = vunpack.c.h.b16 %v697
        %v1881 = vunpack.c.l.b16 %v698
        %v1882 = vunpack.c.h.b16 %v698
        %v1883 = vunpack.c.l.b16 %v699
        %v1884 = vunpack.c.h.b16 %v699
        %v1885 = vunpack.c.l.b16 %v700
        %v1886 = vunpack.c.h.b16 %v700
        %v1887 = vunpack.c.l.b16 %v701
        %v1888 = vunpack.c.h.b16 %v701
        %v1889 = vunpack.c.l.b16 %v702
        %v1890 = vunpack.c.h.b16 %v702
        %v1891 = vunpack.c.l.b16 %v703
        %v1892 = vunpack.c.h.b16 %v703
        %v1893 = vunpack.c.l.b16 %v704
        %v1894 = vunpack.c.h.b16 %v704
        %v1895 = vunpack.c.l.b16 %v705
        %v1896 = vunpack.c.h.b16 %v705
        %v1897 = vunpack.c.l.b16 %v706
        %v1898 = vunpack.c.h.b16 %v706
        %v1899 = vunpack.c.l.b16 %v707
        %v1900 = vunpack.c.h.b16 %v707
        %v1901 = vunpack.c.l.b16 %v708
        %v1902 = vunpack.c.h.b16 %v708
        %v1903 = vunpack.c.l.b16 %v709
        %v1904 = vunpack.c.h.b16 %v709
        %v1905 = vunpack.c.l.b16 %v710
        %v1906 = vunpack.c.h.b16 %v710
        %v1907 = vunpack.c.l.b16 %v711
        %v1908 = vunpack.c.h.b16 %v711
        %v1909 = vunpack.c.l.b16 %v712
        %v1910 = vunpack.c.h.b16 %v712
        %v1911 = vunpack.c.l.b16 %v713
        %v1912 = vunpack.c.h.b16 %v713
        %v1913 = vunpack.c.l.b16 %v714
        %v1914 = vunpack.c.h.b16 %v714
        %v1915 = vunpack.c.l.b16 %v715
        %v1916 = vunpack.c.h.b16 %v715
        %v1917 = vunpack.c.l.b16 %v716
        %v1918 = vunpack.c.h.b16 %v716
        %v1919 = vunpack.c.l.b16 %v717
        %v1920 = vunpack.c.h.b16 %v717
        %v1921 = vunpack.c.l.b16 %v718
        %v1922 = vunpack.c.h.b16 %v718
        %v1923 = vunpack.c.l.b16 %v719
        %v1924 = vunpack.c.h.b16 %v719
        %v1925 = vunpack.c.l.b16 %v720
        %v1926 = vunpack.c.h.b16 %v720
        %v1927 = vunpack.c.l.b16 %v721
        %v1928 = vunpack.c.h.b16 %v721
        %v1929 = vunpack.c.l.b16 %v722
        %v1930 = vunpack.c.h.b16 %v722
        %v1931 = vunpack.c.l.b16 %v723
        %v1932 = vunpack.c.h.b16 %v723
        %v1933 = vunpack.c.l.b16 %v724
        %v1934 = vunpack.c.h.b16 %v724
        %v1935 = vunpack.c.l.b16 %v725
        %v1936 = vunpack.c.h.b16 %v725
        %v1937 = vunpack.c.l.b16 %v726
        %v1938 = vunpack.c.h.b16 %v726
        %v1939 = vunpack.c.l.b16 %v727
        %v1940 = vunpack.c.h.b16 %v727
        %v1941 = vunpack.c.l.b16 %v728
        %v1942 = vunpack.c.h.b16 %v728
        %v1943 = vunpack.c.l.b16 %v729
        %v1944 = vunpack.c.h.b16 %v729
        %v1945 = vunpack.c.l.b16 %v730
        %v1946 = vunpack.c.h.b16 %v730
        %v1947 = vunpack.c.l.b16 %v731
        %v1948 = vunpack.c.h.b16 %v731
        %v1949 = vunpack.c.l.b16 %v732
        %v1950 = vunpack.c.h.b16 %v732
        %v1951 = vunpack.c.l.b16 %v733
        %v1952 = vunpack.c.h.b16 %v733
        %v1953 = vunpack.c.l.b16 %v734
        %v1954 = vunpack.c.h.b16 %v734
        %v1955 = vunpack.c.l.b16 %v735
        %v1956 = vunpack.c.h.b16 %v735
        %v1957 = vunpack.c.l.b16 %v736
        %v1958 = vunpack.c.h.b16 %v736
        %v1959 = vunpack.c.l.b16 %v737
        %v1960 = vunpack.c.h.b16 %v737
        %v1961 = vunpack.c.l.b16 %v738
        %v1962 = vunpack.c.h.b16 %v738
        %v1963 = vunpack.c.l.b16 %v739
        %v1964 = vunpack.c.h.b16 %v739
        %v1965 = vunpack.c.l.b16 %v740
        %v1966 = vunpack.c.h.b16 %v740
        %v1967 = vunpack.c.l.b16 %v741
        %v1968 = vunpack.c.h.b16 %v741
        %v1969 = vunpack.c.l.b16 %v742
        %v1970 = vunpack.c.h.b16 %v742
        %v1971 = vunpack.c.l.b16 %v743
        %v1972 = vunpack.c.h.b16 %v743
        %v1973 = vunpack.c.l.b16 %v744
        %v1974 = vunpack.c.h.b16 %v744
        %v1975 = vunpack.c.l.b16 %v745
        %v1976 = vunpack.c.h.b16 %v745
        %v1977 = vunpack.c.l.b16 %v746
        %v1978 = vunpack.c.h.b16 %v746
        %v1979 = vunpack.c.l.b16 %v747
        %v1980 = vunpack.c.h.b16 %v747
        %v1981 = vunpack.c.l.b16 %v748
        %v1982 = vunpack.c.h.b16 %v748
        %v1983 = vunpack.c.l.b16 %v749
        %v1984 = vunpack.c.h.b16 %v749
        %v1985 = vunpack.c.l.b16 %v750
        %v1986 = vunpack.c.h.b16 %v750
        %v1987 = vunpack.c.l.b16 %v751
        %v1988 = vunpack.c.h.b16 %v751
        %v1989 = vunpack.c.l.b16 %v752
        %v1990 = vunpack.c.h.b16 %v752
        %v1991 = vunpack.c.l.b16 %v753
        %v1992 = vunpack.c.h.b16 %v753
        %v1993 = vunpack.c.l.b16 %v754
        %v1994 = vunpack.c.h.b16 %v754
        %v1995 = vunpack.c.l.b16 %v755
        %v1996 = vunpack.c.h.b16 %v755
        %v1997 = vunpack.c.l.b16 %v756
        %v1998 = vunpack.c.h.b16 %v756
        %v1999 = vunpack.c.l.b16 %v757
        %v2000 = vunpack.c.h.b16 %v757
        %v2001 = vunpack.c.l.b16 %v758
        %v2002 = vunpack.c.h.b16 %v758
        %v2003 = vunpack.c.l.b16 %v759
        %v2004 = vunpack.c.h.b16 %v759
        %v2005 = vunpack.c.l.b16 %v760
        %v2006 = vunpack.c.h.b16 %v760
        %v2007 = vunpack.c.l.b16 %v761
        %v2008 = vunpack.c.h.b16 %v761
        %v2009 = vunpack.c.l.b16 %v762
        %v2010 = vunpack.c.h.b16 %v762
        %v2011 = vunpack.c.l.b16 %v763
        %v2012 = vunpack.c.h.b16 %v763
        %v2013 = vunpack.c.l.b16 %v764
        %v2014 = vunpack.c.h.b16 %v764
        %v2015 = vunpack.c.l.b16 %v765
        %v2016 = vunpack.c.h.b16 %v765
        %v2017 = vunpack.c.l.b16 %v766
        %v2018 = vunpack.c.h.b16 %v766
        %v2019 = vunpack.c.l.b16 %v767
        %v2020 = vunpack.c.h.b16 %v767
        %v2021 = vunpack.c.l.b16 %v768
        %v2022 = vunpack.c.h.b16 %v768
        %v2023 = vunpack.c.l.b16 %v769
        %v2024 = vunpack.c.h.b16 %v769
        %v2025 = vunpack.c.l.b16 %v770
        %v2026 = vunpack.c.h.b16 %v770
        %v2027 = vunpack.c.l.b16 %v771
        %v2028 = vunpack.c.h.b16 %v771
        %v2029 = vunpack.c.l.b16 %v772
        %v2030 = vunpack.c.h.b16 %v772
        %v2031 = vunpack.c.l.b16 %v773
        %v2032 = vunpack.c.h.b16 %v773
        %v2033 = vunpack.c.l.b16 %v774
        %v2034 = vunpack.c.h.b16 %v774
        %v2035 = vunpack.c.l.b16 %v775
        %v2036 = vunpack.c.h.b16 %v775
        %v2037 = vunpack.c.l.b16 %v776
        %v2038 = vunpack.c.h.b16 %v776
        %v2039 = vunpack.c.l.b16 %v777
        %v2040 = vunpack.c.h.b16 %v777
        %v2041 = vunpack.c.l.b16 %v778
        %v2042 = vunpack.c.h.b16 %v778
        %v2043 = vunpack.c.l.b16 %v779
        %v2044 = vunpack.c.h.b16 %v779
        %v2045 = vunpack.c.l.b16 %v780
        %v2046 = vunpack.c.h.b16 %v780
        %v2047 = vunpack.c.l.b16 %v781
        %v2048 = vunpack.c.h.b16 %v781
        %v2049 = vunpack.c.l.b16 %v782
        %v2050 = vunpack.c.h.b16 %v782
        %v2051 = vunpack.c.l.b16 %v783
        %v2052 = vunpack.c.h.b16 %v783
        %v2053 = vunpack.c.l.b16 %v784
        %v2054 = vunpack.c.h.b16 %v784
        %v2055 = vunpack.c.l.b16 %v785
        %v2056 = vunpack.c.h.b16 %v785
        %v2057 = vunpack.c.l.b16 %v786
        %v2058 = vunpack.c.h.b16 %v786
        %v2059 = vunpack.c.l.b16 %v787
        %v2060 = vunpack.c.h.b16 %v787
        %v2061 = vunpack.c.l.b16 %v788
        %v2062 = vunpack.c.h.b16 %v788
        %v2063 = vunpack.c.l.b16 %v789
        %v2064 = vunpack.c.h.b16 %v789
        %v2065 = vunpack.c.l.b16 %v790
        %v2066 = vunpack.c.h.b16 %v790
        %v2067 = vunpack.c.l.b16 %v791
        %v2068 = vunpack.c.h.b16 %v791
        %v2069 = vunpack.c.l.b16 %v792
        %v2070 = vunpack.c.h.b16 %v792
        %v2071 = vunpack.c.l.b16 %v793
        %v2072 = vunpack.c.h.b16 %v793
        %v2073 = vunpack.c.l.b16 %v794
        %v2074 = vunpack.c.h.b16 %v794
        %v2075 = vunpack.c.l.b16 %v795
        %v2076 = vunpack.c.h.b16 %v795
        %v2077 = vunpack.c.l.b16 %v796
        %v2078 = vunpack.c.h.b16 %v796
        %v2079 = vunpack.c.l.b16 %v797
        %v2080 = vunpack.c.h.b16 %v797
        %v2081 = vunpack.c.l.b16 %v798
        %v2082 = vunpack.c.h.b16 %v798
        %v2083 = vunpack.c.l.b16 %v799
        %v2084 = vunpack.c.h.b16 %v799
        %v2085 = vunpack.c.l.b16 %v800
        %v2086 = vunpack.c.h.b16 %v800
        %v2087 = vunpack.c.l.b16 %v801
        %v2088 = vunpack.c.h.b16 %v801
        %v2089 = vunpack.c.l.b16 %v802
        %v2090 = vunpack.c.h.b16 %v802
        %v2091 = vunpack.c.l.b16 %v803
        %v2092 = vunpack.c.h.b16 %v803
        %v2093 = vunpack.c.l.b16 %v804
        %v2094 = vunpack.c.h.b16 %v804
        %v2095 = vunpack.c.l.b16 %v805
        %v2096 = vunpack.c.h.b16 %v805
        %v2097 = vunpack.c.l.b16 %v806
        %v2098 = vunpack.c.h.b16 %v806
        %v2099 = vunpack.c.l.b16 %v807
        %v2100 = vunpack.c.h.b16 %v807
        %v2101 = vunpack.c.l.b16 %v808
        %v2102 = vunpack.c.h.b16 %v808
        %v2103 = vunpack.c.l.b16 %v809
        %v2104 = vunpack.c.h.b16 %v809
        %v2105 = vunpack.c.l.b16 %v810
        %v2106 = vunpack.c.h.b16 %v810
        %v2107 = vunpack.c.l.b16 %v811
        %v2108 = vunpack.c.h.b16 %v811
        %v2109 = vunpack.c.l.b16 %v812
        %v2110 = vunpack.c.h.b16 %v812
        %v2111 = vunpack.c.l.b16 %v813
        %v2112 = vunpack.c.h.b16 %v813
        %v2113 = vunpack.c.l.b16 %v814
        %v2114 = vunpack.c.h.b16 %v814
        %v2115 = vunpack.c.l.b16 %v815
        %v2116 = vunpack.c.h.b16 %v815
        %v2117 = vunpack.c.l.b16 %v816
        %v2118 = vunpack.c.h.b16 %v816
        %v2119 = vunpack.c.l.b16 %v817
        %v2120 = vunpack.c.h.b16 %v817
        %v2121 = vunpack.c.l.b16 %v818
        %v2122 = vunpack.c.h.b16 %v818
        %v2123 = vunpack.c.l.b16 %v819
        %v2124 = vunpack.c.h.b16 %v819
        %v2125 = vpack.c.b16 %v1365, %v1357
        %v2126 = vpack.c.b16 %v1366, %v1358
        %v2127 = vpack.c.b16 %v1367, %v1359
        %v2128 = vpack.c.b16 %v1368, %v1360
        %v2129 = vpack.c.b16 %v1369, %v1361
        %v2130 = vpack.c.b16 %v1370, %v1362
        %v2131 = vpack.c.b16 %v1371, %v1363
        %v2132 = vpack.c.b16 %v1372, %v1364
        %v2133 = vpack.c.b16 %v1381, %v1373
        %v2134 = vpack.c.b16 %v1382, %v1374
        %v2135 = vpack.c.b16 %v1383, %v1375
        %v2136 = vpack.c.b16 %v1384, %v1376
        %v2137 = vpack.c.b16 %v1385, %v1377
        %v2138 = vpack.c.b16 %v1386, %v1378
        %v2139 = vpack.c.b16 %v1387, %v1379
        %v2140 = vpack.c.b16 %v1388, %v1380
        %v2141 = vpack.c.b16 %v1397, %v1389
        %v2142 = vpack.c.b16 %v1398, %v1390
        %v2143 = vpack.c.b16 %v1399, %v1391
        %v2144 = vpack.c.b16 %v1400, %v1392
        %v2145 = vpack.c.b16 %v1401, %v1393
        %v2146 = vpack.c.b16 %v1402, %v1394
        %v2147 = vpack.c.b16 %v1403, %v1395
        %v2148 = vpack.c.b16 %v1404, %v1396
        %v2149 = vpack.c.b16 %v1413, %v1405
        %v2150 = vpack.c.b16 %v1414, %v1406
        %v2151 = vpack.c.b16 %v1415, %v1407
        %v2152 = vpack.c.b16 %v1416, %v1408
        %v2153 = vpack.c.b16 %v1417, %v1409
        %v2154 = vpack.c.b16 %v1418, %v1410
        %v2155 = vpack.c.b16 %v1419, %v1411
        %v2156 = vpack.c.b16 %v1420, %v1412
        %v2157 = vpack.c.b16 %v1429, %v1421
        %v2158 = vpack.c.b16 %v1430, %v1422
        %v2159 = vpack.c.b16 %v1431, %v1423
        %v2160 = vpack.c.b16 %v1432, %v1424
        %v2161 = vpack.c.b16 %v1433, %v1425
        %v2162 = vpack.c.b16 %v1434, %v1426
        %v2163 = vpack.c.b16 %v1435, %v1427
        %v2164 = vpack.c.b16 %v1436, %v1428
        %v2165 = vpack.c.b16 %v1445, %v1437
        %v2166 = vpack.c.b16 %v1446, %v1438
        %v2167 = vpack.c.b16 %v1447, %v1439
        %v2168 = vpack.c.b16 %v1448, %v1440
        %v2169 = vpack.c.b16 %v1449, %v1441
        %v2170 = vpack.c.b16 %v1450, %v1442
        %v2171 = vpack.c.b16 %v1451, %v1443
        %v2172 = vpack.c.b16 %v1452, %v1444
        %v2173 = vpack.c.b16 %v1461, %v1453
        %v2174 = vpack.c.b16 %v1462, %v1454
        %v2175 = vpack.c.b16 %v1463, %v1455
        %v2176 = vpack.c.b16 %v1464, %v1456
        %v2177 = vpack.c.b16 %v1465, %v1457
        %v2178 = vpack.c.b16 %v1466, %v1458
        %v2179 = vpack.c.b16 %v1467, %v1459
        %v2180 = vpack.c.b16 %v1468, %v1460
        %v2181 = vpack.c.b16 %v1477, %v1469
        %v2182 = vpack.c.b16 %v1478, %v1470
        %v2183 = vpack.c.b16 %v1479, %v1471
        %v2184 = vpack.c.b16 %v1480, %v1472
        %v2185 = vpack.c.b16 %v1481, %v1473
        %v2186 = vpack.c.b16 %v1482, %v1474
        %v2187 = vpack.c.b16 %v1483, %v1475
        %v2188 = vpack.c.b16 %v1484, %v1476
        %v2189 = vpack.c.b16 %v1493, %v1485
        %v2190 = vpack.c.b16 %v1494, %v1486
        %v2191 = vpack.c.b16 %v1495, %v1487
        %v2192 = vpack.c.b16 %v1496, %v1488
        %v2193 = vpack.c.b16 %v1497, %v1489
        %v2194 = vpack.c.b16 %v1498, %v1490
        %v2195 = vpack.c.b16 %v1499, %v1491
        %v2196 = vpack.c.b16 %v1500, %v1492
        %v2197 = vpack.c.b16 %v1509, %v1501
        %v2198 = vpack.c.b16 %v1510, %v1502
        %v2199 = vpack.c.b16 %v1511, %v1503
        %v2200 = vpack.c.b16 %v1512, %v1504
        %v2201 = vpack.c.b16 %v1513, %v1505
        %v2202 = vpack.c.b16 %v1514, %v1506
        %v2203 = vpack.c.b16 %v1515, %v1507
        %v2204 = vpack.c.b16 %v1516, %v1508
        %v2205 = vpack.c.b16 %v1525, %v1517
        %v2206 = vpack.c.b16 %v1526, %v1518
        %v2207 = vpack.c.b16 %v1527, %v1519
        %v2208 = vpack.c.b16 %v1528, %v1520
        %v2209 = vpack.c.b16 %v1529, %v1521
        %v2210 = vpack.c.b16 %v1530, %v1522
        %v2211 = vpack.c.b16 %v1531, %v1523
        %v2212 = vpack.c.b16 %v1532, %v1524
        %v2213 = vpack.c.b16 %v1541, %v1533
        %v2214 = vpack.c.b16 %v1542, %v1534
        %v2215 = vpack.c.b16 %v1543, %v1535
        %v2216 = vpack.c.b16 %v1544, %v1536
        %v2217 = vpack.c.b16 %v1545, %v1537
        %v2218 = vpack.c.b16 %v1546, %v1538
        %v2219 = vpack.c.b16 %v1547, %v1539
        %v2220 = vpack.c.b16 %v1548, %v1540
        %v2221 = vpack.c.b16 %v1557, %v1549
        %v2222 = vpack.c.b16 %v1558, %v1550
        %v2223 = vpack.c.b16 %v1559, %v1551
        %v2224 = vpack.c.b16 %v1560, %v1552
        %v2225 = vpack.c.b16 %v1561, %v1553
        %v2226 = vpack.c.b16 %v1562, %v1554
        %v2227 = vpack.c.b16 %v1563, %v1555
        %v2228 = vpack.c.b16 %v1564, %v1556
        %v2229 = vpack.c.b16 %v1573, %v1565
        %v2230 = vpack.c.b16 %v1574, %v1566
        %v2231 = vpack.c.b16 %v1575, %v1567
        %v2232 = vpack.c.b16 %v1576, %v1568
        %v2233 = vpack.c.b16 %v1577, %v1569
        %v2234 = vpack.c.b16 %v1578, %v1570
        %v2235 = vpack.c.b16 %v1579, %v1571
        %v2236 = vpack.c.b16 %v1580, %v1572
        %v2237 = vpack.c.b16 %v1589, %v1581
        %v2238 = vpack.c.b16 %v1590, %v1582
        %v2239 = vpack.c.b16 %v1591, %v1583
        %v2240 = vpack.c.b16 %v1592, %v1584
        %v2241 = vpack.c.b16 %v1593, %v1585
        %v2242 = vpack.c.b16 %v1594, %v1586
        %v2243 = vpack.c.b16 %v1595, %v1587
        %v2244 = vpack.c.b16 %v1596, %v1588
        %v2245 = vpack.c.b16 %v1605, %v1597
        %v2246 = vpack.c.b16 %v1606, %v1598
        %v2247 = vpack.c.b16 %v1607, %v1599
        %v2248 = vpack.c.b16 %v1608, %v1600
        %v2249 = vpack.c.b16 %v1609, %v1601
        %v2250 = vpack.c.b16 %v1610, %v1602
        %v2251 = vpack.c.b16 %v1611, %v1603
        %v2252 = vpack.c.b16 %v1612, %v1604
        %v2253 = vpack.c.b16 %v1621, %v1613
        %v2254 = vpack.c.b16 %v1622, %v1614
        %v2255 = vpack.c.b16 %v1623, %v1615
        %v2256 = vpack.c.b16 %v1624, %v1616
        %v2257 = vpack.c.b16 %v1625, %v1617
        %v2258 = vpack.c.b16 %v1626, %v1618
        %v2259 = vpack.c.b16 %v1627, %v1619
        %v2260 = vpack.c.b16 %v1628, %v1620
        %v2261 = vpack.c.b16 %v1637, %v1629
        %v2262 = vpack.c.b16 %v1638, %v1630
        %v2263 = vpack.c.b16 %v1639, %v1631
        %v2264 = vpack.c.b16 %v1640, %v1632
        %v2265 = vpack.c.b16 %v1641, %v1633
        %v2266 = vpack.c.b16 %v1642, %v1634
        %v2267 = vpack.c.b16 %v1643, %v1635
        %v2268 = vpack.c.b16 %v1644, %v1636
        %v2269 = vpack.c.b16 %v1653, %v1645
        %v2270 = vpack.c.b16 %v1654, %v1646
        %v2271 = vpack.c.b16 %v1655, %v1647
        %v2272 = vpack.c.b16 %v1656, %v1648
        %v2273 = vpack.c.b16 %v1657, %v1649
        %v2274 = vpack.c.b16 %v1658, %v1650
        %v2275 = vpack.c.b16 %v1659, %v1651
        %v2276 = vpack.c.b16 %v1660, %v1652
        %v2277 = vpack.c.b16 %v1669, %v1661
        %v2278 = vpack.c.b16 %v1670, %v1662
        %v2279 = vpack.c.b16 %v1671, %v1663
        %v2280 = vpack.c.b16 %v1672, %v1664
        %v2281 = vpack.c.b16 %v1673, %v1665
        %v2282 = vpack.c.b16 %v1674, %v1666
        %v2283 = vpack.c.b16 %v1675, %v1667
        %v2284 = vpack.c.b16 %v1676, %v1668
        %v2285 = vpack.c.b16 %v1685, %v1677
        %v2286 = vpack.c.b16 %v1686, %v1678
        %v2287 = vpack.c.b16 %v1687, %v1679
        %v2288 = vpack.c.b16 %v1688, %v1680
        %v2289 = vpack.c.b16 %v1689, %v1681
        %v2290 = vpack.c.b16 %v1690, %v1682
        %v2291 = vpack.c.b16 %v1691, %v1683
        %v2292 = vpack.c.b16 %v1692, %v1684
        %v2293 = vpack.c.b16 %v1701, %v1693
        %v2294 = vpack.c.b16 %v1702, %v1694
        %v2295 = vpack.c.b16 %v1703, %v1695
        %v2296 = vpack.c.b16 %v1704, %v1696
        %v2297 = vpack.c.b16 %v1705, %v1697
        %v2298 = vpack.c.b16 %v1706, %v1698
        %v2299 = vpack.c.b16 %v1707, %v1699
        %v2300 = vpack.c.b16 %v1708, %v1700
        %v2301 = vpack.c.b16 %v1717, %v1709
        %v2302 = vpack.c.b16 %v1718, %v1710
        %v2303 = vpack.c.b16 %v1719, %v1711
        %v2304 = vpack.c.b16 %v1720, %v1712
        %v2305 = vpack.c.b16 %v1721, %v1713
        %v2306 = vpack.c.b16 %v1722, %v1714
        %v2307 = vpack.c.b16 %v1723, %v1715
        %v2308 = vpack.c.b16 %v1724, %v1716
        %v2309 = vpack.c.b16 %v1733, %v1725
        %v2310 = vpack.c.b16 %v1734, %v1726
        %v2311 = vpack.c.b16 %v1735, %v1727
        %v2312 = vpack.c.b16 %v1736, %v1728
        %v2313 = vpack.c.b16 %v1737, %v1729
        %v2314 = vpack.c.b16 %v1738, %v1730
        %v2315 = vpack.c.b16 %v1739, %v1731
        %v2316 = vpack.c.b16 %v1740, %v1732
        %v2317 = vpack.c.b16 %v1749, %v1741
        %v2318 = vpack.c.b16 %v1750, %v1742
        %v2319 = vpack.c.b16 %v1751, %v1743
        %v2320 = vpack.c.b16 %v1752, %v1744
        %v2321 = vpack.c.b16 %v1753, %v1745
        %v2322 = vpack.c.b16 %v1754, %v1746
        %v2323 = vpack.c.b16 %v1755, %v1747
        %v2324 = vpack.c.b16 %v1756, %v1748
        %v2325 = vpack.c.b16 %v1765, %v1757
        %v2326 = vpack.c.b16 %v1766, %v1758
        %v2327 = vpack.c.b16 %v1767, %v1759
        %v2328 = vpack.c.b16 %v1768, %v1760
        %v2329 = vpack.c.b16 %v1769, %v1761
        %v2330 = vpack.c.b16 %v1770, %v1762
        %v2331 = vpack.c.b16 %v1771, %v1763
        %v2332 = vpack.c.b16 %v1772, %v1764
        %v2333 = vpack.c.b16 %v1781, %v1773
        %v2334 = vpack.c.b16 %v1782, %v1774
        %v2335 = vpack.c.b16 %v1783, %v1775
        %v2336 = vpack.c.b16 %v1784, %v1776
        %v2337 = vpack.c.b16 %v1785, %v1777
        %v2338 = vpack.c.b16 %v1786, %v1778
        %v2339 = vpack.c.b16 %v1787, %v1779
        %v2340 = vpack.c.b16 %v1788, %v1780
        %v2341 = vpack.c.b16 %v1797, %v1789
        %v2342 = vpack.c.b16 %v1798, %v1790
        %v2343 = vpack.c.b16 %v1799, %v1791
        %v2344 = vpack.c.b16 %v1800, %v1792
        %v2345 = vpack.c.b16 %v1801, %v1793
        %v2346 = vpack.c.b16 %v1802, %v1794
        %v2347 = vpack.c.b16 %v1803, %v1795
        %v2348 = vpack.c.b16 %v1804, %v1796
        %v2349 = vpack.c.b16 %v1813, %v1805
        %v2350 = vpack.c.b16 %v1814, %v1806
        %v2351 = vpack.c.b16 %v1815, %v1807
        %v2352 = vpack.c.b16 %v1816, %v1808
        %v2353 = vpack.c.b16 %v1817, %v1809
        %v2354 = vpack.c.b16 %v1818, %v1810
        %v2355 = vpack.c.b16 %v1819, %v1811
        %v2356 = vpack.c.b16 %v1820, %v1812
        %v2357 = vpack.c.b16 %v1829, %v1821
        %v2358 = vpack.c.b16 %v1830, %v1822
        %v2359 = vpack.c.b16 %v1831, %v1823
        %v2360 = vpack.c.b16 %v1832, %v1824
        %v2361 = vpack.c.b16 %v1833, %v1825
        %v2362 = vpack.c.b16 %v1834, %v1826
        %v2363 = vpack.c.b16 %v1835, %v1827
        %v2364 = vpack.c.b16 %v1836, %v1828
        %v2365 = vpack.c.b16 %v1845, %v1837
        %v2366 = vpack.c.b16 %v1846, %v1838
        %v2367 = vpack.c.b16 %v1847, %v1839
        %v2368 = vpack.c.b16 %v1848, %v1840
        %v2369 = vpack.c.b16 %v1849, %v1841
        %v2370 = vpack.c.b16 %v1850, %v1842
        %v2371 = vpack.c.b16 %v1851, %v1843
        %v2372 = vpack.c.b16 %v1852, %v1844
        %v2373 = vpack.c.b16 %v1861, %v1853
        %v2374 = vpack.c.b16 %v1862, %v1854
        %v2375 = vpack.c.b16 %v1863, %v1855
        %v2376 = vpack.c.b16 %v1864, %v1856
        %v2377 = vpack.c.b16 %v1865, %v1857
        %v2378 = vpack.c.b16 %v1866, %v1858
        %v2379 = vpack.c.b16 %v1867, %v1859
        %v2380 = vpack.c.b16 %v1868, %v1860
        %v2381 = vpack.c.b16 %v1877, %v1869
        %v2382 = vpack.c.b16 %v1878, %v1870
        %v2383 = vpack.c.b16 %v1879, %v1871
        %v2384 = vpack.c.b16 %v1880, %v1872
        %v2385 = vpack.c.b16 %v1881, %v1873
        %v2386 = vpack.c.b16 %v1882, %v1874
        %v2387 = vpack.c.b16 %v1883, %v1875
        %v2388 = vpack.c.b16 %v1884, %v1876
        %v2389 = vpack.c.b16 %v1893, %v1885
        %v2390 = vpack.c.b16 %v1894, %v1886
        %v2391 = vpack.c.b16 %v1895, %v1887
        %v2392 = vpack.c.b16 %v1896, %v1888
        %v2393 = vpack.c.b16 %v1897, %v1889
        %v2394 = vpack.c.b16 %v1898, %v1890
        %v2395 = vpack.c.b16 %v1899, %v1891
        %v2396 = vpack.c.b16 %v1900, %v1892
        %v2397 = vpack.c.b16 %v1909, %v1901
        %v2398 = vpack.c.b16 %v1910, %v1902
        %v2399 = vpack.c.b16 %v1911, %v1903
        %v2400 = vpack.c.b16 %v1912, %v1904
        %v2401 = vpack.c.b16 %v1913, %v1905
        %v2402 = vpack.c.b16 %v1914, %v1906
        %v2403 = vpack.c.b16 %v1915, %v1907
        %v2404 = vpack.c.b16 %v1916, %v1908
        %v2405 = vpack.c.b16 %v1925, %v1917
        %v2406 = vpack.c.b16 %v1926, %v1918
        %v2407 = vpack.c.b16 %v1927, %v1919
        %v2408 = vpack.c.b16 %v1928, %v1920
        %v2409 = vpack.c.b16 %v1929, %v1921
        %v2410 = vpack.c.b16 %v1930, %v1922
        %v2411 = vpack.c.b16 %v1931, %v1923
        %v2412 = vpack.c.b16 %v1932, %v1924
        %v2413 = vpack.c.b16 %v1941, %v1933
        %v2414 = vpack.c.b16 %v1942, %v1934
        %v2415 = vpack.c.b16 %v1943, %v1935
        %v2416 = vpack.c.b16 %v1944, %v1936
        %v2417 = vpack.c.b16 %v1945, %v1937
        %v2418 = vpack.c.b16 %v1946, %v1938
        %v2419 = vpack.c.b16 %v1947, %v1939
        %v2420 = vpack.c.b16 %v1948, %v1940
        %v2421 = vpack.c.b16 %v1957, %v1949
        %v2422 = vpack.c.b16 %v1958, %v1950
        %v2423 = vpack.c.b16 %v1959, %v1951
        %v2424 = vpack.c.b16 %v1960, %v1952
        %v2425 = vpack.c.b16 %v1961, %v1953
        %v2426 = vpack.c.b16 %v1962, %v1954
        %v2427 = vpack.c.b16 %v1963, %v1955
        %v2428 = vpack.c.b16 %v1964, %v1956
        %v2429 = vpack.c.b16 %v1973, %v1965
        %v2430 = vpack.c.b16 %v1974, %v1966
        %v2431 = vpack.c.b16 %v1975, %v1967
        %v2432 = vpack.c.b16 %v1976, %v1968
        %v2433 = vpack.c.b16 %v1977, %v1969
        %v2434 = vpack.c.b16 %v1978, %v1970
        %v2435 = vpack.c.b16 %v1979, %v1971
        %v2436 = vpack.c.b16 %v1980, %v1972
        %v2437 = vpack.c.b16 %v1989, %v1981
        %v2438 = vpack.c.b16 %v1990, %v1982
        %v2439 = vpack.c.b16 %v1991, %v1983
        %v2440 = vpack.c.b16 %v1992, %v1984
        %v2441 = vpack.c.b16 %v1993, %v1985
        %v2442 = vpack.c.b16 %v1994, %v1986
        %v2443 = vpack.c.b16 %v1995, %v1987
        %v2444 = vpack.c.b16 %v1996, %v1988
        %v2445 = vpack.c.b16 %v2005, %v1997
        %v2446 = vpack.c.b16 %v2006, %v1998
        %v2447 = vpack.c.b16 %v2007, %v1999
        %v2448 = vpack.c.b16 %v2008, %v2000
        %v2449 = vpack.c.b16 %v2009, %v2001
        %v2450 = vpack.c.b16 %v2010, %v2002
        %v2451 = vpack.c.b16 %v2011, %v2003
        %v2452 = vpack.c.b16 %v2012, %v2004
        %v2453 = vpack.c.b16 %v2021, %v2013
        %v2454 = vpack.c.b16 %v2022, %v2014
        %v2455 = vpack.c.b16 %v2023, %v2015
        %v2456 = vpack.c.b16 %v2024, %v2016
        %v2457 = vpack.c.b16 %v2025, %v2017
        %v2458 = vpack.c.b16 %v2026, %v2018
        %v2459 = vpack.c.b16 %v2027, %v2019
        %v2460 = vpack.c.b16 %v2028, %v2020
        %v2461 = vpack.c.b16 %v2037, %v2029
        %v2462 = vpack.c.b16 %v2038, %v2030
        %v2463 = vpack.c.b16 %v2039, %v2031
        %v2464 = vpack.c.b16 %v2040, %v2032
        %v2465 = vpack.c.b16 %v2041, %v2033
        %v2466 = vpack.c.b16 %v2042, %v2034
        %v2467 = vpack.c.b16 %v2043, %v2035
        %v2468 = vpack.c.b16 %v2044, %v2036
        %v2469 = vpack.c.b16 %v2053, %v2045
        %v2470 = vpack.c.b16 %v2054, %v2046
        %v2471 = vpack.c.b16 %v2055, %v2047
        %v2472 = vpack.c.b16 %v2056, %v2048
        %v2473 = vpack.c.b16 %v2057, %v2049
        %v2474 = vpack.c.b16 %v2058, %v2050
        %v2475 = vpack.c.b16 %v2059, %v2051
        %v2476 = vpack.c.b16 %v2060, %v2052
        %v2477 = vpack.c.b16 %v2069, %v2061
        %v2478 = vpack.c.b16 %v2070, %v2062
        %v2479 = vpack.c.b16 %v2071, %v2063
        %v2480 = vpack.c.b16 %v2072, %v2064
        %v2481 = vpack.c.b16 %v2073, %v2065
        %v2482 = vpack.c.b16 %v2074, %v2066
        %v2483 = vpack.c.b16 %v2075, %v2067
        %v2484 = vpack.c.b16 %v2076, %v2068
        %v2485 = vpack.c.b16 %v2085, %v2077
        %v2486 = vpack.c.b16 %v2086, %v2078
        %v2487 = vpack.c.b16 %v2087, %v2079
        %v2488 = vpack.c.b16 %v2088, %v2080
        %v2489 = vpack.c.b16 %v2089, %v2081
        %v2490 = vpack.c.b16 %v2090, %v2082
        %v2491 = vpack.c.b16 %v2091, %v2083
        %v2492 = vpack.c.b16 %v2092, %v2084
        %v2493 = vpack.c.b16 %v2101, %v2093
        %v2494 = vpack.c.b16 %v2102, %v2094
        %v2495 = vpack.c.b16 %v2103, %v2095
        %v2496 = vpack.c.b16 %v2104, %v2096
        %v2497 = vpack.c.b16 %v2105, %v2097
        %v2498 = vpack.c.b16 %v2106, %v2098
        %v2499 = vpack.c.b16 %v2107, %v2099
        %v2500 = vpack.c.b16 %v2108, %v2100
        %v2501 = vpack.c.b16 %v2117, %v2109
        %v2502 = vpack.c.b16 %v2118, %v2110
        %v2503 = vpack.c.b16 %v2119, %v2111
        %v2504 = vpack.c.b16 %v2120, %v2112
        %v2505 = vpack.c.b16 %v2121, %v2113
        %v2506 = vpack.c.b16 %v2122, %v2114
        %v2507 = vpack.c.b16 %v2123, %v2115
        %v2508 = vpack.c.b16 %v2124, %v2116
        %2893 = vmatprep.subr.bf16.mxu0 %v2182
        %2894 = vmatpush1.bf16.msra.mxu0 %v2181
        %2895 = vmatprep.subr.bf16.mxu0 %v2174
        %2896 = vmatpush1.bf16.msra.mxu0 %v2173
        %2897 = vmatprep.subr.bf16.mxu0 %v2166
        %2898 = vmatpush1.bf16.msra.mxu0 %v2165
        %2899 = vmatprep.subr.bf16.mxu0 %v2158
        %2900 = vmatpush1.bf16.msra.mxu0 %v2157
        %2901 = vmatprep.subr.bf16.mxu0 %v2150
        %2902 = vmatpush1.bf16.msra.mxu0 %v2149
        %2903 = vmatprep.subr.bf16.mxu0 %v2142
        %2904 = vmatpush1.bf16.msra.mxu0 %v2141
        %2905 = vmatprep.subr.bf16.mxu0 %v2134
        %2906 = vmatpush1.bf16.msra.mxu0 %v2133
        %2907 = vmatprep.subr.bf16.mxu0 %v2126
        %2908 = vmatpush1.bf16.msra.mxu0 %v2125
        %2909 = vmatprep.subr.bf16.mxu0 %v2246
        %2910 = vmatpush2.bf16.msra.mxu0 %v2245
        %2911 = vmatprep.subr.bf16.mxu0 %v2238
        %2912 = vmatpush2.bf16.msra.mxu0 %v2237
        %2913 = vmatprep.subr.bf16.mxu0 %v2230
        %2914 = vmatpush2.bf16.msra.mxu0 %v2229
        %2915 = vmatprep.subr.bf16.mxu0 %v2222
        %2916 = vmatpush2.bf16.msra.mxu0 %v2221
        %2917 = vmatprep.subr.bf16.mxu0 %v2214
        %2918 = vmatpush2.bf16.msra.mxu0 %v2213
        %2919 = vmatprep.subr.bf16.mxu0 %v2206
        %2920 = vmatpush2.bf16.msra.mxu0 %v2205
        %2921 = vmatprep.subr.bf16.mxu0 %v2198
        %2922 = vmatpush2.bf16.msra.mxu0 %v2197
        %2923 = vmatprep.subr.bf16.mxu0 %v2190
        %2924 = vmatpush2.bf16.msra.mxu0 %v2189
        %2925 = vmatprep.mubr.bf16.mxu0 %v926
        %2926 = vmatmul.mubr.bf16.gmra.mxu0 %v925
        %v2927 = vpop.f32.mrf.mxu0
        %v2928 = vadd.f32 %v825, %v2927
        %v2929 = vpop.f32.mrf.mxu0
        %v2930 = vadd.f32 %v829, %v2929
        %v2931 = vpop.f32.mrf.mxu0
        %v2932 = vadd.f32 %v825, %v2931
        %v2933 = vpop.f32.mrf.mxu0
        %v2934 = vadd.f32 %v829, %v2933
        %2935 = vmatprep.mubr.bf16.mxu0 %v932
        %2936 = vmatmul.mubr.bf16.gmra.mxu0 %v931
        %v2937 = vpop.f32.mrf.mxu0
        %v2938 = vadd.f32 %v825, %v2937
        %v2939 = vpop.f32.mrf.mxu0
        %v2940 = vadd.f32 %v829, %v2939
        %v2941 = vpop.f32.mrf.mxu0
        %v2942 = vadd.f32 %v825, %v2941
        %v2943 = vpop.f32.mrf.mxu0
        %v2944 = vadd.f32 %v829, %v2943
        %2945 = vmatprep.mubr.bf16.mxu0 %v938
        %2946 = vmatmul.mubr.bf16.gmra.mxu0 %v937
        %v2947 = vpop.f32.mrf.mxu0
        %v2948 = vadd.f32 %v825, %v2947
        %v2949 = vpop.f32.mrf.mxu0
        %v2950 = vadd.f32 %v829, %v2949
        %v2951 = vpop.f32.mrf.mxu0
        %v2952 = vadd.f32 %v825, %v2951
        %v2953 = vpop.f32.mrf.mxu0
        %v2954 = vadd.f32 %v829, %v2953
        %2955 = vmatprep.mubr.bf16.mxu0 %v944
        %2956 = vmatmul.mubr.bf16.gmra.mxu0 %v943
        %v2957 = vpop.f32.mrf.mxu0
        %v2958 = vadd.f32 %v825, %v2957
        %v2959 = vpop.f32.mrf.mxu0
        %v2960 = vadd.f32 %v829, %v2959
        %v2961 = vpop.f32.mrf.mxu0
        %v2962 = vpop.f32.mrf.mxu0
        %2963 = vdwg.mxu0
        %2964 = vmatprep.subr.bf16.mxu0 %v2310
        %2965 = vmatpush1.bf16.msra.mxu0 %v2309
        %2966 = vmatprep.subr.bf16.mxu0 %v2302
        %2967 = vmatpush1.bf16.msra.mxu0 %v2301
        %2968 = vmatprep.subr.bf16.mxu0 %v2294
        %2969 = vmatpush1.bf16.msra.mxu0 %v2293
        %2970 = vmatprep.subr.bf16.mxu0 %v2286
        %2971 = vmatpush1.bf16.msra.mxu0 %v2285
        %2972 = vmatprep.subr.bf16.mxu0 %v2278
        %2973 = vmatpush1.bf16.msra.mxu0 %v2277
        %2974 = vmatprep.subr.bf16.mxu0 %v2270
        %2975 = vmatpush1.bf16.msra.mxu0 %v2269
        %2976 = vmatprep.subr.bf16.mxu0 %v2262
        %2977 = vmatpush1.bf16.msra.mxu0 %v2261
        %2978 = vmatprep.subr.bf16.mxu0 %v2254
        %2979 = vmatpush1.bf16.msra.mxu0 %v2253
        %2980 = vmatprep.subr.bf16.mxu0 %v2374
        %2981 = vmatpush2.bf16.msra.mxu0 %v2373
        %2982 = vmatprep.subr.bf16.mxu0 %v2366
        %2983 = vmatpush2.bf16.msra.mxu0 %v2365
        %2984 = vmatprep.subr.bf16.mxu0 %v2358
        %2985 = vmatpush2.bf16.msra.mxu0 %v2357
        %2986 = vmatprep.subr.bf16.mxu0 %v2350
        %2987 = vmatpush2.bf16.msra.mxu0 %v2349
        %2988 = vmatprep.subr.bf16.mxu0 %v2342
        %2989 = vmatpush2.bf16.msra.mxu0 %v2341
        %2990 = vmatprep.subr.bf16.mxu0 %v2334
        %2991 = vmatpush2.bf16.msra.mxu0 %v2333
        %2992 = vmatprep.subr.bf16.mxu0 %v2326
        %2993 = vmatpush2.bf16.msra.mxu0 %v2325
        %2994 = vmatprep.subr.bf16.mxu0 %v2318
        %2995 = vmatpush2.bf16.msra.mxu0 %v2317
        %2996 = vmatprep.mubr.bf16.mxu0 %v928
        %2997 = vmatmul.mubr.bf16.gmra.mxu0 %v927
        %v2998 = vpop.f32.mrf.mxu0
        %v2999 = vadd.f32 %v2928, %v2998
        %v3000 = vpop.f32.mrf.mxu0
        %v3001 = vadd.f32 %v2930, %v3000
        %v3002 = vpop.f32.mrf.mxu0
        %v3003 = vadd.f32 %v2932, %v3002
        %v3004 = vpop.f32.mrf.mxu0
        %v3005 = vadd.f32 %v2934, %v3004
        %3006 = vmatprep.mubr.bf16.mxu0 %v934
        %3007 = vmatmul.mubr.bf16.gmra.mxu0 %v933
        %v3008 = vpop.f32.mrf.mxu0
        %v3009 = vadd.f32 %v2938, %v3008
        %v3010 = vpop.f32.mrf.mxu0
        %v3011 = vadd.f32 %v2940, %v3010
        %v3012 = vpop.f32.mrf.mxu0
        %v3013 = vadd.f32 %v2942, %v3012
        %v3014 = vpop.f32.mrf.mxu0
        %v3015 = vadd.f32 %v2944, %v3014
        %3016 = vmatprep.mubr.bf16.mxu0 %v940
        %3017 = vmatmul.mubr.bf16.gmra.mxu0 %v939
        %v3018 = vpop.f32.mrf.mxu0
        %v3019 = vadd.f32 %v2948, %v3018
        %v3020 = vpop.f32.mrf.mxu0
        %v3021 = vadd.f32 %v2950, %v3020
        %v3022 = vpop.f32.mrf.mxu0
        %v3023 = vadd.f32 %v2952, %v3022
        %v3024 = vpop.f32.mrf.mxu0
        %v3025 = vadd.f32 %v2954, %v3024
        %3026 = vmatprep.mubr.bf16.mxu0 %v946
        %3027 = vmatmul.mubr.bf16.gmra.mxu0 %v945
        %v3028 = vpop.f32.mrf.mxu0
        %v3029 = vadd.f32 %v2958, %v3028
        %v3030 = vpop.f32.mrf.mxu0
        %v3031 = vadd.f32 %v2960, %v3030
        %v3032 = vpop.f32.mrf.mxu0
        %v3033 = vpop.f32.mrf.mxu0
        %3034 = vdwg.mxu0
        %3035 = vmatprep.subr.bf16.mxu0 %v2438
        %3036 = vmatpush1.bf16.msra.mxu0 %v2437
        %3037 = vmatprep.subr.bf16.mxu0 %v2430
        %3038 = vmatpush1.bf16.msra.mxu0 %v2429
        %3039 = vmatprep.subr.bf16.mxu0 %v2422
        %3040 = vmatpush1.bf16.msra.mxu0 %v2421
        %3041 = vmatprep.subr.bf16.mxu0 %v2414
        %3042 = vmatpush1.bf16.msra.mxu0 %v2413
        %3043 = vmatprep.subr.bf16.mxu0 %v2406
        %3044 = vmatpush1.bf16.msra.mxu0 %v2405
        %3045 = vmatprep.subr.bf16.mxu0 %v2398
        %3046 = vmatpush1.bf16.msra.mxu0 %v2397
        %3047 = vmatprep.subr.bf16.mxu0 %v2390
        %3048 = vmatpush1.bf16.msra.mxu0 %v2389
        %3049 = vmatprep.subr.bf16.mxu0 %v2382
        %3050 = vmatpush1.bf16.msra.mxu0 %v2381
        %3051 = vmatprep.subr.bf16.mxu0 %v2502
        %3052 = vmatpush2.bf16.msra.mxu0 %v2501
        %3053 = vmatprep.subr.bf16.mxu0 %v2494
        %3054 = vmatpush2.bf16.msra.mxu0 %v2493
        %3055 = vmatprep.subr.bf16.mxu0 %v2486
        %3056 = vmatpush2.bf16.msra.mxu0 %v2485
        %3057 = vmatprep.subr.bf16.mxu0 %v2478
        %3058 = vmatpush2.bf16.msra.mxu0 %v2477
        %3059 = vmatprep.subr.bf16.mxu0 %v2470
        %3060 = vmatpush2.bf16.msra.mxu0 %v2469
        %3061 = vmatprep.subr.bf16.mxu0 %v2462
        %3062 = vmatpush2.bf16.msra.mxu0 %v2461
        %3063 = vmatprep.subr.bf16.mxu0 %v2454
        %3064 = vmatpush2.bf16.msra.mxu0 %v2453
        %3065 = vmatprep.subr.bf16.mxu0 %v2446
        %3066 = vmatpush2.bf16.msra.mxu0 %v2445
        %3067 = vmatprep.mubr.bf16.mxu0 %v930
        %3068 = vmatmul.mubr.bf16.gmra.mxu0 %v929
        %v3069 = vpop.f32.mrf.mxu0
        %v3070 = vadd.f32 %v2999, %v3069
        %v3071 = vpop.f32.mrf.mxu0
        %v3072 = vadd.f32 %v3001, %v3071
        %v3073 = vpop.f32.mrf.mxu0
        %v3074 = vadd.f32 %v3003, %v3073
        %v3075 = vpop.f32.mrf.mxu0
        %v3076 = vadd.f32 %v3005, %v3075
        %3077 = vmatprep.mubr.bf16.mxu0 %v936
        %3078 = vmatmul.mubr.bf16.gmra.mxu0 %v935
        %v3079 = vpop.f32.mrf.mxu0
        %v3080 = vadd.f32 %v3009, %v3079
        %v3081 = vpop.f32.mrf.mxu0
        %v3082 = vadd.f32 %v3011, %v3081
        %v3083 = vpop.f32.mrf.mxu0
        %v3084 = vadd.f32 %v3013, %v3083
        %v3085 = vpop.f32.mrf.mxu0
        %v3086 = vadd.f32 %v3015, %v3085
        %3087 = vmatprep.mubr.bf16.mxu0 %v942
        %3088 = vmatmul.mubr.bf16.gmra.mxu0 %v941
        %v3089 = vpop.f32.mrf.mxu0
        %v3090 = vadd.f32 %v3019, %v3089
        %v3091 = vpop.f32.mrf.mxu0
        %v3092 = vadd.f32 %v3021, %v3091
        %v3093 = vpop.f32.mrf.mxu0
        %v3094 = vadd.f32 %v3023, %v3093
        %v3095 = vpop.f32.mrf.mxu0
        %v3096 = vadd.f32 %v3025, %v3095
        %3097 = vmatprep.mubr.bf16.mxu0 %v948
        %3098 = vmatmul.mubr.bf16.gmra.mxu0 %v947
        %v3099 = vpop.f32.mrf.mxu0
        %v3100 = vadd.f32 %v3029, %v3099
        %v3101 = vpop.f32.mrf.mxu0
        %v3102 = vadd.f32 %v3031, %v3101
        %v3103 = vpop.f32.mrf.mxu0
        %v3104 = vpop.f32.mrf.mxu0
        %3105 = vdwg.mxu0
        %3106 = vmatprep.subr.bf16.mxu0 %v2184
        %3107 = vmatpush1.bf16.msra.mxu0 %v2183
        %3108 = vmatprep.subr.bf16.mxu0 %v2176
        %3109 = vmatpush1.bf16.msra.mxu0 %v2175
        %3110 = vmatprep.subr.bf16.mxu0 %v2168
        %3111 = vmatpush1.bf16.msra.mxu0 %v2167
        %3112 = vmatprep.subr.bf16.mxu0 %v2160
        %3113 = vmatpush1.bf16.msra.mxu0 %v2159
        %3114 = vmatprep.subr.bf16.mxu0 %v2152
        %3115 = vmatpush1.bf16.msra.mxu0 %v2151
        %3116 = vmatprep.subr.bf16.mxu0 %v2144
        %3117 = vmatpush1.bf16.msra.mxu0 %v2143
        %3118 = vmatprep.subr.bf16.mxu0 %v2136
        %3119 = vmatpush1.bf16.msra.mxu0 %v2135
        %3120 = vmatprep.subr.bf16.mxu0 %v2128
        %3121 = vmatpush1.bf16.msra.mxu0 %v2127
        %3122 = vmatprep.subr.bf16.mxu0 %v2248
        %3123 = vmatpush2.bf16.msra.mxu0 %v2247
        %3124 = vmatprep.subr.bf16.mxu0 %v2240
        %3125 = vmatpush2.bf16.msra.mxu0 %v2239
        %3126 = vmatprep.subr.bf16.mxu0 %v2232
        %3127 = vmatpush2.bf16.msra.mxu0 %v2231
        %3128 = vmatprep.subr.bf16.mxu0 %v2224
        %3129 = vmatpush2.bf16.msra.mxu0 %v2223
        %3130 = vmatprep.subr.bf16.mxu0 %v2216
        %3131 = vmatpush2.bf16.msra.mxu0 %v2215
        %3132 = vmatprep.subr.bf16.mxu0 %v2208
        %3133 = vmatpush2.bf16.msra.mxu0 %v2207
        %3134 = vmatprep.subr.bf16.mxu0 %v2200
        %3135 = vmatpush2.bf16.msra.mxu0 %v2199
        %3136 = vmatprep.subr.bf16.mxu0 %v2192
        %3137 = vmatpush2.bf16.msra.mxu0 %v2191
        %3138 = vmatprep.mubr.bf16.mxu0 %v926
        %3139 = vmatmul.mubr.bf16.gmra.mxu0 %v925
        %v3140 = vpop.f32.mrf.mxu0
        %v3141 = vadd.f32 %v833, %v3140
        %v3142 = vpop.f32.mrf.mxu0
        %v3143 = vadd.f32 %v837, %v3142
        %v3144 = vpop.f32.mrf.mxu0
        %v3145 = vadd.f32 %v833, %v3144
        %v3146 = vpop.f32.mrf.mxu0
        %v3147 = vadd.f32 %v837, %v3146
        %3148 = vmatprep.mubr.bf16.mxu0 %v932
        %3149 = vmatmul.mubr.bf16.gmra.mxu0 %v931
        %v3150 = vpop.f32.mrf.mxu0
        %v3151 = vadd.f32 %v833, %v3150
        %v3152 = vpop.f32.mrf.mxu0
        %v3153 = vadd.f32 %v837, %v3152
        %v3154 = vpop.f32.mrf.mxu0
        %v3155 = vadd.f32 %v833, %v3154
        %v3156 = vpop.f32.mrf.mxu0
        %v3157 = vadd.f32 %v837, %v3156
        %3158 = vmatprep.mubr.bf16.mxu0 %v938
        %3159 = vmatmul.mubr.bf16.gmra.mxu0 %v937
        %v3160 = vpop.f32.mrf.mxu0
        %v3161 = vadd.f32 %v833, %v3160
        %v3162 = vpop.f32.mrf.mxu0
        %v3163 = vadd.f32 %v837, %v3162
        %v3164 = vpop.f32.mrf.mxu0
        %v3165 = vadd.f32 %v833, %v3164
        %v3166 = vpop.f32.mrf.mxu0
        %v3167 = vadd.f32 %v837, %v3166
        %3168 = vmatprep.mubr.bf16.mxu0 %v944
        %3169 = vmatmul.mubr.bf16.gmra.mxu0 %v943
        %v3170 = vpop.f32.mrf.mxu0
        %v3171 = vadd.f32 %v833, %v3170
        %v3172 = vpop.f32.mrf.mxu0
        %v3173 = vadd.f32 %v837, %v3172
        %v3174 = vpop.f32.mrf.mxu0
        %v3175 = vpop.f32.mrf.mxu0
        %3176 = vdwg.mxu0
        %3177 = vmatprep.subr.bf16.mxu0 %v2312
        %3178 = vmatpush1.bf16.msra.mxu0 %v2311
        %3179 = vmatprep.subr.bf16.mxu0 %v2304
        %3180 = vmatpush1.bf16.msra.mxu0 %v2303
        %3181 = vmatprep.subr.bf16.mxu0 %v2296
        %3182 = vmatpush1.bf16.msra.mxu0 %v2295
        %3183 = vmatprep.subr.bf16.mxu0 %v2288
        %3184 = vmatpush1.bf16.msra.mxu0 %v2287
        %3185 = vmatprep.subr.bf16.mxu0 %v2280
        %3186 = vmatpush1.bf16.msra.mxu0 %v2279
        %3187 = vmatprep.subr.bf16.mxu0 %v2272
        %3188 = vmatpush1.bf16.msra.mxu0 %v2271
        %3189 = vmatprep.subr.bf16.mxu0 %v2264
        %3190 = vmatpush1.bf16.msra.mxu0 %v2263
        %3191 = vmatprep.subr.bf16.mxu0 %v2256
        %3192 = vmatpush1.bf16.msra.mxu0 %v2255
        %3193 = vmatprep.subr.bf16.mxu0 %v2376
        %3194 = vmatpush2.bf16.msra.mxu0 %v2375
        %3195 = vmatprep.subr.bf16.mxu0 %v2368
        %3196 = vmatpush2.bf16.msra.mxu0 %v2367
        %3197 = vmatprep.subr.bf16.mxu0 %v2360
        %3198 = vmatpush2.bf16.msra.mxu0 %v2359
        %3199 = vmatprep.subr.bf16.mxu0 %v2352
        %3200 = vmatpush2.bf16.msra.mxu0 %v2351
        %3201 = vmatprep.subr.bf16.mxu0 %v2344
        %3202 = vmatpush2.bf16.msra.mxu0 %v2343
        %3203 = vmatprep.subr.bf16.mxu0 %v2336
        %3204 = vmatpush2.bf16.msra.mxu0 %v2335
        %3205 = vmatprep.subr.bf16.mxu0 %v2328
        %3206 = vmatpush2.bf16.msra.mxu0 %v2327
        %3207 = vmatprep.subr.bf16.mxu0 %v2320
        %3208 = vmatpush2.bf16.msra.mxu0 %v2319
        %3209 = vmatprep.mubr.bf16.mxu0 %v928
        %3210 = vmatmul.mubr.bf16.gmra.mxu0 %v927
        %v3211 = vpop.f32.mrf.mxu0
        %v3212 = vadd.f32 %v3141, %v3211
        %v3213 = vpop.f32.mrf.mxu0
        %v3214 = vadd.f32 %v3143, %v3213
        %v3215 = vpop.f32.mrf.mxu0
        %v3216 = vadd.f32 %v3145, %v3215
        %v3217 = vpop.f32.mrf.mxu0
        %v3218 = vadd.f32 %v3147, %v3217
        %3219 = vmatprep.mubr.bf16.mxu0 %v934
        %3220 = vmatmul.mubr.bf16.gmra.mxu0 %v933
        %v3221 = vpop.f32.mrf.mxu0
        %v3222 = vadd.f32 %v3151, %v3221
        %v3223 = vpop.f32.mrf.mxu0
        %v3224 = vadd.f32 %v3153, %v3223
        %v3225 = vpop.f32.mrf.mxu0
        %v3226 = vadd.f32 %v3155, %v3225
        %v3227 = vpop.f32.mrf.mxu0
        %v3228 = vadd.f32 %v3157, %v3227
        %3229 = vmatprep.mubr.bf16.mxu0 %v940
        %3230 = vmatmul.mubr.bf16.gmra.mxu0 %v939
        %v3231 = vpop.f32.mrf.mxu0
        %v3232 = vadd.f32 %v3161, %v3231
        %v3233 = vpop.f32.mrf.mxu0
        %v3234 = vadd.f32 %v3163, %v3233
        %v3235 = vpop.f32.mrf.mxu0
        %v3236 = vadd.f32 %v3165, %v3235
        %v3237 = vpop.f32.mrf.mxu0
        %v3238 = vadd.f32 %v3167, %v3237
        %3239 = vmatprep.mubr.bf16.mxu0 %v946
        %3240 = vmatmul.mubr.bf16.gmra.mxu0 %v945
        %v3241 = vpop.f32.mrf.mxu0
        %v3242 = vadd.f32 %v3171, %v3241
        %v3243 = vpop.f32.mrf.mxu0
        %v3244 = vadd.f32 %v3173, %v3243
        %v3245 = vpop.f32.mrf.mxu0
        %v3246 = vpop.f32.mrf.mxu0
        %3247 = vdwg.mxu0
        %3248 = vmatprep.subr.bf16.mxu0 %v2440
        %3249 = vmatpush1.bf16.msra.mxu0 %v2439
        %3250 = vmatprep.subr.bf16.mxu0 %v2432
        %3251 = vmatpush1.bf16.msra.mxu0 %v2431
        %3252 = vmatprep.subr.bf16.mxu0 %v2424
        %3253 = vmatpush1.bf16.msra.mxu0 %v2423
        %3254 = vmatprep.subr.bf16.mxu0 %v2416
        %3255 = vmatpush1.bf16.msra.mxu0 %v2415
        %3256 = vmatprep.subr.bf16.mxu0 %v2408
        %3257 = vmatpush1.bf16.msra.mxu0 %v2407
        %3258 = vmatprep.subr.bf16.mxu0 %v2400
        %3259 = vmatpush1.bf16.msra.mxu0 %v2399
        %3260 = vmatprep.subr.bf16.mxu0 %v2392
        %3261 = vmatpush1.bf16.msra.mxu0 %v2391
        %3262 = vmatprep.subr.bf16.mxu0 %v2384
        %3263 = vmatpush1.bf16.msra.mxu0 %v2383
        %3264 = vmatprep.subr.bf16.mxu0 %v2504
        %3265 = vmatpush2.bf16.msra.mxu0 %v2503
        %3266 = vmatprep.subr.bf16.mxu0 %v2496
        %3267 = vmatpush2.bf16.msra.mxu0 %v2495
        %3268 = vmatprep.subr.bf16.mxu0 %v2488
        %3269 = vmatpush2.bf16.msra.mxu0 %v2487
        %3270 = vmatprep.subr.bf16.mxu0 %v2480
        %3271 = vmatpush2.bf16.msra.mxu0 %v2479
        %3272 = vmatprep.subr.bf16.mxu0 %v2472
        %3273 = vmatpush2.bf16.msra.mxu0 %v2471
        %3274 = vmatprep.subr.bf16.mxu0 %v2464
        %3275 = vmatpush2.bf16.msra.mxu0 %v2463
        %3276 = vmatprep.subr.bf16.mxu0 %v2456
        %3277 = vmatpush2.bf16.msra.mxu0 %v2455
        %3278 = vmatprep.subr.bf16.mxu0 %v2448
        %3279 = vmatpush2.bf16.msra.mxu0 %v2447
        %3280 = vmatprep.mubr.bf16.mxu0 %v930
        %3281 = vmatmul.mubr.bf16.gmra.mxu0 %v929
        %v3282 = vpop.f32.mrf.mxu0
        %v3283 = vadd.f32 %v3212, %v3282
        %v3284 = vpop.f32.mrf.mxu0
        %v3285 = vadd.f32 %v3214, %v3284
        %v3286 = vpop.f32.mrf.mxu0
        %v3287 = vadd.f32 %v3216, %v3286
        %v3288 = vpop.f32.mrf.mxu0
        %v3289 = vadd.f32 %v3218, %v3288
        %3290 = vmatprep.mubr.bf16.mxu0 %v936
        %3291 = vmatmul.mubr.bf16.gmra.mxu0 %v935
        %v3292 = vpop.f32.mrf.mxu0
        %v3293 = vadd.f32 %v3222, %v3292
        %v3294 = vpop.f32.mrf.mxu0
        %v3295 = vadd.f32 %v3224, %v3294
        %v3296 = vpop.f32.mrf.mxu0
        %v3297 = vadd.f32 %v3226, %v3296
        %v3298 = vpop.f32.mrf.mxu0
        %v3299 = vadd.f32 %v3228, %v3298
        %3300 = vmatprep.mubr.bf16.mxu0 %v942
        %3301 = vmatmul.mubr.bf16.gmra.mxu0 %v941
        %v3302 = vpop.f32.mrf.mxu0
        %v3303 = vadd.f32 %v3232, %v3302
        %v3304 = vpop.f32.mrf.mxu0
        %v3305 = vadd.f32 %v3234, %v3304
        %v3306 = vpop.f32.mrf.mxu0
        %v3307 = vadd.f32 %v3236, %v3306
        %v3308 = vpop.f32.mrf.mxu0
        %v3309 = vadd.f32 %v3238, %v3308
        %3310 = vmatprep.mubr.bf16.mxu0 %v948
        %3311 = vmatmul.mubr.bf16.gmra.mxu0 %v947
        %v3312 = vpop.f32.mrf.mxu0
        %v3313 = vadd.f32 %v3242, %v3312
        %v3314 = vpop.f32.mrf.mxu0
        %v3315 = vadd.f32 %v3244, %v3314
        %v3316 = vpop.f32.mrf.mxu0
        %v3317 = vpop.f32.mrf.mxu0
        %3318 = vdwg.mxu0
        %3319 = vmatprep.subr.bf16.mxu0 %v2186
        %3320 = vmatpush1.bf16.msra.mxu0 %v2185
        %3321 = vmatprep.subr.bf16.mxu0 %v2178
        %3322 = vmatpush1.bf16.msra.mxu0 %v2177
        %3323 = vmatprep.subr.bf16.mxu0 %v2170
        %3324 = vmatpush1.bf16.msra.mxu0 %v2169
        %3325 = vmatprep.subr.bf16.mxu0 %v2162
        %3326 = vmatpush1.bf16.msra.mxu0 %v2161
        %3327 = vmatprep.subr.bf16.mxu0 %v2154
        %3328 = vmatpush1.bf16.msra.mxu0 %v2153
        %3329 = vmatprep.subr.bf16.mxu0 %v2146
        %3330 = vmatpush1.bf16.msra.mxu0 %v2145
        %3331 = vmatprep.subr.bf16.mxu0 %v2138
        %3332 = vmatpush1.bf16.msra.mxu0 %v2137
        %3333 = vmatprep.subr.bf16.mxu0 %v2130
        %3334 = vmatpush1.bf16.msra.mxu0 %v2129
        %3335 = vmatprep.subr.bf16.mxu0 %v2250
        %3336 = vmatpush2.bf16.msra.mxu0 %v2249
        %3337 = vmatprep.subr.bf16.mxu0 %v2242
        %3338 = vmatpush2.bf16.msra.mxu0 %v2241
        %3339 = vmatprep.subr.bf16.mxu0 %v2234
        %3340 = vmatpush2.bf16.msra.mxu0 %v2233
        %3341 = vmatprep.subr.bf16.mxu0 %v2226
        %3342 = vmatpush2.bf16.msra.mxu0 %v2225
        %3343 = vmatprep.subr.bf16.mxu0 %v2218
        %3344 = vmatpush2.bf16.msra.mxu0 %v2217
        %3345 = vmatprep.subr.bf16.mxu0 %v2210
        %3346 = vmatpush2.bf16.msra.mxu0 %v2209
        %3347 = vmatprep.subr.bf16.mxu0 %v2202
        %3348 = vmatpush2.bf16.msra.mxu0 %v2201
        %3349 = vmatprep.subr.bf16.mxu0 %v2194
        %3350 = vmatpush2.bf16.msra.mxu0 %v2193
        %3351 = vmatprep.mubr.bf16.mxu0 %v926
        %3352 = vmatmul.mubr.bf16.gmra.mxu0 %v925
        %v3353 = vpop.f32.mrf.mxu0
        %v3354 = vadd.f32 %v841, %v3353
        %v3355 = vpop.f32.mrf.mxu0
        %v3356 = vadd.f32 %v845, %v3355
        %v3357 = vpop.f32.mrf.mxu0
        %v3358 = vadd.f32 %v841, %v3357
        %v3359 = vpop.f32.mrf.mxu0
        %v3360 = vadd.f32 %v845, %v3359
        %3361 = vmatprep.mubr.bf16.mxu0 %v932
        %3362 = vmatmul.mubr.bf16.gmra.mxu0 %v931
        %v3363 = vpop.f32.mrf.mxu0
        %v3364 = vadd.f32 %v841, %v3363
        %v3365 = vpop.f32.mrf.mxu0
        %v3366 = vadd.f32 %v845, %v3365
        %v3367 = vpop.f32.mrf.mxu0
        %v3368 = vadd.f32 %v841, %v3367
        %v3369 = vpop.f32.mrf.mxu0
        %v3370 = vadd.f32 %v845, %v3369
        %3371 = vmatprep.mubr.bf16.mxu0 %v938
        %3372 = vmatmul.mubr.bf16.gmra.mxu0 %v937
        %v3373 = vpop.f32.mrf.mxu0
        %v3374 = vadd.f32 %v841, %v3373
        %v3375 = vpop.f32.mrf.mxu0
        %v3376 = vadd.f32 %v845, %v3375
        %v3377 = vpop.f32.mrf.mxu0
        %v3378 = vadd.f32 %v841, %v3377
        %v3379 = vpop.f32.mrf.mxu0
        %v3380 = vadd.f32 %v845, %v3379
        %3381 = vmatprep.mubr.bf16.mxu0 %v944
        %3382 = vmatmul.mubr.bf16.gmra.mxu0 %v943
        %v3383 = vpop.f32.mrf.mxu0
        %v3384 = vadd.f32 %v841, %v3383
        %v3385 = vpop.f32.mrf.mxu0
        %v3386 = vadd.f32 %v845, %v3385
        %v3387 = vpop.f32.mrf.mxu0
        %v3388 = vpop.f32.mrf.mxu0
        %3389 = vdwg.mxu0
        %3390 = vmatprep.subr.bf16.mxu0 %v2314
        %3391 = vmatpush1.bf16.msra.mxu0 %v2313
        %3392 = vmatprep.subr.bf16.mxu0 %v2306
        %3393 = vmatpush1.bf16.msra.mxu0 %v2305
        %3394 = vmatprep.subr.bf16.mxu0 %v2298
        %3395 = vmatpush1.bf16.msra.mxu0 %v2297
        %3396 = vmatprep.subr.bf16.mxu0 %v2290
        %3397 = vmatpush1.bf16.msra.mxu0 %v2289
        %3398 = vmatprep.subr.bf16.mxu0 %v2282
        %3399 = vmatpush1.bf16.msra.mxu0 %v2281
        %3400 = vmatprep.subr.bf16.mxu0 %v2274
        %3401 = vmatpush1.bf16.msra.mxu0 %v2273
        %3402 = vmatprep.subr.bf16.mxu0 %v2266
        %3403 = vmatpush1.bf16.msra.mxu0 %v2265
        %3404 = vmatprep.subr.bf16.mxu0 %v2258
        %3405 = vmatpush1.bf16.msra.mxu0 %v2257
        %3406 = vmatprep.subr.bf16.mxu0 %v2378
        %3407 = vmatpush2.bf16.msra.mxu0 %v2377
        %3408 = vmatprep.subr.bf16.mxu0 %v2370
        %3409 = vmatpush2.bf16.msra.mxu0 %v2369
        %3410 = vmatprep.subr.bf16.mxu0 %v2362
        %3411 = vmatpush2.bf16.msra.mxu0 %v2361
        %3412 = vmatprep.subr.bf16.mxu0 %v2354
        %3413 = vmatpush2.bf16.msra.mxu0 %v2353
        %3414 = vmatprep.subr.bf16.mxu0 %v2346
        %3415 = vmatpush2.bf16.msra.mxu0 %v2345
        %3416 = vmatprep.subr.bf16.mxu0 %v2338
        %3417 = vmatpush2.bf16.msra.mxu0 %v2337
        %3418 = vmatprep.subr.bf16.mxu0 %v2330
        %3419 = vmatpush2.bf16.msra.mxu0 %v2329
        %3420 = vmatprep.subr.bf16.mxu0 %v2322
        %3421 = vmatpush2.bf16.msra.mxu0 %v2321
        %3422 = vmatprep.mubr.bf16.mxu0 %v928
        %3423 = vmatmul.mubr.bf16.gmra.mxu0 %v927
        %v3424 = vpop.f32.mrf.mxu0
        %v3425 = vadd.f32 %v3354, %v3424
        %v3426 = vpop.f32.mrf.mxu0
        %v3427 = vadd.f32 %v3356, %v3426
        %v3428 = vpop.f32.mrf.mxu0
        %v3429 = vadd.f32 %v3358, %v3428
        %v3430 = vpop.f32.mrf.mxu0
        %v3431 = vadd.f32 %v3360, %v3430
        %3432 = vmatprep.mubr.bf16.mxu0 %v934
        %3433 = vmatmul.mubr.bf16.gmra.mxu0 %v933
        %v3434 = vpop.f32.mrf.mxu0
        %v3435 = vadd.f32 %v3364, %v3434
        %v3436 = vpop.f32.mrf.mxu0
        %v3437 = vadd.f32 %v3366, %v3436
        %v3438 = vpop.f32.mrf.mxu0
        %v3439 = vadd.f32 %v3368, %v3438
        %v3440 = vpop.f32.mrf.mxu0
        %v3441 = vadd.f32 %v3370, %v3440
        %3442 = vmatprep.mubr.bf16.mxu0 %v940
        %3443 = vmatmul.mubr.bf16.gmra.mxu0 %v939
        %v3444 = vpop.f32.mrf.mxu0
        %v3445 = vadd.f32 %v3374, %v3444
        %v3446 = vpop.f32.mrf.mxu0
        %v3447 = vadd.f32 %v3376, %v3446
        %v3448 = vpop.f32.mrf.mxu0
        %v3449 = vadd.f32 %v3378, %v3448
        %v3450 = vpop.f32.mrf.mxu0
        %v3451 = vadd.f32 %v3380, %v3450
        %3452 = vmatprep.mubr.bf16.mxu0 %v946
        %3453 = vmatmul.mubr.bf16.gmra.mxu0 %v945
        %v3454 = vpop.f32.mrf.mxu0
        %v3455 = vadd.f32 %v3384, %v3454
        %v3456 = vpop.f32.mrf.mxu0
        %v3457 = vadd.f32 %v3386, %v3456
        %v3458 = vpop.f32.mrf.mxu0
        %v3459 = vpop.f32.mrf.mxu0
        %3460 = vdwg.mxu0
        %3461 = vmatprep.subr.bf16.mxu0 %v2442
        %3462 = vmatpush1.bf16.msra.mxu0 %v2441
        %3463 = vmatprep.subr.bf16.mxu0 %v2434
        %3464 = vmatpush1.bf16.msra.mxu0 %v2433
        %3465 = vmatprep.subr.bf16.mxu0 %v2426
        %3466 = vmatpush1.bf16.msra.mxu0 %v2425
        %3467 = vmatprep.subr.bf16.mxu0 %v2418
        %3468 = vmatpush1.bf16.msra.mxu0 %v2417
        %3469 = vmatprep.subr.bf16.mxu0 %v2410
        %3470 = vmatpush1.bf16.msra.mxu0 %v2409
        %3471 = vmatprep.subr.bf16.mxu0 %v2402
        %3472 = vmatpush1.bf16.msra.mxu0 %v2401
        %3473 = vmatprep.subr.bf16.mxu0 %v2394
        %3474 = vmatpush1.bf16.msra.mxu0 %v2393
        %3475 = vmatprep.subr.bf16.mxu0 %v2386
        %3476 = vmatpush1.bf16.msra.mxu0 %v2385
        %3477 = vmatprep.subr.bf16.mxu0 %v2506
        %3478 = vmatpush2.bf16.msra.mxu0 %v2505
        %3479 = vmatprep.subr.bf16.mxu0 %v2498
        %3480 = vmatpush2.bf16.msra.mxu0 %v2497
        %3481 = vmatprep.subr.bf16.mxu0 %v2490
        %3482 = vmatpush2.bf16.msra.mxu0 %v2489
        %3483 = vmatprep.subr.bf16.mxu0 %v2482
        %3484 = vmatpush2.bf16.msra.mxu0 %v2481
        %3485 = vmatprep.subr.bf16.mxu0 %v2474
        %3486 = vmatpush2.bf16.msra.mxu0 %v2473
        %3487 = vmatprep.subr.bf16.mxu0 %v2466
        %3488 = vmatpush2.bf16.msra.mxu0 %v2465
        %3489 = vmatprep.subr.bf16.mxu0 %v2458
        %3490 = vmatpush2.bf16.msra.mxu0 %v2457
        %3491 = vmatprep.subr.bf16.mxu0 %v2450
        %3492 = vmatpush2.bf16.msra.mxu0 %v2449
        %3493 = vmatprep.mubr.bf16.mxu0 %v930
        %3494 = vmatmul.mubr.bf16.gmra.mxu0 %v929
        %v3495 = vpop.f32.mrf.mxu0
        %v3496 = vadd.f32 %v3425, %v3495
        %v3497 = vpop.f32.mrf.mxu0
        %v3498 = vadd.f32 %v3427, %v3497
        %v3499 = vpop.f32.mrf.mxu0
        %v3500 = vadd.f32 %v3429, %v3499
        %v3501 = vpop.f32.mrf.mxu0
        %v3502 = vadd.f32 %v3431, %v3501
        %3503 = vmatprep.mubr.bf16.mxu0 %v936
        %3504 = vmatmul.mubr.bf16.gmra.mxu0 %v935
        %v3505 = vpop.f32.mrf.mxu0
        %v3506 = vadd.f32 %v3435, %v3505
        %v3507 = vpop.f32.mrf.mxu0
        %v3508 = vadd.f32 %v3437, %v3507
        %v3509 = vpop.f32.mrf.mxu0
        %v3510 = vadd.f32 %v3439, %v3509
        %v3511 = vpop.f32.mrf.mxu0
        %v3512 = vadd.f32 %v3441, %v3511
        %3513 = vmatprep.mubr.bf16.mxu0 %v942
        %3514 = vmatmul.mubr.bf16.gmra.mxu0 %v941
        %v3515 = vpop.f32.mrf.mxu0
        %v3516 = vadd.f32 %v3445, %v3515
        %v3517 = vpop.f32.mrf.mxu0
        %v3518 = vadd.f32 %v3447, %v3517
        %v3519 = vpop.f32.mrf.mxu0
        %v3520 = vadd.f32 %v3449, %v3519
        %v3521 = vpop.f32.mrf.mxu0
        %v3522 = vadd.f32 %v3451, %v3521
        %3523 = vmatprep.mubr.bf16.mxu0 %v948
        %3524 = vmatmul.mubr.bf16.gmra.mxu0 %v947
        %v3525 = vpop.f32.mrf.mxu0
        %v3526 = vadd.f32 %v3455, %v3525
        %v3527 = vpop.f32.mrf.mxu0
        %v3528 = vadd.f32 %v3457, %v3527
        %v3529 = vpop.f32.mrf.mxu0
        %v3530 = vpop.f32.mrf.mxu0
        %3531 = vdwg.mxu0
        %3532 = vmatprep.subr.bf16.mxu0 %v2188
        %3533 = vmatpush1.bf16.msra.mxu0 %v2187
        %3534 = vmatprep.subr.bf16.mxu0 %v2180
        %3535 = vmatpush1.bf16.msra.mxu0 %v2179
        %3536 = vmatprep.subr.bf16.mxu0 %v2172
        %3537 = vmatpush1.bf16.msra.mxu0 %v2171
        %3538 = vmatprep.subr.bf16.mxu0 %v2164
        %3539 = vmatpush1.bf16.msra.mxu0 %v2163
        %3540 = vmatprep.subr.bf16.mxu0 %v2156
        %3541 = vmatpush1.bf16.msra.mxu0 %v2155
        %3542 = vmatprep.subr.bf16.mxu0 %v2148
        %3543 = vmatpush1.bf16.msra.mxu0 %v2147
        %3544 = vmatprep.subr.bf16.mxu0 %v2140
        %3545 = vmatpush1.bf16.msra.mxu0 %v2139
        %3546 = vmatprep.subr.bf16.mxu0 %v2132
        %3547 = vmatpush1.bf16.msra.mxu0 %v2131
        %3548 = vmatprep.subr.bf16.mxu0 %v2252
        %3549 = vmatpush2.bf16.msra.mxu0 %v2251
        %3550 = vmatprep.subr.bf16.mxu0 %v2244
        %3551 = vmatpush2.bf16.msra.mxu0 %v2243
        %3552 = vmatprep.subr.bf16.mxu0 %v2236
        %3553 = vmatpush2.bf16.msra.mxu0 %v2235
        %3554 = vmatprep.subr.bf16.mxu0 %v2228
        %3555 = vmatpush2.bf16.msra.mxu0 %v2227
        %3556 = vmatprep.subr.bf16.mxu0 %v2220
        %3557 = vmatpush2.bf16.msra.mxu0 %v2219
        %3558 = vmatprep.subr.bf16.mxu0 %v2212
        %3559 = vmatpush2.bf16.msra.mxu0 %v2211
        %3560 = vmatprep.subr.bf16.mxu0 %v2204
        %3561 = vmatpush2.bf16.msra.mxu0 %v2203
        %3562 = vmatprep.subr.bf16.mxu0 %v2196
        %3563 = vmatpush2.bf16.msra.mxu0 %v2195
        %3564 = vmatprep.mubr.bf16.mxu0 %v926
        %3565 = vmatmul.mubr.bf16.gmra.mxu0 %v925
        %v3566 = vpop.f32.mrf.mxu0
        %v3567 = vadd.f32 %v849, %v3566
        %v3568 = vpop.f32.mrf.mxu0
        %v3569 = vadd.f32 %v853, %v3568
        %v3570 = vpop.f32.mrf.mxu0
        %v3571 = vadd.f32 %v849, %v3570
        %v3572 = vpop.f32.mrf.mxu0
        %v3573 = vadd.f32 %v853, %v3572
        %3574 = vmatprep.mubr.bf16.mxu0 %v932
        %3575 = vmatmul.mubr.bf16.gmra.mxu0 %v931
        %v3576 = vpop.f32.mrf.mxu0
        %v3577 = vadd.f32 %v849, %v3576
        %v3578 = vpop.f32.mrf.mxu0
        %v3579 = vadd.f32 %v853, %v3578
        %v3580 = vpop.f32.mrf.mxu0
        %v3581 = vadd.f32 %v849, %v3580
        %v3582 = vpop.f32.mrf.mxu0
        %v3583 = vadd.f32 %v853, %v3582
        %3584 = vmatprep.mubr.bf16.mxu0 %v938
        %3585 = vmatmul.mubr.bf16.gmra.mxu0 %v937
        %v3586 = vpop.f32.mrf.mxu0
        %v3587 = vadd.f32 %v849, %v3586
        %v3588 = vpop.f32.mrf.mxu0
        %v3589 = vadd.f32 %v853, %v3588
        %v3590 = vpop.f32.mrf.mxu0
        %v3591 = vadd.f32 %v849, %v3590
        %v3592 = vpop.f32.mrf.mxu0
        %v3593 = vadd.f32 %v853, %v3592
        %3594 = vmatprep.mubr.bf16.mxu0 %v944
        %3595 = vmatmul.mubr.bf16.gmra.mxu0 %v943
        %v3596 = vpop.f32.mrf.mxu0
        %v3597 = vadd.f32 %v849, %v3596
        %v3598 = vpop.f32.mrf.mxu0
        %v3599 = vadd.f32 %v853, %v3598
        %v3600 = vpop.f32.mrf.mxu0
        %v3601 = vpop.f32.mrf.mxu0
        %3602 = vdwg.mxu0
        %3603 = vmatprep.subr.bf16.mxu0 %v2316
        %3604 = vmatpush1.bf16.msra.mxu0 %v2315
        %3605 = vmatprep.subr.bf16.mxu0 %v2308
        %3606 = vmatpush1.bf16.msra.mxu0 %v2307
        %3607 = vmatprep.subr.bf16.mxu0 %v2300
        %3608 = vmatpush1.bf16.msra.mxu0 %v2299
        %3609 = vmatprep.subr.bf16.mxu0 %v2292
        %3610 = vmatpush1.bf16.msra.mxu0 %v2291
        %3611 = vmatprep.subr.bf16.mxu0 %v2284
        %3612 = vmatpush1.bf16.msra.mxu0 %v2283
        %3613 = vmatprep.subr.bf16.mxu0 %v2276
        %3614 = vmatpush1.bf16.msra.mxu0 %v2275
        %3615 = vmatprep.subr.bf16.mxu0 %v2268
        %3616 = vmatpush1.bf16.msra.mxu0 %v2267
        %3617 = vmatprep.subr.bf16.mxu0 %v2260
        %3618 = vmatpush1.bf16.msra.mxu0 %v2259
        %3619 = vmatprep.subr.bf16.mxu0 %v2380
        %3620 = vmatpush2.bf16.msra.mxu0 %v2379
        %3621 = vmatprep.subr.bf16.mxu0 %v2372
        %3622 = vmatpush2.bf16.msra.mxu0 %v2371
        %3623 = vmatprep.subr.bf16.mxu0 %v2364
        %3624 = vmatpush2.bf16.msra.mxu0 %v2363
        %3625 = vmatprep.subr.bf16.mxu0 %v2356
        %3626 = vmatpush2.bf16.msra.mxu0 %v2355
        %3627 = vmatprep.subr.bf16.mxu0 %v2348
        %3628 = vmatpush2.bf16.msra.mxu0 %v2347
        %3629 = vmatprep.subr.bf16.mxu0 %v2340
        %3630 = vmatpush2.bf16.msra.mxu0 %v2339
        %3631 = vmatprep.subr.bf16.mxu0 %v2332
        %3632 = vmatpush2.bf16.msra.mxu0 %v2331
        %3633 = vmatprep.subr.bf16.mxu0 %v2324
        %3634 = vmatpush2.bf16.msra.mxu0 %v2323
        %3635 = vmatprep.mubr.bf16.mxu0 %v928
        %3636 = vmatmul.mubr.bf16.gmra.mxu0 %v927
        %v3637 = vpop.f32.mrf.mxu0
        %v3638 = vadd.f32 %v3567, %v3637
        %v3639 = vpop.f32.mrf.mxu0
        %v3640 = vadd.f32 %v3569, %v3639
        %v3641 = vpop.f32.mrf.mxu0
        %v3642 = vadd.f32 %v3571, %v3641
        %v3643 = vpop.f32.mrf.mxu0
        %v3644 = vadd.f32 %v3573, %v3643
        %3645 = vmatprep.mubr.bf16.mxu0 %v934
        %3646 = vmatmul.mubr.bf16.gmra.mxu0 %v933
        %v3647 = vpop.f32.mrf.mxu0
        %v3648 = vadd.f32 %v3577, %v3647
        %v3649 = vpop.f32.mrf.mxu0
        %v3650 = vadd.f32 %v3579, %v3649
        %v3651 = vpop.f32.mrf.mxu0
        %v3652 = vadd.f32 %v3581, %v3651
        %v3653 = vpop.f32.mrf.mxu0
        %v3654 = vadd.f32 %v3583, %v3653
        %3655 = vmatprep.mubr.bf16.mxu0 %v940
        %3656 = vmatmul.mubr.bf16.gmra.mxu0 %v939
        %v3657 = vpop.f32.mrf.mxu0
        %v3658 = vadd.f32 %v3587, %v3657
        %v3659 = vpop.f32.mrf.mxu0
        %v3660 = vadd.f32 %v3589, %v3659
        %v3661 = vpop.f32.mrf.mxu0
        %v3662 = vadd.f32 %v3591, %v3661
        %v3663 = vpop.f32.mrf.mxu0
        %v3664 = vadd.f32 %v3593, %v3663
        %3665 = vmatprep.mubr.bf16.mxu0 %v946
        %3666 = vmatmul.mubr.bf16.gmra.mxu0 %v945
        %v3667 = vpop.f32.mrf.mxu0
        %v3668 = vadd.f32 %v3597, %v3667
        %v3669 = vpop.f32.mrf.mxu0
        %v3670 = vadd.f32 %v3599, %v3669
        %v3671 = vpop.f32.mrf.mxu0
        %v3672 = vpop.f32.mrf.mxu0
        %3673 = vdwg.mxu0
        %3674 = vmatprep.subr.bf16.mxu0 %v2444
        %3675 = vmatpush1.bf16.msra.mxu0 %v2443
        %3676 = vmatprep.subr.bf16.mxu0 %v2436
        %3677 = vmatpush1.bf16.msra.mxu0 %v2435
        %3678 = vmatprep.subr.bf16.mxu0 %v2428
        %3679 = vmatpush1.bf16.msra.mxu0 %v2427
        %3680 = vmatprep.subr.bf16.mxu0 %v2420
        %3681 = vmatpush1.bf16.msra.mxu0 %v2419
        %3682 = vmatprep.subr.bf16.mxu0 %v2412
        %3683 = vmatpush1.bf16.msra.mxu0 %v2411
        %3684 = vmatprep.subr.bf16.mxu0 %v2404
        %3685 = vmatpush1.bf16.msra.mxu0 %v2403
        %3686 = vmatprep.subr.bf16.mxu0 %v2396
        %3687 = vmatpush1.bf16.msra.mxu0 %v2395
        %3688 = vmatprep.subr.bf16.mxu0 %v2388
        %3689 = vmatpush1.bf16.msra.mxu0 %v2387
        %3690 = vmatprep.subr.bf16.mxu0 %v2508
        %3691 = vmatpush2.bf16.msra.mxu0 %v2507
        %3692 = vmatprep.subr.bf16.mxu0 %v2500
        %3693 = vmatpush2.bf16.msra.mxu0 %v2499
        %3694 = vmatprep.subr.bf16.mxu0 %v2492
        %3695 = vmatpush2.bf16.msra.mxu0 %v2491
        %3696 = vmatprep.subr.bf16.mxu0 %v2484
        %3697 = vmatpush2.bf16.msra.mxu0 %v2483
        %3698 = vmatprep.subr.bf16.mxu0 %v2476
        %3699 = vmatpush2.bf16.msra.mxu0 %v2475
        %3700 = vmatprep.subr.bf16.mxu0 %v2468
        %3701 = vmatpush2.bf16.msra.mxu0 %v2467
        %3702 = vmatprep.subr.bf16.mxu0 %v2460
        %3703 = vmatpush2.bf16.msra.mxu0 %v2459
        %3704 = vmatprep.subr.bf16.mxu0 %v2452
        %3705 = vmatpush2.bf16.msra.mxu0 %v2451
        %3706 = vmatprep.mubr.bf16.mxu0 %v930
        %3707 = vmatmul.mubr.bf16.gmra.mxu0 %v929
        %v3708 = vpop.f32.mrf.mxu0
        %v3709 = vadd.f32 %v3638, %v3708
        %v3710 = vpop.f32.mrf.mxu0
        %v3711 = vadd.f32 %v3640, %v3710
        %v3712 = vpop.f32.mrf.mxu0
        %v3713 = vadd.f32 %v3642, %v3712
        %v3714 = vpop.f32.mrf.mxu0
        %v3715 = vadd.f32 %v3644, %v3714
        %3716 = vmatprep.mubr.bf16.mxu0 %v936
        %3717 = vmatmul.mubr.bf16.gmra.mxu0 %v935
        %v3718 = vpop.f32.mrf.mxu0
        %v3719 = vadd.f32 %v3648, %v3718
        %v3720 = vpop.f32.mrf.mxu0
        %v3721 = vadd.f32 %v3650, %v3720
        %v3722 = vpop.f32.mrf.mxu0
        %v3723 = vadd.f32 %v3652, %v3722
        %v3724 = vpop.f32.mrf.mxu0
        %v3725 = vadd.f32 %v3654, %v3724
        %3726 = vmatprep.mubr.bf16.mxu0 %v942
        %3727 = vmatmul.mubr.bf16.gmra.mxu0 %v941
        %v3728 = vpop.f32.mrf.mxu0
        %v3729 = vadd.f32 %v3658, %v3728
        %v3730 = vpop.f32.mrf.mxu0
        %v3731 = vadd.f32 %v3660, %v3730
        %v3732 = vpop.f32.mrf.mxu0
        %v3733 = vadd.f32 %v3662, %v3732
        %v3734 = vpop.f32.mrf.mxu0
        %v3735 = vadd.f32 %v3664, %v3734
        %3736 = vmatprep.mubr.bf16.mxu0 %v948
        %3737 = vmatmul.mubr.bf16.gmra.mxu0 %v947
        %v3738 = vpop.f32.mrf.mxu0
        %v3739 = vadd.f32 %v3668, %v3738
        %v3740 = vpop.f32.mrf.mxu0
        %v3741 = vadd.f32 %v3670, %v3740
        %v3742 = vpop.f32.mrf.mxu0
        %v3743 = vpop.f32.mrf.mxu0
        %3744 = vdwg.mxu0
        %v3745 = vmul.f32 %v3070, 0.5
        %v3746 = vmul.f32 %v3072, 0.5
        %v3747 = vmul.f32 %v3283, 0.5
        %v3748 = vmul.f32 %v3285, 0.5
        %v3749 = vmul.f32 %v3496, 0.5
        %v3750 = vmul.f32 %v3498, 0.5
        %v3751 = vmul.f32 %v3709, 0.5
        %v3752 = vmul.f32 %v3711, 0.5
        %v3753 = vmul.f32 %v3074, 0.5
        %v3754 = vmul.f32 %v3076, 0.5
        %v3755 = vmul.f32 %v3287, 0.5
        %v3756 = vmul.f32 %v3289, 0.5
        %v3757 = vmul.f32 %v3500, 0.5
        %v3758 = vmul.f32 %v3502, 0.5
        %v3759 = vmul.f32 %v3713, 0.5
        %v3760 = vmul.f32 %v3715, 0.5
        %v3761 = vmul.f32 %v3080, 0.5
        %v3762 = vmul.f32 %v3082, 0.5
        %v3763 = vmul.f32 %v3293, 0.5
        %v3764 = vmul.f32 %v3295, 0.5
        %v3765 = vmul.f32 %v3506, 0.5
        %v3766 = vmul.f32 %v3508, 0.5
        %v3767 = vmul.f32 %v3719, 0.5
        %v3768 = vmul.f32 %v3721, 0.5
        %v3769 = vmul.f32 %v3084, 0.5
        %v3770 = vmul.f32 %v3086, 0.5
        %v3771 = vmul.f32 %v3297, 0.5
        %v3772 = vmul.f32 %v3299, 0.5
        %v3773 = vmul.f32 %v3510, 0.5
        %v3774 = vmul.f32 %v3512, 0.5
        %v3775 = vmul.f32 %v3723, 0.5
        %v3776 = vmul.f32 %v3725, 0.5
        %v3777 = vmul.f32 %v3090, 0.5
        %v3778 = vmul.f32 %v3092, 0.5
        %v3779 = vmul.f32 %v3303, 0.5
        %v3780 = vmul.f32 %v3305, 0.5
        %v3781 = vmul.f32 %v3516, 0.5
        %v3782 = vmul.f32 %v3518, 0.5
        %v3783 = vmul.f32 %v3729, 0.5
        %v3784 = vmul.f32 %v3731, 0.5
        %v3785 = vmul.f32 %v3094, 0.5
        %v3786 = vmul.f32 %v3096, 0.5
        %v3787 = vmul.f32 %v3307, 0.5
        %v3788 = vmul.f32 %v3309, 0.5
        %v3789 = vmul.f32 %v3520, 0.5
        %v3790 = vmul.f32 %v3522, 0.5
        %v3791 = vmul.f32 %v3733, 0.5
        %v3792 = vmul.f32 %v3735, 0.5
        %v3793 = vmul.f32 %v3100, 0.5
        %v3794 = vmul.f32 %v3102, 0.5
        %v3795 = vmul.f32 %v3313, 0.5
        %v3796 = vmul.f32 %v3315, 0.5
        %v3797 = vmul.f32 %v3526, 0.5
        %v3798 = vmul.f32 %v3528, 0.5
        %v3799 = vmul.f32 %v3739, 0.5
        %v3800 = vmul.f32 %v3741, 0.5
        %v3801 = vmul.f32 %v3070, 0.70710677
        %v3802 = vmul.f32 %v3072, 0.70710677
        %v3803 = vmul.f32 %v3283, 0.70710677
        %v3804 = vmul.f32 %v3285, 0.70710677
        %v3805 = vmul.f32 %v3496, 0.70710677
        %v3806 = vmul.f32 %v3498, 0.70710677
        %v3807 = vmul.f32 %v3709, 0.70710677
        %v3808 = vmul.f32 %v3711, 0.70710677
        %v3809 = vmul.f32 %v3074, 0.70710677
        %v3810 = vmul.f32 %v3076, 0.70710677
        %v3811 = vmul.f32 %v3287, 0.70710677
        %v3812 = vmul.f32 %v3289, 0.70710677
        %v3813 = vmul.f32 %v3500, 0.70710677
        %v3814 = vmul.f32 %v3502, 0.70710677
        %v3815 = vmul.f32 %v3713, 0.70710677
        %v3816 = vmul.f32 %v3715, 0.70710677
        %v3817 = vmul.f32 %v3080, 0.70710677
        %v3818 = vmul.f32 %v3082, 0.70710677
        %v3819 = vmul.f32 %v3293, 0.70710677
        %v3820 = vmul.f32 %v3295, 0.70710677
        %v3821 = vmul.f32 %v3506, 0.70710677
        %v3822 = vmul.f32 %v3508, 0.70710677
        %v3823 = vmul.f32 %v3719, 0.70710677
        %v3824 = vmul.f32 %v3721, 0.70710677
        %v3825 = vmul.f32 %v3084, 0.70710677
        %v3826 = vmul.f32 %v3086, 0.70710677
        %v3827 = vmul.f32 %v3297, 0.70710677
        %v3828 = vmul.f32 %v3299, 0.70710677
        %v3829 = vmul.f32 %v3510, 0.70710677
        %v3830 = vmul.f32 %v3512, 0.70710677
        %v3831 = vmul.f32 %v3723, 0.70710677
        %v3832 = vmul.f32 %v3725, 0.70710677
        %v3833 = vmul.f32 %v3090, 0.70710677
        %v3834 = vmul.f32 %v3092, 0.70710677
        %v3835 = vmul.f32 %v3303, 0.70710677
        %v3836 = vmul.f32 %v3305, 0.70710677
        %v3837 = vmul.f32 %v3516, 0.70710677
        %v3838 = vmul.f32 %v3518, 0.70710677
        %v3839 = vmul.f32 %v3729, 0.70710677
        %v3840 = vmul.f32 %v3731, 0.70710677
        %v3841 = vmul.f32 %v3094, 0.70710677
        %v3842 = vmul.f32 %v3096, 0.70710677
        %v3843 = vmul.f32 %v3307, 0.70710677
        %v3844 = vmul.f32 %v3309, 0.70710677
        %v3845 = vmul.f32 %v3520, 0.70710677
        %v3846 = vmul.f32 %v3522, 0.70710677
        %v3847 = vmul.f32 %v3733, 0.70710677
        %v3848 = vmul.f32 %v3735, 0.70710677
        %v3849 = vmul.f32 %v3100, 0.70710677
        %v3850 = vmul.f32 %v3102, 0.70710677
        %v3851 = vmul.f32 %v3313, 0.70710677
        %v3852 = vmul.f32 %v3315, 0.70710677
        %v3853 = vmul.f32 %v3526, 0.70710677
        %v3854 = vmul.f32 %v3528, 0.70710677
        %v3855 = vmul.f32 %v3739, 0.70710677
        %v3856 = vmul.f32 %v3741, 0.70710677
        %v3857 = verf.f32.pop %v3801
        %v3858 = verf.f32.pop %v3802
        %v3859 = verf.f32.pop %v3803
        %v3860 = verf.f32.pop %v3804
        %v3861 = verf.f32.pop %v3805
        %v3862 = verf.f32.pop %v3806
        %v3863 = verf.f32.pop %v3807
        %v3864 = verf.f32.pop %v3808
        %v3865 = verf.f32.pop %v3809
        %v3866 = verf.f32.pop %v3810
        %v3867 = verf.f32.pop %v3811
        %v3868 = verf.f32.pop %v3812
        %v3869 = verf.f32.pop %v3813
        %v3870 = verf.f32.pop %v3814
        %v3871 = verf.f32.pop %v3815
        %v3872 = verf.f32.pop %v3816
        %v3873 = verf.f32.pop %v3817
        %v3874 = verf.f32.pop %v3818
        %v3875 = verf.f32.pop %v3819
        %v3876 = verf.f32.pop %v3820
        %v3877 = verf.f32.pop %v3821
        %v3878 = verf.f32.pop %v3822
        %v3879 = verf.f32.pop %v3823
        %v3880 = verf.f32.pop %v3824
        %v3881 = verf.f32.pop %v3825
        %v3882 = verf.f32.pop %v3826
        %v3883 = verf.f32.pop %v3827
        %v3884 = verf.f32.pop %v3828
        %v3885 = verf.f32.pop %v3829
        %v3886 = verf.f32.pop %v3830
        %v3887 = verf.f32.pop %v3831
        %v3888 = verf.f32.pop %v3832
        %v3889 = verf.f32.pop %v3833
        %v3890 = verf.f32.pop %v3834
        %v3891 = verf.f32.pop %v3835
        %v3892 = verf.f32.pop %v3836
        %v3893 = verf.f32.pop %v3837
        %v3894 = verf.f32.pop %v3838
        %v3895 = verf.f32.pop %v3839
        %v3896 = verf.f32.pop %v3840
        %v3897 = verf.f32.pop %v3841
        %v3898 = verf.f32.pop %v3842
        %v3899 = verf.f32.pop %v3843
        %v3900 = verf.f32.pop %v3844
        %v3901 = verf.f32.pop %v3845
        %v3902 = verf.f32.pop %v3846
        %v3903 = verf.f32.pop %v3847
        %v3904 = verf.f32.pop %v3848
        %v3905 = verf.f32.pop %v3849
        %v3906 = verf.f32.pop %v3850
        %v3907 = verf.f32.pop %v3851
        %v3908 = verf.f32.pop %v3852
        %v3909 = verf.f32.pop %v3853
        %v3910 = verf.f32.pop %v3854
        %v3911 = verf.f32.pop %v3855
        %v3912 = verf.f32.pop %v3856
        %v3913 = vadd.f32 %v3857, 1.0
        %v3914 = vadd.f32 %v3858, 1.0
        %v3915 = vadd.f32 %v3859, 1.0
        %v3916 = vadd.f32 %v3860, 1.0
        %v3917 = vadd.f32 %v3861, 1.0
        %v3918 = vadd.f32 %v3862, 1.0
        %v3919 = vadd.f32 %v3863, 1.0
        %v3920 = vadd.f32 %v3864, 1.0
        %v3921 = vadd.f32 %v3865, 1.0
        %v3922 = vadd.f32 %v3866, 1.0
        %v3923 = vadd.f32 %v3867, 1.0
        %v3924 = vadd.f32 %v3868, 1.0
        %v3925 = vadd.f32 %v3869, 1.0
        %v3926 = vadd.f32 %v3870, 1.0
        %v3927 = vadd.f32 %v3871, 1.0
        %v3928 = vadd.f32 %v3872, 1.0
        %v3929 = vadd.f32 %v3873, 1.0
        %v3930 = vadd.f32 %v3874, 1.0
        %v3931 = vadd.f32 %v3875, 1.0
        %v3932 = vadd.f32 %v3876, 1.0
        %v3933 = vadd.f32 %v3877, 1.0
        %v3934 = vadd.f32 %v3878, 1.0
        %v3935 = vadd.f32 %v3879, 1.0
        %v3936 = vadd.f32 %v3880, 1.0
        %v3937 = vadd.f32 %v3881, 1.0
        %v3938 = vadd.f32 %v3882, 1.0
        %v3939 = vadd.f32 %v3883, 1.0
        %v3940 = vadd.f32 %v3884, 1.0
        %v3941 = vadd.f32 %v3885, 1.0
        %v3942 = vadd.f32 %v3886, 1.0
        %v3943 = vadd.f32 %v3887, 1.0
        %v3944 = vadd.f32 %v3888, 1.0
        %v3945 = vadd.f32 %v3889, 1.0
        %v3946 = vadd.f32 %v3890, 1.0
        %v3947 = vadd.f32 %v3891, 1.0
        %v3948 = vadd.f32 %v3892, 1.0
        %v3949 = vadd.f32 %v3893, 1.0
        %v3950 = vadd.f32 %v3894, 1.0
        %v3951 = vadd.f32 %v3895, 1.0
        %v3952 = vadd.f32 %v3896, 1.0
        %v3953 = vadd.f32 %v3897, 1.0
        %v3954 = vadd.f32 %v3898, 1.0
        %v3955 = vadd.f32 %v3899, 1.0
        %v3956 = vadd.f32 %v3900, 1.0
        %v3957 = vadd.f32 %v3901, 1.0
        %v3958 = vadd.f32 %v3902, 1.0
        %v3959 = vadd.f32 %v3903, 1.0
        %v3960 = vadd.f32 %v3904, 1.0
        %v3961 = vadd.f32 %v3905, 1.0
        %v3962 = vadd.f32 %v3906, 1.0
        %v3963 = vadd.f32 %v3907, 1.0
        %v3964 = vadd.f32 %v3908, 1.0
        %v3965 = vadd.f32 %v3909, 1.0
        %v3966 = vadd.f32 %v3910, 1.0
        %v3967 = vadd.f32 %v3911, 1.0
        %v3968 = vadd.f32 %v3912, 1.0
        %v3969 = vmul.f32 %v3745, %v3913
        %v3970 = vmul.f32 %v3746, %v3914
        %v3971 = vmul.f32 %v3747, %v3915
        %v3972 = vmul.f32 %v3748, %v3916
        %v3973 = vmul.f32 %v3749, %v3917
        %v3974 = vmul.f32 %v3750, %v3918
        %v3975 = vmul.f32 %v3751, %v3919
        %v3976 = vmul.f32 %v3752, %v3920
        %v3977 = vmul.f32 %v3753, %v3921
        %v3978 = vmul.f32 %v3754, %v3922
        %v3979 = vmul.f32 %v3755, %v3923
        %v3980 = vmul.f32 %v3756, %v3924
        %v3981 = vmul.f32 %v3757, %v3925
        %v3982 = vmul.f32 %v3758, %v3926
        %v3983 = vmul.f32 %v3759, %v3927
        %v3984 = vmul.f32 %v3760, %v3928
        %v3985 = vmul.f32 %v3761, %v3929
        %v3986 = vmul.f32 %v3762, %v3930
        %v3987 = vmul.f32 %v3763, %v3931
        %v3988 = vmul.f32 %v3764, %v3932
        %v3989 = vmul.f32 %v3765, %v3933
        %v3990 = vmul.f32 %v3766, %v3934
        %v3991 = vmul.f32 %v3767, %v3935
        %v3992 = vmul.f32 %v3768, %v3936
        %v3993 = vmul.f32 %v3769, %v3937
        %v3994 = vmul.f32 %v3770, %v3938
        %v3995 = vmul.f32 %v3771, %v3939
        %v3996 = vmul.f32 %v3772, %v3940
        %v3997 = vmul.f32 %v3773, %v3941
        %v3998 = vmul.f32 %v3774, %v3942
        %v3999 = vmul.f32 %v3775, %v3943
        %v4000 = vmul.f32 %v3776, %v3944
        %v4001 = vmul.f32 %v3777, %v3945
        %v4002 = vmul.f32 %v3778, %v3946
        %v4003 = vmul.f32 %v3779, %v3947
        %v4004 = vmul.f32 %v3780, %v3948
        %v4005 = vmul.f32 %v3781, %v3949
        %v4006 = vmul.f32 %v3782, %v3950
        %v4007 = vmul.f32 %v3783, %v3951
        %v4008 = vmul.f32 %v3784, %v3952
        %v4009 = vmul.f32 %v3785, %v3953
        %v4010 = vmul.f32 %v3786, %v3954
        %v4011 = vmul.f32 %v3787, %v3955
        %v4012 = vmul.f32 %v3788, %v3956
        %v4013 = vmul.f32 %v3789, %v3957
        %v4014 = vmul.f32 %v3790, %v3958
        %v4015 = vmul.f32 %v3791, %v3959
        %v4016 = vmul.f32 %v3792, %v3960
        %v4017 = vmul.f32 %v3793, %v3961
        %v4018 = vmul.f32 %v3794, %v3962
        %v4019 = vmul.f32 %v3795, %v3963
        %v4020 = vmul.f32 %v3796, %v3964
        %v4021 = vmul.f32 %v3797, %v3965
        %v4022 = vmul.f32 %v3798, %v3966
        %v4023 = vmul.f32 %v3799, %v3967
        %v4024 = vmul.f32 %v3800, %v3968
        %v4025 = vld [vmem:[#allocation2] sm:$0xff]
        %v4026 = vld [vmem:[#allocation2 + $0x8] sm:$0xff]
        %v4027 = vld [vmem:[#allocation2 + $0x10] sm:$0xff]
        %v4028 = vld [vmem:[#allocation2 + $0x18] sm:$0xff]
        %v4029 = vld [vmem:[#allocation2 + $0x20] sm:$0xff]
        %v4030 = vld [vmem:[#allocation2 + $0x28] sm:$0xff]
        %v4031 = vld [vmem:[#allocation2 + $0x30] sm:$0xff]
        %v4032 = vld [vmem:[#allocation2 + $0x38] sm:$0xff]
        %v4033 = vld [vmem:[#allocation2 + $0x40] sm:$0xff]
        %v4034 = vld [vmem:[#allocation2 + $0x48] sm:$0xff]
        %v4035 = vld [vmem:[#allocation2 + $0x50] sm:$0xff]
        %v4036 = vld [vmem:[#allocation2 + $0x58] sm:$0xff]
        %v4037 = vld [vmem:[#allocation2 + $0x60] sm:$0xff]
        %v4038 = vld [vmem:[#allocation2 + $0x68] sm:$0xff]
        %v4039 = vld [vmem:[#allocation2 + $0x70] sm:$0xff]
        %v4040 = vld [vmem:[#allocation2 + $0x78] sm:$0xff]
        %v4041 = vld [vmem:[#allocation2 + $0x80] sm:$0xff]
        %v4042 = vld [vmem:[#allocation2 + $0x88] sm:$0xff]
        %v4043 = vld [vmem:[#allocation2 + $0x90] sm:$0xff]
        %v4044 = vld [vmem:[#allocation2 + $0x98] sm:$0xff]
        %v4045 = vld [vmem:[#allocation2 + $0xa0] sm:$0xff]
        %v4046 = vld [vmem:[#allocation2 + $0xa8] sm:$0xff]
        %v4047 = vld [vmem:[#allocation2 + $0xb0] sm:$0xff]
        %v4048 = vld [vmem:[#allocation2 + $0xb8] sm:$0xff]
        %v4049 = vld [vmem:[#allocation2 + $0xc0] sm:$0xff]
        %v4050 = vld [vmem:[#allocation2 + $0xc8] sm:$0xff]
        %v4051 = vld [vmem:[#allocation2 + $0xd0] sm:$0xff]
        %v4052 = vld [vmem:[#allocation2 + $0xd8] sm:$0xff]
        %v4053 = vld [vmem:[#allocation2 + $0xe0] sm:$0xff]
        %v4054 = vld [vmem:[#allocation2 + $0xe8] sm:$0xff]
        %v4055 = vld [vmem:[#allocation2 + $0xf0] sm:$0xff]
        %v4056 = vld [vmem:[#allocation2 + $0xf8] sm:$0xff]
        %v4057 = vld [vmem:[#allocation2 + $0x100] sm:$0xff]
        %v4058 = vld [vmem:[#allocation2 + $0x108] sm:$0xff]
        %v4059 = vld [vmem:[#allocation2 + $0x110] sm:$0xff]
        %v4060 = vld [vmem:[#allocation2 + $0x118] sm:$0xff]
        %v4061 = vld [vmem:[#allocation2 + $0x120] sm:$0x1]
        %v4062 = vld [vmem:[#allocation2 + $0x128] sm:$0x1]
        %v4063 = vld [vmem:[#allocation2 + $0x130] sm:$0x1]
        %v4064 = vld [vmem:[#allocation2 + $0x138] sm:$0x1]
        %v4065 = vld [vmem:[#allocation2 + $0x140] sm:$0x1]
        %v4066 = vld [vmem:[#allocation2 + $0x148] sm:$0x1]
        %v4067 = vpack.c.bf16 %v3977, %v3969
        %v4068 = vpack.c.bf16 %v3978, %v3970
        %v4069 = vpack.c.bf16 %v3979, %v3971
        %v4070 = vpack.c.bf16 %v3980, %v3972
        %v4071 = vpack.c.bf16 %v3981, %v3973
        %v4072 = vpack.c.bf16 %v3982, %v3974
        %v4073 = vpack.c.bf16 %v3983, %v3975
        %v4074 = vpack.c.bf16 %v3984, %v3976
        %v4075 = vpack.c.bf16 %v3993, %v3985
        %v4076 = vpack.c.bf16 %v3994, %v3986
        %v4077 = vpack.c.bf16 %v3995, %v3987
        %v4078 = vpack.c.bf16 %v3996, %v3988
        %v4079 = vpack.c.bf16 %v3997, %v3989
        %v4080 = vpack.c.bf16 %v3998, %v3990
        %v4081 = vpack.c.bf16 %v3999, %v3991
        %v4082 = vpack.c.bf16 %v4000, %v3992
        %v4083 = vpack.c.bf16 %v4009, %v4001
        %v4084 = vpack.c.bf16 %v4010, %v4002
        %v4085 = vpack.c.bf16 %v4011, %v4003
        %v4086 = vpack.c.bf16 %v4012, %v4004
        %v4087 = vpack.c.bf16 %v4013, %v4005
        %v4088 = vpack.c.bf16 %v4014, %v4006
        %v4089 = vpack.c.bf16 %v4015, %v4007
        %v4090 = vpack.c.bf16 %v4016, %v4008
        %v4091 = vpack.c.bf16 %v4017, %v4017
        %v4092 = vpack.c.bf16 %v4018, %v4018
        %v4093 = vpack.c.bf16 %v4019, %v4019
        %v4094 = vpack.c.bf16 %v4020, %v4020
        %v4095 = vpack.c.bf16 %v4021, %v4021
        %v4096 = vpack.c.bf16 %v4022, %v4022
        %v4097 = vpack.c.bf16 %v4023, %v4023
        %v4098 = vpack.c.bf16 %v4024, %v4024
        %v4099 = vld [vmem:[%s298] sm:$0xff]
        %v4100 = vld [vmem:[%s298 + $0x8] sm:$0xff]
        %v4101 = vld [vmem:[%s298 + $0x10] sm:$0xff]
        %v4102 = vld [vmem:[%s298 + $0x18] sm:$0xff]
        %v4103 = vld [vmem:[%s298 + $0x20] sm:$0xff]
        %v4104 = vld [vmem:[%s298 + $0x28] sm:$0xff]
        %v4105 = vld [vmem:[%s298 + $0x30] sm:$0xff]
        %v4106 = vld [vmem:[%s298 + $0x38] sm:$0xff]
        %v4107 = vld [vmem:[%s298 + $0x40] sm:$0xff]
        %v4108 = vld [vmem:[%s298 + $0x48] sm:$0xff]
        %v4109 = vld [vmem:[%s298 + $0x50] sm:$0xff]
        %v4110 = vld [vmem:[%s298 + $0x58] sm:$0xff]
        %v4111 = vld [vmem:[%s298 + $0x60] sm:$0xff]
        %v4112 = vld [vmem:[%s298 + $0x68] sm:$0xff]
        %v4113 = vld [vmem:[%s298 + $0x70] sm:$0xff]
        %v4114 = vld [vmem:[%s298 + $0x78] sm:$0xff]
        %v4115 = vld [vmem:[%s298 + $0x80] sm:$0xff]
        %v4116 = vld [vmem:[%s298 + $0x88] sm:$0xff]
        %v4117 = vld [vmem:[%s298 + $0x90] sm:$0xff]
        %v4118 = vld [vmem:[%s298 + $0x98] sm:$0xff]
        %v4119 = vld [vmem:[%s298 + $0xa0] sm:$0xff]
        %v4120 = vld [vmem:[%s298 + $0xa8] sm:$0xff]
        %v4121 = vld [vmem:[%s298 + $0xb0] sm:$0xff]
        %v4122 = vld [vmem:[%s298 + $0xb8] sm:$0xff]
        %v4123 = vld [vmem:[%s298 + $0xc0] sm:$0xff]
        %v4124 = vld [vmem:[%s298 + $0xc8] sm:$0xff]
        %v4125 = vld [vmem:[%s298 + $0xd0] sm:$0xff]
        %v4126 = vld [vmem:[%s298 + $0xd8] sm:$0xff]
        %v4127 = vld [vmem:[%s298 + $0xe0] sm:$0xff]
        %v4128 = vld [vmem:[%s298 + $0xe8] sm:$0xff]
        %v4129 = vld [vmem:[%s298 + $0xf0] sm:$0xff]
        %v4130 = vld [vmem:[%s298 + $0xf8] sm:$0xff]
        %v4131 = vld [vmem:[%s298 + $0x100] sm:$0xff]
        %v4132 = vld [vmem:[%s298 + $0x108] sm:$0xff]
        %v4133 = vld [vmem:[%s298 + $0x110] sm:$0xff]
        %v4134 = vld [vmem:[%s298 + $0x118] sm:$0xff]
        %v4135 = vld [vmem:[%s298 + $0x120] sm:$0xff]
        %v4136 = vld [vmem:[%s298 + $0x128] sm:$0xff]
        %v4137 = vld [vmem:[%s298 + $0x130] sm:$0xff]
        %v4138 = vld [vmem:[%s298 + $0x138] sm:$0xff]
        %v4139 = vld [vmem:[%s298 + $0x140] sm:$0xff]
        %v4140 = vld [vmem:[%s298 + $0x148] sm:$0xff]
        %v4141 = vld [vmem:[%s298 + $0x150] sm:$0xff]
        %v4142 = vld [vmem:[%s298 + $0x158] sm:$0xff]
        %v4143 = vld [vmem:[%s298 + $0x160] sm:$0xff]
        %v4144 = vld [vmem:[%s298 + $0x168] sm:$0xff]
        %v4145 = vld [vmem:[%s298 + $0x170] sm:$0xff]
        %v4146 = vld [vmem:[%s298 + $0x178] sm:$0xff]
        %v4147 = vld [vmem:[%s298 + $0x180] sm:$0xff]
        %v4148 = vld [vmem:[%s298 + $0x188] sm:$0xff]
        %v4149 = vld [vmem:[%s298 + $0x190] sm:$0xff]
        %v4150 = vld [vmem:[%s298 + $0x198] sm:$0xff]
        %v4151 = vld [vmem:[%s298 + $0x1a0] sm:$0xff]
        %v4152 = vld [vmem:[%s298 + $0x1a8] sm:$0xff]
        %v4153 = vld [vmem:[%s298 + $0x1b0] sm:$0xff]
        %v4154 = vld [vmem:[%s298 + $0x1b8] sm:$0xff]
        %v4155 = vld [vmem:[%s298 + $0x1c0] sm:$0xff]
        %v4156 = vld [vmem:[%s298 + $0x1c8] sm:$0xff]
        %v4157 = vld [vmem:[%s298 + $0x1d0] sm:$0xff]
        %v4158 = vld [vmem:[%s298 + $0x1d8] sm:$0xff]
        %v4159 = vld [vmem:[%s298 + $0x1e0] sm:$0xff]
        %v4160 = vld [vmem:[%s298 + $0x1e8] sm:$0xff]
        %v4161 = vld [vmem:[%s298 + $0x1f0] sm:$0xff]
        %v4162 = vld [vmem:[%s298 + $0x1f8] sm:$0xff]
        %v4163 = vld [vmem:[%s298 + $0x200] sm:$0xff]
        %v4164 = vld [vmem:[%s298 + $0x208] sm:$0xff]
        %v4165 = vld [vmem:[%s298 + $0x210] sm:$0xff]
        %v4166 = vld [vmem:[%s298 + $0x218] sm:$0xff]
        %v4167 = vld [vmem:[%s298 + $0x220] sm:$0xff]
        %v4168 = vld [vmem:[%s298 + $0x228] sm:$0xff]
        %v4169 = vld [vmem:[%s298 + $0x230] sm:$0xff]
        %v4170 = vld [vmem:[%s298 + $0x238] sm:$0xff]
        %v4171 = vld [vmem:[%s298 + $0x240] sm:$0xff]
        %v4172 = vld [vmem:[%s298 + $0x248] sm:$0xff]
        %v4173 = vld [vmem:[%s298 + $0x250] sm:$0xff]
        %v4174 = vld [vmem:[%s298 + $0x258] sm:$0xff]
        %v4175 = vld [vmem:[%s298 + $0x260] sm:$0xff]
        %v4176 = vld [vmem:[%s298 + $0x268] sm:$0xff]
        %v4177 = vld [vmem:[%s298 + $0x270] sm:$0xff]
        %v4178 = vld [vmem:[%s298 + $0x278] sm:$0xff]
        %v4179 = vld [vmem:[%s298 + $0x280] sm:$0xff]
        %v4180 = vld [vmem:[%s298 + $0x288] sm:$0xff]
        %v4181 = vld [vmem:[%s298 + $0x290] sm:$0xff]
        %v4182 = vld [vmem:[%s298 + $0x298] sm:$0xff]
        %v4183 = vld [vmem:[%s298 + $0x2a0] sm:$0xff]
        %v4184 = vld [vmem:[%s298 + $0x2a8] sm:$0xff]
        %v4185 = vld [vmem:[%s298 + $0x2b0] sm:$0xff]
        %v4186 = vld [vmem:[%s298 + $0x2b8] sm:$0xff]
        %v4187 = vld [vmem:[%s298 + $0x2c0] sm:$0xff]
        %v4188 = vld [vmem:[%s298 + $0x2c8] sm:$0xff]
        %v4189 = vld [vmem:[%s298 + $0x2d0] sm:$0xff]
        %v4190 = vld [vmem:[%s298 + $0x2d8] sm:$0xff]
        %v4191 = vld [vmem:[%s298 + $0x2e0] sm:$0xff]
        %v4192 = vld [vmem:[%s298 + $0x2e8] sm:$0xff]
        %v4193 = vld [vmem:[%s298 + $0x2f0] sm:$0xff]
        %v4194 = vld [vmem:[%s298 + $0x2f8] sm:$0xff]
        %v4195 = vld [vmem:[%s298 + $0x300] sm:$0xff]
        %v4196 = vld [vmem:[%s298 + $0x308] sm:$0xff]
        %v4197 = vld [vmem:[%s298 + $0x310] sm:$0xff]
        %v4198 = vld [vmem:[%s298 + $0x318] sm:$0xff]
        %v4199 = vld [vmem:[%s298 + $0x320] sm:$0xff]
        %v4200 = vld [vmem:[%s298 + $0x328] sm:$0xff]
        %v4201 = vld [vmem:[%s298 + $0x330] sm:$0xff]
        %v4202 = vld [vmem:[%s298 + $0x338] sm:$0xff]
        %v4203 = vld [vmem:[%s298 + $0x340] sm:$0xff]
        %v4204 = vld [vmem:[%s298 + $0x348] sm:$0xff]
        %v4205 = vld [vmem:[%s298 + $0x350] sm:$0xff]
        %v4206 = vld [vmem:[%s298 + $0x358] sm:$0xff]
        %v4207 = vld [vmem:[%s298 + $0x360] sm:$0xff]
        %v4208 = vld [vmem:[%s298 + $0x368] sm:$0xff]
        %v4209 = vld [vmem:[%s298 + $0x370] sm:$0xff]
        %v4210 = vld [vmem:[%s298 + $0x378] sm:$0xff]
        %v4211 = vld [vmem:[%s298 + $0x380] sm:$0xff]
        %v4212 = vld [vmem:[%s298 + $0x388] sm:$0xff]
        %v4213 = vld [vmem:[%s298 + $0x390] sm:$0xff]
        %v4214 = vld [vmem:[%s298 + $0x398] sm:$0xff]
        %v4215 = vld [vmem:[%s298 + $0x3a0] sm:$0xff]
        %v4216 = vld [vmem:[%s298 + $0x3a8] sm:$0xff]
        %v4217 = vld [vmem:[%s298 + $0x3b0] sm:$0xff]
        %v4218 = vld [vmem:[%s298 + $0x3b8] sm:$0xff]
        %v4219 = vld [vmem:[%s298 + $0x3c0] sm:$0xff]
        %v4220 = vld [vmem:[%s298 + $0x3c8] sm:$0xff]
        %v4221 = vld [vmem:[%s298 + $0x3d0] sm:$0xff]
        %v4222 = vld [vmem:[%s298 + $0x3d8] sm:$0xff]
        %v4223 = vld [vmem:[%s298 + $0x3e0] sm:$0xff]
        %v4224 = vld [vmem:[%s298 + $0x3e8] sm:$0xff]
        %v4225 = vld [vmem:[%s298 + $0x3f0] sm:$0xff]
        %v4226 = vld [vmem:[%s298 + $0x3f8] sm:$0xff]
        %v4227 = vld [vmem:[%s298 + $0x400] sm:$0xff]
        %v4228 = vld [vmem:[%s298 + $0x408] sm:$0xff]
        %v4229 = vld [vmem:[%s298 + $0x410] sm:$0xff]
        %v4230 = vld [vmem:[%s298 + $0x418] sm:$0xff]
        %v4231 = vld [vmem:[%s298 + $0x420] sm:$0xff]
        %v4232 = vld [vmem:[%s298 + $0x428] sm:$0xff]
        %v4233 = vld [vmem:[%s298 + $0x430] sm:$0xff]
        %v4234 = vld [vmem:[%s298 + $0x438] sm:$0xff]
        %v4235 = vld [vmem:[%s298 + $0x440] sm:$0xff]
        %v4236 = vld [vmem:[%s298 + $0x448] sm:$0xff]
        %v4237 = vld [vmem:[%s298 + $0x450] sm:$0xff]
        %v4238 = vld [vmem:[%s298 + $0x458] sm:$0xff]
        %v4239 = vld [vmem:[%s298 + $0x460] sm:$0xff]
        %v4240 = vld [vmem:[%s298 + $0x468] sm:$0xff]
        %v4241 = vld [vmem:[%s298 + $0x470] sm:$0xff]
        %v4242 = vld [vmem:[%s298 + $0x478] sm:$0xff]
        %v4243 = vld [vmem:[%s298 + $0x480] sm:$0xff]
        %v4244 = vld [vmem:[%s298 + $0x488] sm:$0xff]
        %v4245 = vld [vmem:[%s298 + $0x490] sm:$0xff]
        %v4246 = vld [vmem:[%s298 + $0x498] sm:$0xff]
        %v4247 = vld [vmem:[%s298 + $0x4a0] sm:$0xff]
        %v4248 = vld [vmem:[%s298 + $0x4a8] sm:$0xff]
        %v4249 = vld [vmem:[%s298 + $0x4b0] sm:$0xff]
        %v4250 = vld [vmem:[%s298 + $0x4b8] sm:$0xff]
        %v4251 = vld [vmem:[%s298 + $0x4c0] sm:$0xff]
        %v4252 = vld [vmem:[%s298 + $0x4c8] sm:$0xff]
        %v4253 = vld [vmem:[%s298 + $0x4d0] sm:$0xff]
        %v4254 = vld [vmem:[%s298 + $0x4d8] sm:$0xff]
        %v4255 = vld [vmem:[%s298 + $0x4e0] sm:$0xff]
        %v4256 = vld [vmem:[%s298 + $0x4e8] sm:$0xff]
        %v4257 = vld [vmem:[%s298 + $0x4f0] sm:$0xff]
        %v4258 = vld [vmem:[%s298 + $0x4f8] sm:$0xff]
        %v4259 = vld [vmem:[%s298 + $0x500] sm:$0xff]
        %v4260 = vld [vmem:[%s298 + $0x508] sm:$0xff]
        %v4261 = vld [vmem:[%s298 + $0x510] sm:$0xff]
        %v4262 = vld [vmem:[%s298 + $0x518] sm:$0xff]
        %v4263 = vld [vmem:[%s298 + $0x520] sm:$0xff]
        %v4264 = vld [vmem:[%s298 + $0x528] sm:$0xff]
        %v4265 = vld [vmem:[%s298 + $0x530] sm:$0xff]
        %v4266 = vld [vmem:[%s298 + $0x538] sm:$0xff]
        %v4267 = vld [vmem:[%s298 + $0x540] sm:$0xff]
        %v4268 = vld [vmem:[%s298 + $0x548] sm:$0xff]
        %v4269 = vld [vmem:[%s298 + $0x550] sm:$0xff]
        %v4270 = vld [vmem:[%s298 + $0x558] sm:$0xff]
        %v4271 = vld [vmem:[%s298 + $0x560] sm:$0xff]
        %v4272 = vld [vmem:[%s298 + $0x568] sm:$0xff]
        %v4273 = vld [vmem:[%s298 + $0x570] sm:$0xff]
        %v4274 = vld [vmem:[%s298 + $0x578] sm:$0xff]
        %v4275 = vld [vmem:[%s298 + $0x580] sm:$0xff]
        %v4276 = vld [vmem:[%s298 + $0x588] sm:$0xff]
        %v4277 = vld [vmem:[%s298 + $0x590] sm:$0xff]
        %v4278 = vld [vmem:[%s298 + $0x598] sm:$0xff]
        %v4279 = vld [vmem:[%s298 + $0x5a0] sm:$0xff]
        %v4280 = vld [vmem:[%s298 + $0x5a8] sm:$0xff]
        %v4281 = vld [vmem:[%s298 + $0x5b0] sm:$0xff]
        %v4282 = vld [vmem:[%s298 + $0x5b8] sm:$0xff]
        %v4283 = vld [vmem:[%s298 + $0x5c0] sm:$0xff]
        %v4284 = vld [vmem:[%s298 + $0x5c8] sm:$0xff]
        %v4285 = vld [vmem:[%s298 + $0x5d0] sm:$0xff]
        %v4286 = vld [vmem:[%s298 + $0x5d8] sm:$0xff]
        %v4287 = vld [vmem:[%s298 + $0x5e0] sm:$0xff]
        %v4288 = vld [vmem:[%s298 + $0x5e8] sm:$0xff]
        %v4289 = vld [vmem:[%s298 + $0x5f0] sm:$0xff]
        %v4290 = vld [vmem:[%s298 + $0x5f8] sm:$0xff]
        %v4291 = vld [vmem:[%s298 + $0x600] sm:$0xff]
        %v4292 = vld [vmem:[%s298 + $0x608] sm:$0xff]
        %v4293 = vld [vmem:[%s298 + $0x610] sm:$0xff]
        %v4294 = vld [vmem:[%s298 + $0x618] sm:$0xff]
        %v4295 = vld [vmem:[%s298 + $0x620] sm:$0xff]
        %v4296 = vld [vmem:[%s298 + $0x628] sm:$0xff]
        %v4297 = vld [vmem:[%s298 + $0x630] sm:$0xff]
        %v4298 = vld [vmem:[%s298 + $0x638] sm:$0xff]
        %v4299 = vld [vmem:[%s298 + $0x640] sm:$0xff]
        %v4300 = vld [vmem:[%s298 + $0x648] sm:$0xff]
        %v4301 = vld [vmem:[%s298 + $0x650] sm:$0xff]
        %v4302 = vld [vmem:[%s298 + $0x658] sm:$0xff]
        %v4303 = vld [vmem:[%s298 + $0x660] sm:$0xff]
        %v4304 = vld [vmem:[%s298 + $0x668] sm:$0xff]
        %v4305 = vld [vmem:[%s298 + $0x670] sm:$0xff]
        %v4306 = vld [vmem:[%s298 + $0x678] sm:$0xff]
        %v4307 = vld [vmem:[%s298 + $0x680] sm:$0xff]
        %v4308 = vld [vmem:[%s298 + $0x688] sm:$0xff]
        %v4309 = vld [vmem:[%s298 + $0x690] sm:$0xff]
        %v4310 = vld [vmem:[%s298 + $0x698] sm:$0xff]
        %v4311 = vld [vmem:[%s298 + $0x6a0] sm:$0xff]
        %v4312 = vld [vmem:[%s298 + $0x6a8] sm:$0xff]
        %v4313 = vld [vmem:[%s298 + $0x6b0] sm:$0xff]
        %v4314 = vld [vmem:[%s298 + $0x6b8] sm:$0xff]
        %v4315 = vld [vmem:[%s298 + $0x6c0] sm:$0xff]
        %v4316 = vld [vmem:[%s298 + $0x6c8] sm:$0xff]
        %v4317 = vld [vmem:[%s298 + $0x6d0] sm:$0xff]
        %v4318 = vld [vmem:[%s298 + $0x6d8] sm:$0xff]
        %v4319 = vld [vmem:[%s298 + $0x6e0] sm:$0xff]
        %v4320 = vld [vmem:[%s298 + $0x6e8] sm:$0xff]
        %v4321 = vld [vmem:[%s298 + $0x6f0] sm:$0xff]
        %v4322 = vld [vmem:[%s298 + $0x6f8] sm:$0xff]
        %v4323 = vld [vmem:[%s298 + $0x700] sm:$0xff]
        %v4324 = vld [vmem:[%s298 + $0x708] sm:$0xff]
        %v4325 = vld [vmem:[%s298 + $0x710] sm:$0xff]
        %v4326 = vld [vmem:[%s298 + $0x718] sm:$0xff]
        %v4327 = vld [vmem:[%s298 + $0x720] sm:$0xff]
        %v4328 = vld [vmem:[%s298 + $0x728] sm:$0xff]
        %v4329 = vld [vmem:[%s298 + $0x730] sm:$0xff]
        %v4330 = vld [vmem:[%s298 + $0x738] sm:$0xff]
        %v4331 = vld [vmem:[%s298 + $0x740] sm:$0xff]
        %v4332 = vld [vmem:[%s298 + $0x748] sm:$0xff]
        %v4333 = vld [vmem:[%s298 + $0x750] sm:$0xff]
        %v4334 = vld [vmem:[%s298 + $0x758] sm:$0xff]
        %v4335 = vld [vmem:[%s298 + $0x760] sm:$0xff]
        %v4336 = vld [vmem:[%s298 + $0x768] sm:$0xff]
        %v4337 = vld [vmem:[%s298 + $0x770] sm:$0xff]
        %v4338 = vld [vmem:[%s298 + $0x778] sm:$0xff]
        %v4339 = vld [vmem:[%s298 + $0x780] sm:$0xff]
        %v4340 = vld [vmem:[%s298 + $0x788] sm:$0xff]
        %v4341 = vld [vmem:[%s298 + $0x790] sm:$0xff]
        %v4342 = vld [vmem:[%s298 + $0x798] sm:$0xff]
        %v4343 = vld [vmem:[%s298 + $0x7a0] sm:$0xff]
        %v4344 = vld [vmem:[%s298 + $0x7a8] sm:$0xff]
        %v4345 = vld [vmem:[%s298 + $0x7b0] sm:$0xff]
        %v4346 = vld [vmem:[%s298 + $0x7b8] sm:$0xff]
        %v4347 = vld [vmem:[%s298 + $0x7c0] sm:$0xff]
        %v4348 = vld [vmem:[%s298 + $0x7c8] sm:$0xff]
        %v4349 = vld [vmem:[%s298 + $0x7d0] sm:$0xff]
        %v4350 = vld [vmem:[%s298 + $0x7d8] sm:$0xff]
        %v4351 = vld [vmem:[%s298 + $0x7e0] sm:$0xff]
        %v4352 = vld [vmem:[%s298 + $0x7e8] sm:$0xff]
        %v4353 = vld [vmem:[%s298 + $0x7f0] sm:$0xff]
        %v4354 = vld [vmem:[%s298 + $0x7f8] sm:$0xff]
        %v4355 = vld [vmem:[%s298 + $0x800] sm:$0xff]
        %v4356 = vld [vmem:[%s298 + $0x808] sm:$0xff]
        %v4357 = vld [vmem:[%s298 + $0x810] sm:$0xff]
        %v4358 = vld [vmem:[%s298 + $0x818] sm:$0xff]
        %v4359 = vld [vmem:[%s298 + $0x820] sm:$0xff]
        %v4360 = vld [vmem:[%s298 + $0x828] sm:$0xff]
        %v4361 = vld [vmem:[%s298 + $0x830] sm:$0xff]
        %v4362 = vld [vmem:[%s298 + $0x838] sm:$0xff]
        %v4363 = vld [vmem:[%s298 + $0x840] sm:$0xff]
        %v4364 = vld [vmem:[%s298 + $0x848] sm:$0xff]
        %v4365 = vld [vmem:[%s298 + $0x850] sm:$0xff]
        %v4366 = vld [vmem:[%s298 + $0x858] sm:$0xff]
        %v4367 = vld [vmem:[%s298 + $0x860] sm:$0xff]
        %v4368 = vld [vmem:[%s298 + $0x868] sm:$0xff]
        %v4369 = vld [vmem:[%s298 + $0x870] sm:$0xff]
        %v4370 = vld [vmem:[%s298 + $0x878] sm:$0xff]
        %v4371 = vld [vmem:[%s298 + $0x880] sm:$0xff]
        %v4372 = vld [vmem:[%s298 + $0x888] sm:$0xff]
        %v4373 = vld [vmem:[%s298 + $0x890] sm:$0xff]
        %v4374 = vld [vmem:[%s298 + $0x898] sm:$0xff]
        %v4375 = vld [vmem:[%s298 + $0x8a0] sm:$0xff]
        %v4376 = vld [vmem:[%s298 + $0x8a8] sm:$0xff]
        %v4377 = vld [vmem:[%s298 + $0x8b0] sm:$0xff]
        %v4378 = vld [vmem:[%s298 + $0x8b8] sm:$0xff]
        %v4379 = vld [vmem:[%s298 + $0x8c0] sm:$0xff]
        %v4380 = vld [vmem:[%s298 + $0x8c8] sm:$0xff]
        %v4381 = vld [vmem:[%s298 + $0x8d0] sm:$0xff]
        %v4382 = vld [vmem:[%s298 + $0x8d8] sm:$0xff]
        %v4383 = vld [vmem:[%s298 + $0x8e0] sm:$0xff]
        %v4384 = vld [vmem:[%s298 + $0x8e8] sm:$0xff]
        %v4385 = vld [vmem:[%s298 + $0x8f0] sm:$0xff]
        %v4386 = vld [vmem:[%s298 + $0x8f8] sm:$0xff]
        %v4387 = vld [vmem:[%s298 + $0x900] sm:$0xff]
        %v4388 = vld [vmem:[%s298 + $0x908] sm:$0xff]
        %v4389 = vld [vmem:[%s298 + $0x910] sm:$0xff]
        %v4390 = vld [vmem:[%s298 + $0x918] sm:$0xff]
        %v4391 = vld [vmem:[%s298 + $0x920] sm:$0xff]
        %v4392 = vld [vmem:[%s298 + $0x928] sm:$0xff]
        %v4393 = vld [vmem:[%s298 + $0x930] sm:$0xff]
        %v4394 = vld [vmem:[%s298 + $0x938] sm:$0xff]
        %v4395 = vld [vmem:[%s298 + $0x940] sm:$0xff]
        %v4396 = vld [vmem:[%s298 + $0x948] sm:$0xff]
        %v4397 = vld [vmem:[%s298 + $0x950] sm:$0xff]
        %v4398 = vld [vmem:[%s298 + $0x958] sm:$0xff]
        %v4399 = vld [vmem:[%s298 + $0x960] sm:$0xff]
        %v4400 = vld [vmem:[%s298 + $0x968] sm:$0xff]
        %v4401 = vld [vmem:[%s298 + $0x970] sm:$0xff]
        %v4402 = vld [vmem:[%s298 + $0x978] sm:$0xff]
        %v4403 = vld [vmem:[%s298 + $0x980] sm:$0xff]
        %v4404 = vld [vmem:[%s298 + $0x988] sm:$0xff]
        %v4405 = vld [vmem:[%s298 + $0x990] sm:$0xff]
        %v4406 = vld [vmem:[%s298 + $0x998] sm:$0xff]
        %v4407 = vld [vmem:[%s298 + $0x9a0] sm:$0xff]
        %v4408 = vld [vmem:[%s298 + $0x9a8] sm:$0xff]
        %v4409 = vld [vmem:[%s298 + $0x9b0] sm:$0xff]
        %v4410 = vld [vmem:[%s298 + $0x9b8] sm:$0xff]
        %v4411 = vld [vmem:[%s298 + $0x9c0] sm:$0xff]
        %v4412 = vld [vmem:[%s298 + $0x9c8] sm:$0xff]
        %v4413 = vld [vmem:[%s298 + $0x9d0] sm:$0xff]
        %v4414 = vld [vmem:[%s298 + $0x9d8] sm:$0xff]
        %v4415 = vld [vmem:[%s298 + $0x9e0] sm:$0xff]
        %v4416 = vld [vmem:[%s298 + $0x9e8] sm:$0xff]
        %v4417 = vld [vmem:[%s298 + $0x9f0] sm:$0xff]
        %v4418 = vld [vmem:[%s298 + $0x9f8] sm:$0xff]
        %v4419 = vld [vmem:[%s298 + $0xa00] sm:$0xff]
        %v4420 = vld [vmem:[%s298 + $0xa08] sm:$0xff]
        %v4421 = vld [vmem:[%s298 + $0xa10] sm:$0xff]
        %v4422 = vld [vmem:[%s298 + $0xa18] sm:$0xff]
        %v4423 = vld [vmem:[%s298 + $0xa20] sm:$0xff]
        %v4424 = vld [vmem:[%s298 + $0xa28] sm:$0xff]
        %v4425 = vld [vmem:[%s298 + $0xa30] sm:$0xff]
        %v4426 = vld [vmem:[%s298 + $0xa38] sm:$0xff]
        %v4427 = vld [vmem:[%s298 + $0xa40] sm:$0xff]
        %v4428 = vld [vmem:[%s298 + $0xa48] sm:$0xff]
        %v4429 = vld [vmem:[%s298 + $0xa50] sm:$0xff]
        %v4430 = vld [vmem:[%s298 + $0xa58] sm:$0xff]
        %v4431 = vld [vmem:[%s298 + $0xa60] sm:$0xff]
        %v4432 = vld [vmem:[%s298 + $0xa68] sm:$0xff]
        %v4433 = vld [vmem:[%s298 + $0xa70] sm:$0xff]
        %v4434 = vld [vmem:[%s298 + $0xa78] sm:$0xff]
        %v4435 = vld [vmem:[%s298 + $0xa80] sm:$0xff]
        %v4436 = vld [vmem:[%s298 + $0xa88] sm:$0xff]
        %v4437 = vld [vmem:[%s298 + $0xa90] sm:$0xff]
        %v4438 = vld [vmem:[%s298 + $0xa98] sm:$0xff]
        %v4439 = vld [vmem:[%s298 + $0xaa0] sm:$0xff]
        %v4440 = vld [vmem:[%s298 + $0xaa8] sm:$0xff]
        %v4441 = vld [vmem:[%s298 + $0xab0] sm:$0xff]
        %v4442 = vld [vmem:[%s298 + $0xab8] sm:$0xff]
        %v4443 = vld [vmem:[%s298 + $0xac0] sm:$0xff]
        %v4444 = vld [vmem:[%s298 + $0xac8] sm:$0xff]
        %v4445 = vld [vmem:[%s298 + $0xad0] sm:$0xff]
        %v4446 = vld [vmem:[%s298 + $0xad8] sm:$0xff]
        %v4447 = vld [vmem:[%s298 + $0xae0] sm:$0xff]
        %v4448 = vld [vmem:[%s298 + $0xae8] sm:$0xff]
        %v4449 = vld [vmem:[%s298 + $0xaf0] sm:$0xff]
        %v4450 = vld [vmem:[%s298 + $0xaf8] sm:$0xff]
        %v4451 = vld [vmem:[%s298 + $0xb00] sm:$0xff]
        %v4452 = vld [vmem:[%s298 + $0xb08] sm:$0xff]
        %v4453 = vld [vmem:[%s298 + $0xb10] sm:$0xff]
        %v4454 = vld [vmem:[%s298 + $0xb18] sm:$0xff]
        %v4455 = vld [vmem:[%s298 + $0xb20] sm:$0xff]
        %v4456 = vld [vmem:[%s298 + $0xb28] sm:$0xff]
        %v4457 = vld [vmem:[%s298 + $0xb30] sm:$0xff]
        %v4458 = vld [vmem:[%s298 + $0xb38] sm:$0xff]
        %v4459 = vld [vmem:[%s298 + $0xb40] sm:$0xff]
        %v4460 = vld [vmem:[%s298 + $0xb48] sm:$0xff]
        %v4461 = vld [vmem:[%s298 + $0xb50] sm:$0xff]
        %v4462 = vld [vmem:[%s298 + $0xb58] sm:$0xff]
        %v4463 = vld [vmem:[%s298 + $0xb60] sm:$0xff]
        %v4464 = vld [vmem:[%s298 + $0xb68] sm:$0xff]
        %v4465 = vld [vmem:[%s298 + $0xb70] sm:$0xff]
        %v4466 = vld [vmem:[%s298 + $0xb78] sm:$0xff]
        %v4467 = vld [vmem:[%s298 + $0xb80] sm:$0xff]
        %v4468 = vld [vmem:[%s298 + $0xb88] sm:$0xff]
        %v4469 = vld [vmem:[%s298 + $0xb90] sm:$0xff]
        %v4470 = vld [vmem:[%s298 + $0xb98] sm:$0xff]
        %v4471 = vld [vmem:[%s298 + $0xba0] sm:$0xff]
        %v4472 = vld [vmem:[%s298 + $0xba8] sm:$0xff]
        %v4473 = vld [vmem:[%s298 + $0xbb0] sm:$0xff]
        %v4474 = vld [vmem:[%s298 + $0xbb8] sm:$0xff]
        %v4475 = vld [vmem:[%s298 + $0xbc0] sm:$0xff]
        %v4476 = vld [vmem:[%s298 + $0xbc8] sm:$0xff]
        %v4477 = vld [vmem:[%s298 + $0xbd0] sm:$0xff]
        %v4478 = vld [vmem:[%s298 + $0xbd8] sm:$0xff]
        %v4479 = vld [vmem:[%s298 + $0xbe0] sm:$0xff]
        %v4480 = vld [vmem:[%s298 + $0xbe8] sm:$0xff]
        %v4481 = vld [vmem:[%s298 + $0xbf0] sm:$0xff]
        %v4482 = vld [vmem:[%s298 + $0xbf8] sm:$0xff]
        %v4867 = vunpack.c.l.b16 %v4099
        %v4868 = vunpack.c.h.b16 %v4099
        %v4869 = vunpack.c.l.b16 %v4100
        %v4870 = vunpack.c.h.b16 %v4100
        %v4871 = vunpack.c.l.b16 %v4101
        %v4872 = vunpack.c.h.b16 %v4101
        %v4873 = vunpack.c.l.b16 %v4102
        %v4874 = vunpack.c.h.b16 %v4102
        %v4875 = vunpack.c.l.b16 %v4103
        %v4876 = vunpack.c.h.b16 %v4103
        %v4877 = vunpack.c.l.b16 %v4104
        %v4878 = vunpack.c.h.b16 %v4104
        %v4879 = vunpack.c.l.b16 %v4105
        %v4880 = vunpack.c.h.b16 %v4105
        %v4881 = vunpack.c.l.b16 %v4106
        %v4882 = vunpack.c.h.b16 %v4106
        %v4883 = vunpack.c.l.b16 %v4107
        %v4884 = vunpack.c.h.b16 %v4107
        %v4885 = vunpack.c.l.b16 %v4108
        %v4886 = vunpack.c.h.b16 %v4108
        %v4887 = vunpack.c.l.b16 %v4109
        %v4888 = vunpack.c.h.b16 %v4109
        %v4889 = vunpack.c.l.b16 %v4110
        %v4890 = vunpack.c.h.b16 %v4110
        %v4891 = vunpack.c.l.b16 %v4111
        %v4892 = vunpack.c.h.b16 %v4111
        %v4893 = vunpack.c.l.b16 %v4112
        %v4894 = vunpack.c.h.b16 %v4112
        %v4895 = vunpack.c.l.b16 %v4113
        %v4896 = vunpack.c.h.b16 %v4113
        %v4897 = vunpack.c.l.b16 %v4114
        %v4898 = vunpack.c.h.b16 %v4114
        %v4899 = vunpack.c.l.b16 %v4115
        %v4900 = vunpack.c.h.b16 %v4115
        %v4901 = vunpack.c.l.b16 %v4116
        %v4902 = vunpack.c.h.b16 %v4116
        %v4903 = vunpack.c.l.b16 %v4117
        %v4904 = vunpack.c.h.b16 %v4117
        %v4905 = vunpack.c.l.b16 %v4118
        %v4906 = vunpack.c.h.b16 %v4118
        %v4907 = vunpack.c.l.b16 %v4119
        %v4908 = vunpack.c.h.b16 %v4119
        %v4909 = vunpack.c.l.b16 %v4120
        %v4910 = vunpack.c.h.b16 %v4120
        %v4911 = vunpack.c.l.b16 %v4121
        %v4912 = vunpack.c.h.b16 %v4121
        %v4913 = vunpack.c.l.b16 %v4122
        %v4914 = vunpack.c.h.b16 %v4122
        %v4915 = vunpack.c.l.b16 %v4123
        %v4916 = vunpack.c.h.b16 %v4123
        %v4917 = vunpack.c.l.b16 %v4124
        %v4918 = vunpack.c.h.b16 %v4124
        %v4919 = vunpack.c.l.b16 %v4125
        %v4920 = vunpack.c.h.b16 %v4125
        %v4921 = vunpack.c.l.b16 %v4126
        %v4922 = vunpack.c.h.b16 %v4126
        %v4923 = vunpack.c.l.b16 %v4127
        %v4924 = vunpack.c.h.b16 %v4127
        %v4925 = vunpack.c.l.b16 %v4128
        %v4926 = vunpack.c.h.b16 %v4128
        %v4927 = vunpack.c.l.b16 %v4129
        %v4928 = vunpack.c.h.b16 %v4129
        %v4929 = vunpack.c.l.b16 %v4130
        %v4930 = vunpack.c.h.b16 %v4130
        %v4931 = vunpack.c.l.b16 %v4131
        %v4932 = vunpack.c.h.b16 %v4131
        %v4933 = vunpack.c.l.b16 %v4132
        %v4934 = vunpack.c.h.b16 %v4132
        %v4935 = vunpack.c.l.b16 %v4133
        %v4936 = vunpack.c.h.b16 %v4133
        %v4937 = vunpack.c.l.b16 %v4134
        %v4938 = vunpack.c.h.b16 %v4134
        %v4939 = vunpack.c.l.b16 %v4135
        %v4940 = vunpack.c.h.b16 %v4135
        %v4941 = vunpack.c.l.b16 %v4136
        %v4942 = vunpack.c.h.b16 %v4136
        %v4943 = vunpack.c.l.b16 %v4137
        %v4944 = vunpack.c.h.b16 %v4137
        %v4945 = vunpack.c.l.b16 %v4138
        %v4946 = vunpack.c.h.b16 %v4138
        %v4947 = vunpack.c.l.b16 %v4139
        %v4948 = vunpack.c.h.b16 %v4139
        %v4949 = vunpack.c.l.b16 %v4140
        %v4950 = vunpack.c.h.b16 %v4140
        %v4951 = vunpack.c.l.b16 %v4141
        %v4952 = vunpack.c.h.b16 %v4141
        %v4953 = vunpack.c.l.b16 %v4142
        %v4954 = vunpack.c.h.b16 %v4142
        %v4955 = vunpack.c.l.b16 %v4143
        %v4956 = vunpack.c.h.b16 %v4143
        %v4957 = vunpack.c.l.b16 %v4144
        %v4958 = vunpack.c.h.b16 %v4144
        %v4959 = vunpack.c.l.b16 %v4145
        %v4960 = vunpack.c.h.b16 %v4145
        %v4961 = vunpack.c.l.b16 %v4146
        %v4962 = vunpack.c.h.b16 %v4146
        %v4963 = vunpack.c.l.b16 %v4147
        %v4964 = vunpack.c.h.b16 %v4147
        %v4965 = vunpack.c.l.b16 %v4148
        %v4966 = vunpack.c.h.b16 %v4148
        %v4967 = vunpack.c.l.b16 %v4149
        %v4968 = vunpack.c.h.b16 %v4149
        %v4969 = vunpack.c.l.b16 %v4150
        %v4970 = vunpack.c.h.b16 %v4150
        %v4971 = vunpack.c.l.b16 %v4151
        %v4972 = vunpack.c.h.b16 %v4151
        %v4973 = vunpack.c.l.b16 %v4152
        %v4974 = vunpack.c.h.b16 %v4152
        %v4975 = vunpack.c.l.b16 %v4153
        %v4976 = vunpack.c.h.b16 %v4153
        %v4977 = vunpack.c.l.b16 %v4154
        %v4978 = vunpack.c.h.b16 %v4154
        %v4979 = vunpack.c.l.b16 %v4155
        %v4980 = vunpack.c.h.b16 %v4155
        %v4981 = vunpack.c.l.b16 %v4156
        %v4982 = vunpack.c.h.b16 %v4156
        %v4983 = vunpack.c.l.b16 %v4157
        %v4984 = vunpack.c.h.b16 %v4157
        %v4985 = vunpack.c.l.b16 %v4158
        %v4986 = vunpack.c.h.b16 %v4158
        %v4987 = vunpack.c.l.b16 %v4159
        %v4988 = vunpack.c.h.b16 %v4159
        %v4989 = vunpack.c.l.b16 %v4160
        %v4990 = vunpack.c.h.b16 %v4160
        %v4991 = vunpack.c.l.b16 %v4161
        %v4992 = vunpack.c.h.b16 %v4161
        %v4993 = vunpack.c.l.b16 %v4162
        %v4994 = vunpack.c.h.b16 %v4162
        %v4995 = vunpack.c.l.b16 %v4163
        %v4996 = vunpack.c.h.b16 %v4163
        %v4997 = vunpack.c.l.b16 %v4164
        %v4998 = vunpack.c.h.b16 %v4164
        %v4999 = vunpack.c.l.b16 %v4165
        %v5000 = vunpack.c.h.b16 %v4165
        %v5001 = vunpack.c.l.b16 %v4166
        %v5002 = vunpack.c.h.b16 %v4166
        %v5003 = vunpack.c.l.b16 %v4167
        %v5004 = vunpack.c.h.b16 %v4167
        %v5005 = vunpack.c.l.b16 %v4168
        %v5006 = vunpack.c.h.b16 %v4168
        %v5007 = vunpack.c.l.b16 %v4169
        %v5008 = vunpack.c.h.b16 %v4169
        %v5009 = vunpack.c.l.b16 %v4170
        %v5010 = vunpack.c.h.b16 %v4170
        %v5011 = vunpack.c.l.b16 %v4171
        %v5012 = vunpack.c.h.b16 %v4171
        %v5013 = vunpack.c.l.b16 %v4172
        %v5014 = vunpack.c.h.b16 %v4172
        %v5015 = vunpack.c.l.b16 %v4173
        %v5016 = vunpack.c.h.b16 %v4173
        %v5017 = vunpack.c.l.b16 %v4174
        %v5018 = vunpack.c.h.b16 %v4174
        %v5019 = vunpack.c.l.b16 %v4175
        %v5020 = vunpack.c.h.b16 %v4175
        %v5021 = vunpack.c.l.b16 %v4176
        %v5022 = vunpack.c.h.b16 %v4176
        %v5023 = vunpack.c.l.b16 %v4177
        %v5024 = vunpack.c.h.b16 %v4177
        %v5025 = vunpack.c.l.b16 %v4178
        %v5026 = vunpack.c.h.b16 %v4178
        %v5027 = vunpack.c.l.b16 %v4179
        %v5028 = vunpack.c.h.b16 %v4179
        %v5029 = vunpack.c.l.b16 %v4180
        %v5030 = vunpack.c.h.b16 %v4180
        %v5031 = vunpack.c.l.b16 %v4181
        %v5032 = vunpack.c.h.b16 %v4181
        %v5033 = vunpack.c.l.b16 %v4182
        %v5034 = vunpack.c.h.b16 %v4182
        %v5035 = vunpack.c.l.b16 %v4183
        %v5036 = vunpack.c.h.b16 %v4183
        %v5037 = vunpack.c.l.b16 %v4184
        %v5038 = vunpack.c.h.b16 %v4184
        %v5039 = vunpack.c.l.b16 %v4185
        %v5040 = vunpack.c.h.b16 %v4185
        %v5041 = vunpack.c.l.b16 %v4186
        %v5042 = vunpack.c.h.b16 %v4186
        %v5043 = vunpack.c.l.b16 %v4187
        %v5044 = vunpack.c.h.b16 %v4187
        %v5045 = vunpack.c.l.b16 %v4188
        %v5046 = vunpack.c.h.b16 %v4188
        %v5047 = vunpack.c.l.b16 %v4189
        %v5048 = vunpack.c.h.b16 %v4189
        %v5049 = vunpack.c.l.b16 %v4190
        %v5050 = vunpack.c.h.b16 %v4190
        %v5051 = vunpack.c.l.b16 %v4191
        %v5052 = vunpack.c.h.b16 %v4191
        %v5053 = vunpack.c.l.b16 %v4192
        %v5054 = vunpack.c.h.b16 %v4192
        %v5055 = vunpack.c.l.b16 %v4193
        %v5056 = vunpack.c.h.b16 %v4193
        %v5057 = vunpack.c.l.b16 %v4194
        %v5058 = vunpack.c.h.b16 %v4194
        %v5059 = vunpack.c.l.b16 %v4195
        %v5060 = vunpack.c.h.b16 %v4195
        %v5061 = vunpack.c.l.b16 %v4196
        %v5062 = vunpack.c.h.b16 %v4196
        %v5063 = vunpack.c.l.b16 %v4197
        %v5064 = vunpack.c.h.b16 %v4197
        %v5065 = vunpack.c.l.b16 %v4198
        %v5066 = vunpack.c.h.b16 %v4198
        %v5067 = vunpack.c.l.b16 %v4199
        %v5068 = vunpack.c.h.b16 %v4199
        %v5069 = vunpack.c.l.b16 %v4200
        %v5070 = vunpack.c.h.b16 %v4200
        %v5071 = vunpack.c.l.b16 %v4201
        %v5072 = vunpack.c.h.b16 %v4201
        %v5073 = vunpack.c.l.b16 %v4202
        %v5074 = vunpack.c.h.b16 %v4202
        %v5075 = vunpack.c.l.b16 %v4203
        %v5076 = vunpack.c.h.b16 %v4203
        %v5077 = vunpack.c.l.b16 %v4204
        %v5078 = vunpack.c.h.b16 %v4204
        %v5079 = vunpack.c.l.b16 %v4205
        %v5080 = vunpack.c.h.b16 %v4205
        %v5081 = vunpack.c.l.b16 %v4206
        %v5082 = vunpack.c.h.b16 %v4206
        %v5083 = vunpack.c.l.b16 %v4207
        %v5084 = vunpack.c.h.b16 %v4207
        %v5085 = vunpack.c.l.b16 %v4208
        %v5086 = vunpack.c.h.b16 %v4208
        %v5087 = vunpack.c.l.b16 %v4209
        %v5088 = vunpack.c.h.b16 %v4209
        %v5089 = vunpack.c.l.b16 %v4210
        %v5090 = vunpack.c.h.b16 %v4210
        %v5091 = vunpack.c.l.b16 %v4211
        %v5092 = vunpack.c.h.b16 %v4211
        %v5093 = vunpack.c.l.b16 %v4212
        %v5094 = vunpack.c.h.b16 %v4212
        %v5095 = vunpack.c.l.b16 %v4213
        %v5096 = vunpack.c.h.b16 %v4213
        %v5097 = vunpack.c.l.b16 %v4214
        %v5098 = vunpack.c.h.b16 %v4214
        %v5099 = vunpack.c.l.b16 %v4215
        %v5100 = vunpack.c.h.b16 %v4215
        %v5101 = vunpack.c.l.b16 %v4216
        %v5102 = vunpack.c.h.b16 %v4216
        %v5103 = vunpack.c.l.b16 %v4217
        %v5104 = vunpack.c.h.b16 %v4217
        %v5105 = vunpack.c.l.b16 %v4218
        %v5106 = vunpack.c.h.b16 %v4218
        %v5107 = vunpack.c.l.b16 %v4219
        %v5108 = vunpack.c.h.b16 %v4219
        %v5109 = vunpack.c.l.b16 %v4220
        %v5110 = vunpack.c.h.b16 %v4220
        %v5111 = vunpack.c.l.b16 %v4221
        %v5112 = vunpack.c.h.b16 %v4221
        %v5113 = vunpack.c.l.b16 %v4222
        %v5114 = vunpack.c.h.b16 %v4222
        %v5115 = vunpack.c.l.b16 %v4223
        %v5116 = vunpack.c.h.b16 %v4223
        %v5117 = vunpack.c.l.b16 %v4224
        %v5118 = vunpack.c.h.b16 %v4224
        %v5119 = vunpack.c.l.b16 %v4225
        %v5120 = vunpack.c.h.b16 %v4225
        %v5121 = vunpack.c.l.b16 %v4226
        %v5122 = vunpack.c.h.b16 %v4226
        %v5123 = vunpack.c.l.b16 %v4227
        %v5124 = vunpack.c.h.b16 %v4227
        %v5125 = vunpack.c.l.b16 %v4228
        %v5126 = vunpack.c.h.b16 %v4228
        %v5127 = vunpack.c.l.b16 %v4229
        %v5128 = vunpack.c.h.b16 %v4229
        %v5129 = vunpack.c.l.b16 %v4230
        %v5130 = vunpack.c.h.b16 %v4230
        %v5131 = vunpack.c.l.b16 %v4231
        %v5132 = vunpack.c.h.b16 %v4231
        %v5133 = vunpack.c.l.b16 %v4232
        %v5134 = vunpack.c.h.b16 %v4232
        %v5135 = vunpack.c.l.b16 %v4233
        %v5136 = vunpack.c.h.b16 %v4233
        %v5137 = vunpack.c.l.b16 %v4234
        %v5138 = vunpack.c.h.b16 %v4234
        %v5139 = vunpack.c.l.b16 %v4235
        %v5140 = vunpack.c.h.b16 %v4235
        %v5141 = vunpack.c.l.b16 %v4236
        %v5142 = vunpack.c.h.b16 %v4236
        %v5143 = vunpack.c.l.b16 %v4237
        %v5144 = vunpack.c.h.b16 %v4237
        %v5145 = vunpack.c.l.b16 %v4238
        %v5146 = vunpack.c.h.b16 %v4238
        %v5147 = vunpack.c.l.b16 %v4239
        %v5148 = vunpack.c.h.b16 %v4239
        %v5149 = vunpack.c.l.b16 %v4240
        %v5150 = vunpack.c.h.b16 %v4240
        %v5151 = vunpack.c.l.b16 %v4241
        %v5152 = vunpack.c.h.b16 %v4241
        %v5153 = vunpack.c.l.b16 %v4242
        %v5154 = vunpack.c.h.b16 %v4242
        %v5155 = vunpack.c.l.b16 %v4243
        %v5156 = vunpack.c.h.b16 %v4243
        %v5157 = vunpack.c.l.b16 %v4244
        %v5158 = vunpack.c.h.b16 %v4244
        %v5159 = vunpack.c.l.b16 %v4245
        %v5160 = vunpack.c.h.b16 %v4245
        %v5161 = vunpack.c.l.b16 %v4246
        %v5162 = vunpack.c.h.b16 %v4246
        %v5163 = vunpack.c.l.b16 %v4247
        %v5164 = vunpack.c.h.b16 %v4247
        %v5165 = vunpack.c.l.b16 %v4248
        %v5166 = vunpack.c.h.b16 %v4248
        %v5167 = vunpack.c.l.b16 %v4249
        %v5168 = vunpack.c.h.b16 %v4249
        %v5169 = vunpack.c.l.b16 %v4250
        %v5170 = vunpack.c.h.b16 %v4250
        %v5171 = vunpack.c.l.b16 %v4251
        %v5172 = vunpack.c.h.b16 %v4251
        %v5173 = vunpack.c.l.b16 %v4252
        %v5174 = vunpack.c.h.b16 %v4252
        %v5175 = vunpack.c.l.b16 %v4253
        %v5176 = vunpack.c.h.b16 %v4253
        %v5177 = vunpack.c.l.b16 %v4254
        %v5178 = vunpack.c.h.b16 %v4254
        %v5179 = vunpack.c.l.b16 %v4255
        %v5180 = vunpack.c.h.b16 %v4255
        %v5181 = vunpack.c.l.b16 %v4256
        %v5182 = vunpack.c.h.b16 %v4256
        %v5183 = vunpack.c.l.b16 %v4257
        %v5184 = vunpack.c.h.b16 %v4257
        %v5185 = vunpack.c.l.b16 %v4258
        %v5186 = vunpack.c.h.b16 %v4258
        %v5187 = vunpack.c.l.b16 %v4259
        %v5188 = vunpack.c.h.b16 %v4259
        %v5189 = vunpack.c.l.b16 %v4260
        %v5190 = vunpack.c.h.b16 %v4260
        %v5191 = vunpack.c.l.b16 %v4261
        %v5192 = vunpack.c.h.b16 %v4261
        %v5193 = vunpack.c.l.b16 %v4262
        %v5194 = vunpack.c.h.b16 %v4262
        %v5195 = vunpack.c.l.b16 %v4263
        %v5196 = vunpack.c.h.b16 %v4263
        %v5197 = vunpack.c.l.b16 %v4264
        %v5198 = vunpack.c.h.b16 %v4264
        %v5199 = vunpack.c.l.b16 %v4265
        %v5200 = vunpack.c.h.b16 %v4265
        %v5201 = vunpack.c.l.b16 %v4266
        %v5202 = vunpack.c.h.b16 %v4266
        %v5203 = vunpack.c.l.b16 %v4267
        %v5204 = vunpack.c.h.b16 %v4267
        %v5205 = vunpack.c.l.b16 %v4268
        %v5206 = vunpack.c.h.b16 %v4268
        %v5207 = vunpack.c.l.b16 %v4269
        %v5208 = vunpack.c.h.b16 %v4269
        %v5209 = vunpack.c.l.b16 %v4270
        %v5210 = vunpack.c.h.b16 %v4270
        %v5211 = vunpack.c.l.b16 %v4271
        %v5212 = vunpack.c.h.b16 %v4271
        %v5213 = vunpack.c.l.b16 %v4272
        %v5214 = vunpack.c.h.b16 %v4272
        %v5215 = vunpack.c.l.b16 %v4273
        %v5216 = vunpack.c.h.b16 %v4273
        %v5217 = vunpack.c.l.b16 %v4274
        %v5218 = vunpack.c.h.b16 %v4274
        %v5219 = vunpack.c.l.b16 %v4275
        %v5220 = vunpack.c.h.b16 %v4275
        %v5221 = vunpack.c.l.b16 %v4276
        %v5222 = vunpack.c.h.b16 %v4276
        %v5223 = vunpack.c.l.b16 %v4277
        %v5224 = vunpack.c.h.b16 %v4277
        %v5225 = vunpack.c.l.b16 %v4278
        %v5226 = vunpack.c.h.b16 %v4278
        %v5227 = vunpack.c.l.b16 %v4279
        %v5228 = vunpack.c.h.b16 %v4279
        %v5229 = vunpack.c.l.b16 %v4280
        %v5230 = vunpack.c.h.b16 %v4280
        %v5231 = vunpack.c.l.b16 %v4281
        %v5232 = vunpack.c.h.b16 %v4281
        %v5233 = vunpack.c.l.b16 %v4282
        %v5234 = vunpack.c.h.b16 %v4282
        %v5235 = vunpack.c.l.b16 %v4283
        %v5236 = vunpack.c.h.b16 %v4283
        %v5237 = vunpack.c.l.b16 %v4284
        %v5238 = vunpack.c.h.b16 %v4284
        %v5239 = vunpack.c.l.b16 %v4285
        %v5240 = vunpack.c.h.b16 %v4285
        %v5241 = vunpack.c.l.b16 %v4286
        %v5242 = vunpack.c.h.b16 %v4286
        %v5243 = vunpack.c.l.b16 %v4287
        %v5244 = vunpack.c.h.b16 %v4287
        %v5245 = vunpack.c.l.b16 %v4288
        %v5246 = vunpack.c.h.b16 %v4288
        %v5247 = vunpack.c.l.b16 %v4289
        %v5248 = vunpack.c.h.b16 %v4289
        %v5249 = vunpack.c.l.b16 %v4290
        %v5250 = vunpack.c.h.b16 %v4290
        %v5251 = vunpack.c.l.b16 %v4291
        %v5252 = vunpack.c.h.b16 %v4291
        %v5253 = vunpack.c.l.b16 %v4292
        %v5254 = vunpack.c.h.b16 %v4292
        %v5255 = vunpack.c.l.b16 %v4293
        %v5256 = vunpack.c.h.b16 %v4293
        %v5257 = vunpack.c.l.b16 %v4294
        %v5258 = vunpack.c.h.b16 %v4294
        %v5259 = vunpack.c.l.b16 %v4295
        %v5260 = vunpack.c.h.b16 %v4295
        %v5261 = vunpack.c.l.b16 %v4296
        %v5262 = vunpack.c.h.b16 %v4296
        %v5263 = vunpack.c.l.b16 %v4297
        %v5264 = vunpack.c.h.b16 %v4297
        %v5265 = vunpack.c.l.b16 %v4298
        %v5266 = vunpack.c.h.b16 %v4298
        %v5267 = vunpack.c.l.b16 %v4299
        %v5268 = vunpack.c.h.b16 %v4299
        %v5269 = vunpack.c.l.b16 %v4300
        %v5270 = vunpack.c.h.b16 %v4300
        %v5271 = vunpack.c.l.b16 %v4301
        %v5272 = vunpack.c.h.b16 %v4301
        %v5273 = vunpack.c.l.b16 %v4302
        %v5274 = vunpack.c.h.b16 %v4302
        %v5275 = vunpack.c.l.b16 %v4303
        %v5276 = vunpack.c.h.b16 %v4303
        %v5277 = vunpack.c.l.b16 %v4304
        %v5278 = vunpack.c.h.b16 %v4304
        %v5279 = vunpack.c.l.b16 %v4305
        %v5280 = vunpack.c.h.b16 %v4305
        %v5281 = vunpack.c.l.b16 %v4306
        %v5282 = vunpack.c.h.b16 %v4306
        %v5283 = vunpack.c.l.b16 %v4307
        %v5284 = vunpack.c.h.b16 %v4307
        %v5285 = vunpack.c.l.b16 %v4308
        %v5286 = vunpack.c.h.b16 %v4308
        %v5287 = vunpack.c.l.b16 %v4309
        %v5288 = vunpack.c.h.b16 %v4309
        %v5289 = vunpack.c.l.b16 %v4310
        %v5290 = vunpack.c.h.b16 %v4310
        %v5291 = vunpack.c.l.b16 %v4311
        %v5292 = vunpack.c.h.b16 %v4311
        %v5293 = vunpack.c.l.b16 %v4312
        %v5294 = vunpack.c.h.b16 %v4312
        %v5295 = vunpack.c.l.b16 %v4313
        %v5296 = vunpack.c.h.b16 %v4313
        %v5297 = vunpack.c.l.b16 %v4314
        %v5298 = vunpack.c.h.b16 %v4314
        %v5299 = vunpack.c.l.b16 %v4315
        %v5300 = vunpack.c.h.b16 %v4315
        %v5301 = vunpack.c.l.b16 %v4316
        %v5302 = vunpack.c.h.b16 %v4316
        %v5303 = vunpack.c.l.b16 %v4317
        %v5304 = vunpack.c.h.b16 %v4317
        %v5305 = vunpack.c.l.b16 %v4318
        %v5306 = vunpack.c.h.b16 %v4318
        %v5307 = vunpack.c.l.b16 %v4319
        %v5308 = vunpack.c.h.b16 %v4319
        %v5309 = vunpack.c.l.b16 %v4320
        %v5310 = vunpack.c.h.b16 %v4320
        %v5311 = vunpack.c.l.b16 %v4321
        %v5312 = vunpack.c.h.b16 %v4321
        %v5313 = vunpack.c.l.b16 %v4322
        %v5314 = vunpack.c.h.b16 %v4322
        %v5315 = vunpack.c.l.b16 %v4323
        %v5316 = vunpack.c.h.b16 %v4323
        %v5317 = vunpack.c.l.b16 %v4324
        %v5318 = vunpack.c.h.b16 %v4324
        %v5319 = vunpack.c.l.b16 %v4325
        %v5320 = vunpack.c.h.b16 %v4325
        %v5321 = vunpack.c.l.b16 %v4326
        %v5322 = vunpack.c.h.b16 %v4326
        %v5323 = vunpack.c.l.b16 %v4327
        %v5324 = vunpack.c.h.b16 %v4327
        %v5325 = vunpack.c.l.b16 %v4328
        %v5326 = vunpack.c.h.b16 %v4328
        %v5327 = vunpack.c.l.b16 %v4329
        %v5328 = vunpack.c.h.b16 %v4329
        %v5329 = vunpack.c.l.b16 %v4330
        %v5330 = vunpack.c.h.b16 %v4330
        %v5331 = vunpack.c.l.b16 %v4331
        %v5332 = vunpack.c.h.b16 %v4331
        %v5333 = vunpack.c.l.b16 %v4332
        %v5334 = vunpack.c.h.b16 %v4332
        %v5335 = vunpack.c.l.b16 %v4333
        %v5336 = vunpack.c.h.b16 %v4333
        %v5337 = vunpack.c.l.b16 %v4334
        %v5338 = vunpack.c.h.b16 %v4334
        %v5339 = vunpack.c.l.b16 %v4335
        %v5340 = vunpack.c.h.b16 %v4335
        %v5341 = vunpack.c.l.b16 %v4336
        %v5342 = vunpack.c.h.b16 %v4336
        %v5343 = vunpack.c.l.b16 %v4337
        %v5344 = vunpack.c.h.b16 %v4337
        %v5345 = vunpack.c.l.b16 %v4338
        %v5346 = vunpack.c.h.b16 %v4338
        %v5347 = vunpack.c.l.b16 %v4339
        %v5348 = vunpack.c.h.b16 %v4339
        %v5349 = vunpack.c.l.b16 %v4340
        %v5350 = vunpack.c.h.b16 %v4340
        %v5351 = vunpack.c.l.b16 %v4341
        %v5352 = vunpack.c.h.b16 %v4341
        %v5353 = vunpack.c.l.b16 %v4342
        %v5354 = vunpack.c.h.b16 %v4342
        %v5355 = vunpack.c.l.b16 %v4343
        %v5356 = vunpack.c.h.b16 %v4343
        %v5357 = vunpack.c.l.b16 %v4344
        %v5358 = vunpack.c.h.b16 %v4344
        %v5359 = vunpack.c.l.b16 %v4345
        %v5360 = vunpack.c.h.b16 %v4345
        %v5361 = vunpack.c.l.b16 %v4346
        %v5362 = vunpack.c.h.b16 %v4346
        %v5363 = vunpack.c.l.b16 %v4347
        %v5364 = vunpack.c.h.b16 %v4347
        %v5365 = vunpack.c.l.b16 %v4348
        %v5366 = vunpack.c.h.b16 %v4348
        %v5367 = vunpack.c.l.b16 %v4349
        %v5368 = vunpack.c.h.b16 %v4349
        %v5369 = vunpack.c.l.b16 %v4350
        %v5370 = vunpack.c.h.b16 %v4350
        %v5371 = vunpack.c.l.b16 %v4351
        %v5372 = vunpack.c.h.b16 %v4351
        %v5373 = vunpack.c.l.b16 %v4352
        %v5374 = vunpack.c.h.b16 %v4352
        %v5375 = vunpack.c.l.b16 %v4353
        %v5376 = vunpack.c.h.b16 %v4353
        %v5377 = vunpack.c.l.b16 %v4354
        %v5378 = vunpack.c.h.b16 %v4354
        %v5379 = vunpack.c.l.b16 %v4355
        %v5380 = vunpack.c.h.b16 %v4355
        %v5381 = vunpack.c.l.b16 %v4356
        %v5382 = vunpack.c.h.b16 %v4356
        %v5383 = vunpack.c.l.b16 %v4357
        %v5384 = vunpack.c.h.b16 %v4357
        %v5385 = vunpack.c.l.b16 %v4358
        %v5386 = vunpack.c.h.b16 %v4358
        %v5387 = vunpack.c.l.b16 %v4359
        %v5388 = vunpack.c.h.b16 %v4359
        %v5389 = vunpack.c.l.b16 %v4360
        %v5390 = vunpack.c.h.b16 %v4360
        %v5391 = vunpack.c.l.b16 %v4361
        %v5392 = vunpack.c.h.b16 %v4361
        %v5393 = vunpack.c.l.b16 %v4362
        %v5394 = vunpack.c.h.b16 %v4362
        %v5395 = vunpack.c.l.b16 %v4363
        %v5396 = vunpack.c.h.b16 %v4363
        %v5397 = vunpack.c.l.b16 %v4364
        %v5398 = vunpack.c.h.b16 %v4364
        %v5399 = vunpack.c.l.b16 %v4365
        %v5400 = vunpack.c.h.b16 %v4365
        %v5401 = vunpack.c.l.b16 %v4366
        %v5402 = vunpack.c.h.b16 %v4366
        %v5403 = vunpack.c.l.b16 %v4367
        %v5404 = vunpack.c.h.b16 %v4367
        %v5405 = vunpack.c.l.b16 %v4368
        %v5406 = vunpack.c.h.b16 %v4368
        %v5407 = vunpack.c.l.b16 %v4369
        %v5408 = vunpack.c.h.b16 %v4369
        %v5409 = vunpack.c.l.b16 %v4370
        %v5410 = vunpack.c.h.b16 %v4370
        %v5411 = vunpack.c.l.b16 %v4371
        %v5412 = vunpack.c.h.b16 %v4371
        %v5413 = vunpack.c.l.b16 %v4372
        %v5414 = vunpack.c.h.b16 %v4372
        %v5415 = vunpack.c.l.b16 %v4373
        %v5416 = vunpack.c.h.b16 %v4373
        %v5417 = vunpack.c.l.b16 %v4374
        %v5418 = vunpack.c.h.b16 %v4374
        %v5419 = vunpack.c.l.b16 %v4375
        %v5420 = vunpack.c.h.b16 %v4375
        %v5421 = vunpack.c.l.b16 %v4376
        %v5422 = vunpack.c.h.b16 %v4376
        %v5423 = vunpack.c.l.b16 %v4377
        %v5424 = vunpack.c.h.b16 %v4377
        %v5425 = vunpack.c.l.b16 %v4378
        %v5426 = vunpack.c.h.b16 %v4378
        %v5427 = vunpack.c.l.b16 %v4379
        %v5428 = vunpack.c.h.b16 %v4379
        %v5429 = vunpack.c.l.b16 %v4380
        %v5430 = vunpack.c.h.b16 %v4380
        %v5431 = vunpack.c.l.b16 %v4381
        %v5432 = vunpack.c.h.b16 %v4381
        %v5433 = vunpack.c.l.b16 %v4382
        %v5434 = vunpack.c.h.b16 %v4382
        %v5435 = vunpack.c.l.b16 %v4383
        %v5436 = vunpack.c.h.b16 %v4383
        %v5437 = vunpack.c.l.b16 %v4384
        %v5438 = vunpack.c.h.b16 %v4384
        %v5439 = vunpack.c.l.b16 %v4385
        %v5440 = vunpack.c.h.b16 %v4385
        %v5441 = vunpack.c.l.b16 %v4386
        %v5442 = vunpack.c.h.b16 %v4386
        %v5443 = vunpack.c.l.b16 %v4387
        %v5444 = vunpack.c.h.b16 %v4387
        %v5445 = vunpack.c.l.b16 %v4388
        %v5446 = vunpack.c.h.b16 %v4388
        %v5447 = vunpack.c.l.b16 %v4389
        %v5448 = vunpack.c.h.b16 %v4389
        %v5449 = vunpack.c.l.b16 %v4390
        %v5450 = vunpack.c.h.b16 %v4390
        %v5451 = vunpack.c.l.b16 %v4391
        %v5452 = vunpack.c.h.b16 %v4391
        %v5453 = vunpack.c.l.b16 %v4392
        %v5454 = vunpack.c.h.b16 %v4392
        %v5455 = vunpack.c.l.b16 %v4393
        %v5456 = vunpack.c.h.b16 %v4393
        %v5457 = vunpack.c.l.b16 %v4394
        %v5458 = vunpack.c.h.b16 %v4394
        %v5459 = vunpack.c.l.b16 %v4395
        %v5460 = vunpack.c.h.b16 %v4395
        %v5461 = vunpack.c.l.b16 %v4396
        %v5462 = vunpack.c.h.b16 %v4396
        %v5463 = vunpack.c.l.b16 %v4397
        %v5464 = vunpack.c.h.b16 %v4397
        %v5465 = vunpack.c.l.b16 %v4398
        %v5466 = vunpack.c.h.b16 %v4398
        %v5467 = vunpack.c.l.b16 %v4399
        %v5468 = vunpack.c.h.b16 %v4399
        %v5469 = vunpack.c.l.b16 %v4400
        %v5470 = vunpack.c.h.b16 %v4400
        %v5471 = vunpack.c.l.b16 %v4401
        %v5472 = vunpack.c.h.b16 %v4401
        %v5473 = vunpack.c.l.b16 %v4402
        %v5474 = vunpack.c.h.b16 %v4402
        %v5475 = vunpack.c.l.b16 %v4403
        %v5476 = vunpack.c.h.b16 %v4403
        %v5477 = vunpack.c.l.b16 %v4404
        %v5478 = vunpack.c.h.b16 %v4404
        %v5479 = vunpack.c.l.b16 %v4405
        %v5480 = vunpack.c.h.b16 %v4405
        %v5481 = vunpack.c.l.b16 %v4406
        %v5482 = vunpack.c.h.b16 %v4406
        %v5483 = vunpack.c.l.b16 %v4407
        %v5484 = vunpack.c.h.b16 %v4407
        %v5485 = vunpack.c.l.b16 %v4408
        %v5486 = vunpack.c.h.b16 %v4408
        %v5487 = vunpack.c.l.b16 %v4409
        %v5488 = vunpack.c.h.b16 %v4409
        %v5489 = vunpack.c.l.b16 %v4410
        %v5490 = vunpack.c.h.b16 %v4410
        %v5491 = vunpack.c.l.b16 %v4411
        %v5492 = vunpack.c.h.b16 %v4411
        %v5493 = vunpack.c.l.b16 %v4412
        %v5494 = vunpack.c.h.b16 %v4412
        %v5495 = vunpack.c.l.b16 %v4413
        %v5496 = vunpack.c.h.b16 %v4413
        %v5497 = vunpack.c.l.b16 %v4414
        %v5498 = vunpack.c.h.b16 %v4414
        %v5499 = vunpack.c.l.b16 %v4415
        %v5500 = vunpack.c.h.b16 %v4415
        %v5501 = vunpack.c.l.b16 %v4416
        %v5502 = vunpack.c.h.b16 %v4416
        %v5503 = vunpack.c.l.b16 %v4417
        %v5504 = vunpack.c.h.b16 %v4417
        %v5505 = vunpack.c.l.b16 %v4418
        %v5506 = vunpack.c.h.b16 %v4418
        %v5507 = vunpack.c.l.b16 %v4419
        %v5508 = vunpack.c.h.b16 %v4419
        %v5509 = vunpack.c.l.b16 %v4420
        %v5510 = vunpack.c.h.b16 %v4420
        %v5511 = vunpack.c.l.b16 %v4421
        %v5512 = vunpack.c.h.b16 %v4421
        %v5513 = vunpack.c.l.b16 %v4422
        %v5514 = vunpack.c.h.b16 %v4422
        %v5515 = vunpack.c.l.b16 %v4423
        %v5516 = vunpack.c.h.b16 %v4423
        %v5517 = vunpack.c.l.b16 %v4424
        %v5518 = vunpack.c.h.b16 %v4424
        %v5519 = vunpack.c.l.b16 %v4425
        %v5520 = vunpack.c.h.b16 %v4425
        %v5521 = vunpack.c.l.b16 %v4426
        %v5522 = vunpack.c.h.b16 %v4426
        %v5523 = vunpack.c.l.b16 %v4427
        %v5524 = vunpack.c.h.b16 %v4427
        %v5525 = vunpack.c.l.b16 %v4428
        %v5526 = vunpack.c.h.b16 %v4428
        %v5527 = vunpack.c.l.b16 %v4429
        %v5528 = vunpack.c.h.b16 %v4429
        %v5529 = vunpack.c.l.b16 %v4430
        %v5530 = vunpack.c.h.b16 %v4430
        %v5531 = vunpack.c.l.b16 %v4431
        %v5532 = vunpack.c.h.b16 %v4431
        %v5533 = vunpack.c.l.b16 %v4432
        %v5534 = vunpack.c.h.b16 %v4432
        %v5535 = vunpack.c.l.b16 %v4433
        %v5536 = vunpack.c.h.b16 %v4433
        %v5537 = vunpack.c.l.b16 %v4434
        %v5538 = vunpack.c.h.b16 %v4434
        %v5539 = vunpack.c.l.b16 %v4435
        %v5540 = vunpack.c.h.b16 %v4435
        %v5541 = vunpack.c.l.b16 %v4436
        %v5542 = vunpack.c.h.b16 %v4436
        %v5543 = vunpack.c.l.b16 %v4437
        %v5544 = vunpack.c.h.b16 %v4437
        %v5545 = vunpack.c.l.b16 %v4438
        %v5546 = vunpack.c.h.b16 %v4438
        %v5547 = vunpack.c.l.b16 %v4439
        %v5548 = vunpack.c.h.b16 %v4439
        %v5549 = vunpack.c.l.b16 %v4440
        %v5550 = vunpack.c.h.b16 %v4440
        %v5551 = vunpack.c.l.b16 %v4441
        %v5552 = vunpack.c.h.b16 %v4441
        %v5553 = vunpack.c.l.b16 %v4442
        %v5554 = vunpack.c.h.b16 %v4442
        %v5555 = vunpack.c.l.b16 %v4443
        %v5556 = vunpack.c.h.b16 %v4443
        %v5557 = vunpack.c.l.b16 %v4444
        %v5558 = vunpack.c.h.b16 %v4444
        %v5559 = vunpack.c.l.b16 %v4445
        %v5560 = vunpack.c.h.b16 %v4445
        %v5561 = vunpack.c.l.b16 %v4446
        %v5562 = vunpack.c.h.b16 %v4446
        %v5563 = vunpack.c.l.b16 %v4447
        %v5564 = vunpack.c.h.b16 %v4447
        %v5565 = vunpack.c.l.b16 %v4448
        %v5566 = vunpack.c.h.b16 %v4448
        %v5567 = vunpack.c.l.b16 %v4449
        %v5568 = vunpack.c.h.b16 %v4449
        %v5569 = vunpack.c.l.b16 %v4450
        %v5570 = vunpack.c.h.b16 %v4450
        %v5571 = vunpack.c.l.b16 %v4451
        %v5572 = vunpack.c.h.b16 %v4451
        %v5573 = vunpack.c.l.b16 %v4452
        %v5574 = vunpack.c.h.b16 %v4452
        %v5575 = vunpack.c.l.b16 %v4453
        %v5576 = vunpack.c.h.b16 %v4453
        %v5577 = vunpack.c.l.b16 %v4454
        %v5578 = vunpack.c.h.b16 %v4454
        %v5579 = vunpack.c.l.b16 %v4455
        %v5580 = vunpack.c.h.b16 %v4455
        %v5581 = vunpack.c.l.b16 %v4456
        %v5582 = vunpack.c.h.b16 %v4456
        %v5583 = vunpack.c.l.b16 %v4457
        %v5584 = vunpack.c.h.b16 %v4457
        %v5585 = vunpack.c.l.b16 %v4458
        %v5586 = vunpack.c.h.b16 %v4458
        %v5587 = vunpack.c.l.b16 %v4459
        %v5588 = vunpack.c.h.b16 %v4459
        %v5589 = vunpack.c.l.b16 %v4460
        %v5590 = vunpack.c.h.b16 %v4460
        %v5591 = vunpack.c.l.b16 %v4461
        %v5592 = vunpack.c.h.b16 %v4461
        %v5593 = vunpack.c.l.b16 %v4462
        %v5594 = vunpack.c.h.b16 %v4462
        %v5595 = vunpack.c.l.b16 %v4463
        %v5596 = vunpack.c.h.b16 %v4463
        %v5597 = vunpack.c.l.b16 %v4464
        %v5598 = vunpack.c.h.b16 %v4464
        %v5599 = vunpack.c.l.b16 %v4465
        %v5600 = vunpack.c.h.b16 %v4465
        %v5601 = vunpack.c.l.b16 %v4466
        %v5602 = vunpack.c.h.b16 %v4466
        %v5603 = vunpack.c.l.b16 %v4467
        %v5604 = vunpack.c.h.b16 %v4467
        %v5605 = vunpack.c.l.b16 %v4468
        %v5606 = vunpack.c.h.b16 %v4468
        %v5607 = vunpack.c.l.b16 %v4469
        %v5608 = vunpack.c.h.b16 %v4469
        %v5609 = vunpack.c.l.b16 %v4470
        %v5610 = vunpack.c.h.b16 %v4470
        %v5611 = vunpack.c.l.b16 %v4471
        %v5612 = vunpack.c.h.b16 %v4471
        %v5613 = vunpack.c.l.b16 %v4472
        %v5614 = vunpack.c.h.b16 %v4472
        %v5615 = vunpack.c.l.b16 %v4473
        %v5616 = vunpack.c.h.b16 %v4473
        %v5617 = vunpack.c.l.b16 %v4474
        %v5618 = vunpack.c.h.b16 %v4474
        %v5619 = vunpack.c.l.b16 %v4475
        %v5620 = vunpack.c.h.b16 %v4475
        %v5621 = vunpack.c.l.b16 %v4476
        %v5622 = vunpack.c.h.b16 %v4476
        %v5623 = vunpack.c.l.b16 %v4477
        %v5624 = vunpack.c.h.b16 %v4477
        %v5625 = vunpack.c.l.b16 %v4478
        %v5626 = vunpack.c.h.b16 %v4478
        %v5627 = vunpack.c.l.b16 %v4479
        %v5628 = vunpack.c.h.b16 %v4479
        %v5629 = vunpack.c.l.b16 %v4480
        %v5630 = vunpack.c.h.b16 %v4480
        %v5631 = vunpack.c.l.b16 %v4481
        %v5632 = vunpack.c.h.b16 %v4481
        %v5633 = vunpack.c.l.b16 %v4482
        %v5634 = vunpack.c.h.b16 %v4482
        %v5635 = vpack.c.b16 %v4873, %v4867
        %v5636 = vpack.c.b16 %v4874, %v4868
        %v5637 = vpack.c.b16 %v4875, %v4869
        %v5638 = vpack.c.b16 %v4876, %v4870
        %v5639 = vpack.c.b16 %v4877, %v4871
        %v5640 = vpack.c.b16 %v4878, %v4872
        %v5641 = vpack.c.b16 %v4885, %v4879
        %v5642 = vpack.c.b16 %v4886, %v4880
        %v5643 = vpack.c.b16 %v4887, %v4881
        %v5644 = vpack.c.b16 %v4888, %v4882
        %v5645 = vpack.c.b16 %v4889, %v4883
        %v5646 = vpack.c.b16 %v4890, %v4884
        %v5647 = vpack.c.b16 %v4897, %v4891
        %v5648 = vpack.c.b16 %v4898, %v4892
        %v5649 = vpack.c.b16 %v4899, %v4893
        %v5650 = vpack.c.b16 %v4900, %v4894
        %v5651 = vpack.c.b16 %v4901, %v4895
        %v5652 = vpack.c.b16 %v4902, %v4896
        %v5653 = vpack.c.b16 %v4909, %v4903
        %v5654 = vpack.c.b16 %v4910, %v4904
        %v5655 = vpack.c.b16 %v4911, %v4905
        %v5656 = vpack.c.b16 %v4912, %v4906
        %v5657 = vpack.c.b16 %v4913, %v4907
        %v5658 = vpack.c.b16 %v4914, %v4908
        %v5659 = vpack.c.b16 %v4921, %v4915
        %v5660 = vpack.c.b16 %v4922, %v4916
        %v5661 = vpack.c.b16 %v4923, %v4917
        %v5662 = vpack.c.b16 %v4924, %v4918
        %v5663 = vpack.c.b16 %v4925, %v4919
        %v5664 = vpack.c.b16 %v4926, %v4920
        %v5665 = vpack.c.b16 %v4933, %v4927
        %v5666 = vpack.c.b16 %v4934, %v4928
        %v5667 = vpack.c.b16 %v4935, %v4929
        %v5668 = vpack.c.b16 %v4936, %v4930
        %v5669 = vpack.c.b16 %v4937, %v4931
        %v5670 = vpack.c.b16 %v4938, %v4932
        %v5671 = vpack.c.b16 %v4945, %v4939
        %v5672 = vpack.c.b16 %v4946, %v4940
        %v5673 = vpack.c.b16 %v4947, %v4941
        %v5674 = vpack.c.b16 %v4948, %v4942
        %v5675 = vpack.c.b16 %v4949, %v4943
        %v5676 = vpack.c.b16 %v4950, %v4944
        %v5677 = vpack.c.b16 %v4957, %v4951
        %v5678 = vpack.c.b16 %v4958, %v4952
        %v5679 = vpack.c.b16 %v4959, %v4953
        %v5680 = vpack.c.b16 %v4960, %v4954
        %v5681 = vpack.c.b16 %v4961, %v4955
        %v5682 = vpack.c.b16 %v4962, %v4956
        %v5683 = vpack.c.b16 %v4969, %v4963
        %v5684 = vpack.c.b16 %v4970, %v4964
        %v5685 = vpack.c.b16 %v4971, %v4965
        %v5686 = vpack.c.b16 %v4972, %v4966
        %v5687 = vpack.c.b16 %v4973, %v4967
        %v5688 = vpack.c.b16 %v4974, %v4968
        %v5689 = vpack.c.b16 %v4981, %v4975
        %v5690 = vpack.c.b16 %v4982, %v4976
        %v5691 = vpack.c.b16 %v4983, %v4977
        %v5692 = vpack.c.b16 %v4984, %v4978
        %v5693 = vpack.c.b16 %v4985, %v4979
        %v5694 = vpack.c.b16 %v4986, %v4980
        %v5695 = vpack.c.b16 %v4993, %v4987
        %v5696 = vpack.c.b16 %v4994, %v4988
        %v5697 = vpack.c.b16 %v4995, %v4989
        %v5698 = vpack.c.b16 %v4996, %v4990
        %v5699 = vpack.c.b16 %v4997, %v4991
        %v5700 = vpack.c.b16 %v4998, %v4992
        %v5701 = vpack.c.b16 %v5005, %v4999
        %v5702 = vpack.c.b16 %v5006, %v5000
        %v5703 = vpack.c.b16 %v5007, %v5001
        %v5704 = vpack.c.b16 %v5008, %v5002
        %v5705 = vpack.c.b16 %v5009, %v5003
        %v5706 = vpack.c.b16 %v5010, %v5004
        %v5707 = vpack.c.b16 %v5017, %v5011
        %v5708 = vpack.c.b16 %v5018, %v5012
        %v5709 = vpack.c.b16 %v5019, %v5013
        %v5710 = vpack.c.b16 %v5020, %v5014
        %v5711 = vpack.c.b16 %v5021, %v5015
        %v5712 = vpack.c.b16 %v5022, %v5016
        %v5713 = vpack.c.b16 %v5029, %v5023
        %v5714 = vpack.c.b16 %v5030, %v5024
        %v5715 = vpack.c.b16 %v5031, %v5025
        %v5716 = vpack.c.b16 %v5032, %v5026
        %v5717 = vpack.c.b16 %v5033, %v5027
        %v5718 = vpack.c.b16 %v5034, %v5028
        %v5719 = vpack.c.b16 %v5041, %v5035
        %v5720 = vpack.c.b16 %v5042, %v5036
        %v5721 = vpack.c.b16 %v5043, %v5037
        %v5722 = vpack.c.b16 %v5044, %v5038
        %v5723 = vpack.c.b16 %v5045, %v5039
        %v5724 = vpack.c.b16 %v5046, %v5040
        %v5725 = vpack.c.b16 %v5053, %v5047
        %v5726 = vpack.c.b16 %v5054, %v5048
        %v5727 = vpack.c.b16 %v5055, %v5049
        %v5728 = vpack.c.b16 %v5056, %v5050
        %v5729 = vpack.c.b16 %v5057, %v5051
        %v5730 = vpack.c.b16 %v5058, %v5052
        %v5731 = vpack.c.b16 %v5065, %v5059
        %v5732 = vpack.c.b16 %v5066, %v5060
        %v5733 = vpack.c.b16 %v5067, %v5061
        %v5734 = vpack.c.b16 %v5068, %v5062
        %v5735 = vpack.c.b16 %v5069, %v5063
        %v5736 = vpack.c.b16 %v5070, %v5064
        %v5737 = vpack.c.b16 %v5077, %v5071
        %v5738 = vpack.c.b16 %v5078, %v5072
        %v5739 = vpack.c.b16 %v5079, %v5073
        %v5740 = vpack.c.b16 %v5080, %v5074
        %v5741 = vpack.c.b16 %v5081, %v5075
        %v5742 = vpack.c.b16 %v5082, %v5076
        %v5743 = vpack.c.b16 %v5089, %v5083
        %v5744 = vpack.c.b16 %v5090, %v5084
        %v5745 = vpack.c.b16 %v5091, %v5085
        %v5746 = vpack.c.b16 %v5092, %v5086
        %v5747 = vpack.c.b16 %v5093, %v5087
        %v5748 = vpack.c.b16 %v5094, %v5088
        %v5749 = vpack.c.b16 %v5101, %v5095
        %v5750 = vpack.c.b16 %v5102, %v5096
        %v5751 = vpack.c.b16 %v5103, %v5097
        %v5752 = vpack.c.b16 %v5104, %v5098
        %v5753 = vpack.c.b16 %v5105, %v5099
        %v5754 = vpack.c.b16 %v5106, %v5100
        %v5755 = vpack.c.b16 %v5113, %v5107
        %v5756 = vpack.c.b16 %v5114, %v5108
        %v5757 = vpack.c.b16 %v5115, %v5109
        %v5758 = vpack.c.b16 %v5116, %v5110
        %v5759 = vpack.c.b16 %v5117, %v5111
        %v5760 = vpack.c.b16 %v5118, %v5112
        %v5761 = vpack.c.b16 %v5125, %v5119
        %v5762 = vpack.c.b16 %v5126, %v5120
        %v5763 = vpack.c.b16 %v5127, %v5121
        %v5764 = vpack.c.b16 %v5128, %v5122
        %v5765 = vpack.c.b16 %v5129, %v5123
        %v5766 = vpack.c.b16 %v5130, %v5124
        %v5767 = vpack.c.b16 %v5137, %v5131
        %v5768 = vpack.c.b16 %v5138, %v5132
        %v5769 = vpack.c.b16 %v5139, %v5133
        %v5770 = vpack.c.b16 %v5140, %v5134
        %v5771 = vpack.c.b16 %v5141, %v5135
        %v5772 = vpack.c.b16 %v5142, %v5136
        %v5773 = vpack.c.b16 %v5149, %v5143
        %v5774 = vpack.c.b16 %v5150, %v5144
        %v5775 = vpack.c.b16 %v5151, %v5145
        %v5776 = vpack.c.b16 %v5152, %v5146
        %v5777 = vpack.c.b16 %v5153, %v5147
        %v5778 = vpack.c.b16 %v5154, %v5148
        %v5779 = vpack.c.b16 %v5161, %v5155
        %v5780 = vpack.c.b16 %v5162, %v5156
        %v5781 = vpack.c.b16 %v5163, %v5157
        %v5782 = vpack.c.b16 %v5164, %v5158
        %v5783 = vpack.c.b16 %v5165, %v5159
        %v5784 = vpack.c.b16 %v5166, %v5160
        %v5785 = vpack.c.b16 %v5173, %v5167
        %v5786 = vpack.c.b16 %v5174, %v5168
        %v5787 = vpack.c.b16 %v5175, %v5169
        %v5788 = vpack.c.b16 %v5176, %v5170
        %v5789 = vpack.c.b16 %v5177, %v5171
        %v5790 = vpack.c.b16 %v5178, %v5172
        %v5791 = vpack.c.b16 %v5185, %v5179
        %v5792 = vpack.c.b16 %v5186, %v5180
        %v5793 = vpack.c.b16 %v5187, %v5181
        %v5794 = vpack.c.b16 %v5188, %v5182
        %v5795 = vpack.c.b16 %v5189, %v5183
        %v5796 = vpack.c.b16 %v5190, %v5184
        %v5797 = vpack.c.b16 %v5197, %v5191
        %v5798 = vpack.c.b16 %v5198, %v5192
        %v5799 = vpack.c.b16 %v5199, %v5193
        %v5800 = vpack.c.b16 %v5200, %v5194
        %v5801 = vpack.c.b16 %v5201, %v5195
        %v5802 = vpack.c.b16 %v5202, %v5196
        %v5803 = vpack.c.b16 %v5209, %v5203
        %v5804 = vpack.c.b16 %v5210, %v5204
        %v5805 = vpack.c.b16 %v5211, %v5205
        %v5806 = vpack.c.b16 %v5212, %v5206
        %v5807 = vpack.c.b16 %v5213, %v5207
        %v5808 = vpack.c.b16 %v5214, %v5208
        %v5809 = vpack.c.b16 %v5221, %v5215
        %v5810 = vpack.c.b16 %v5222, %v5216
        %v5811 = vpack.c.b16 %v5223, %v5217
        %v5812 = vpack.c.b16 %v5224, %v5218
        %v5813 = vpack.c.b16 %v5225, %v5219
        %v5814 = vpack.c.b16 %v5226, %v5220
        %v5815 = vpack.c.b16 %v5233, %v5227
        %v5816 = vpack.c.b16 %v5234, %v5228
        %v5817 = vpack.c.b16 %v5235, %v5229
        %v5818 = vpack.c.b16 %v5236, %v5230
        %v5819 = vpack.c.b16 %v5237, %v5231
        %v5820 = vpack.c.b16 %v5238, %v5232
        %v5821 = vpack.c.b16 %v5245, %v5239
        %v5822 = vpack.c.b16 %v5246, %v5240
        %v5823 = vpack.c.b16 %v5247, %v5241
        %v5824 = vpack.c.b16 %v5248, %v5242
        %v5825 = vpack.c.b16 %v5249, %v5243
        %v5826 = vpack.c.b16 %v5250, %v5244
        %v5827 = vpack.c.b16 %v5257, %v5251
        %v5828 = vpack.c.b16 %v5258, %v5252
        %v5829 = vpack.c.b16 %v5259, %v5253
        %v5830 = vpack.c.b16 %v5260, %v5254
        %v5831 = vpack.c.b16 %v5261, %v5255
        %v5832 = vpack.c.b16 %v5262, %v5256
        %v5833 = vpack.c.b16 %v5269, %v5263
        %v5834 = vpack.c.b16 %v5270, %v5264
        %v5835 = vpack.c.b16 %v5271, %v5265
        %v5836 = vpack.c.b16 %v5272, %v5266
        %v5837 = vpack.c.b16 %v5273, %v5267
        %v5838 = vpack.c.b16 %v5274, %v5268
        %v5839 = vpack.c.b16 %v5281, %v5275
        %v5840 = vpack.c.b16 %v5282, %v5276
        %v5841 = vpack.c.b16 %v5283, %v5277
        %v5842 = vpack.c.b16 %v5284, %v5278
        %v5843 = vpack.c.b16 %v5285, %v5279
        %v5844 = vpack.c.b16 %v5286, %v5280
        %v5845 = vpack.c.b16 %v5293, %v5287
        %v5846 = vpack.c.b16 %v5294, %v5288
        %v5847 = vpack.c.b16 %v5295, %v5289
        %v5848 = vpack.c.b16 %v5296, %v5290
        %v5849 = vpack.c.b16 %v5297, %v5291
        %v5850 = vpack.c.b16 %v5298, %v5292
        %v5851 = vpack.c.b16 %v5305, %v5299
        %v5852 = vpack.c.b16 %v5306, %v5300
        %v5853 = vpack.c.b16 %v5307, %v5301
        %v5854 = vpack.c.b16 %v5308, %v5302
        %v5855 = vpack.c.b16 %v5309, %v5303
        %v5856 = vpack.c.b16 %v5310, %v5304
        %v5857 = vpack.c.b16 %v5317, %v5311
        %v5858 = vpack.c.b16 %v5318, %v5312
        %v5859 = vpack.c.b16 %v5319, %v5313
        %v5860 = vpack.c.b16 %v5320, %v5314
        %v5861 = vpack.c.b16 %v5321, %v5315
        %v5862 = vpack.c.b16 %v5322, %v5316
        %v5863 = vpack.c.b16 %v5329, %v5323
        %v5864 = vpack.c.b16 %v5330, %v5324
        %v5865 = vpack.c.b16 %v5331, %v5325
        %v5866 = vpack.c.b16 %v5332, %v5326
        %v5867 = vpack.c.b16 %v5333, %v5327
        %v5868 = vpack.c.b16 %v5334, %v5328
        %v5869 = vpack.c.b16 %v5341, %v5335
        %v5870 = vpack.c.b16 %v5342, %v5336
        %v5871 = vpack.c.b16 %v5343, %v5337
        %v5872 = vpack.c.b16 %v5344, %v5338
        %v5873 = vpack.c.b16 %v5345, %v5339
        %v5874 = vpack.c.b16 %v5346, %v5340
        %v5875 = vpack.c.b16 %v5353, %v5347
        %v5876 = vpack.c.b16 %v5354, %v5348
        %v5877 = vpack.c.b16 %v5355, %v5349
        %v5878 = vpack.c.b16 %v5356, %v5350
        %v5879 = vpack.c.b16 %v5357, %v5351
        %v5880 = vpack.c.b16 %v5358, %v5352
        %v5881 = vpack.c.b16 %v5365, %v5359
        %v5882 = vpack.c.b16 %v5366, %v5360
        %v5883 = vpack.c.b16 %v5367, %v5361
        %v5884 = vpack.c.b16 %v5368, %v5362
        %v5885 = vpack.c.b16 %v5369, %v5363
        %v5886 = vpack.c.b16 %v5370, %v5364
        %v5887 = vpack.c.b16 %v5377, %v5371
        %v5888 = vpack.c.b16 %v5378, %v5372
        %v5889 = vpack.c.b16 %v5379, %v5373
        %v5890 = vpack.c.b16 %v5380, %v5374
        %v5891 = vpack.c.b16 %v5381, %v5375
        %v5892 = vpack.c.b16 %v5382, %v5376
        %v5893 = vpack.c.b16 %v5389, %v5383
        %v5894 = vpack.c.b16 %v5390, %v5384
        %v5895 = vpack.c.b16 %v5391, %v5385
        %v5896 = vpack.c.b16 %v5392, %v5386
        %v5897 = vpack.c.b16 %v5393, %v5387
        %v5898 = vpack.c.b16 %v5394, %v5388
        %v5899 = vpack.c.b16 %v5401, %v5395
        %v5900 = vpack.c.b16 %v5402, %v5396
        %v5901 = vpack.c.b16 %v5403, %v5397
        %v5902 = vpack.c.b16 %v5404, %v5398
        %v5903 = vpack.c.b16 %v5405, %v5399
        %v5904 = vpack.c.b16 %v5406, %v5400
        %v5905 = vpack.c.b16 %v5413, %v5407
        %v5906 = vpack.c.b16 %v5414, %v5408
        %v5907 = vpack.c.b16 %v5415, %v5409
        %v5908 = vpack.c.b16 %v5416, %v5410
        %v5909 = vpack.c.b16 %v5417, %v5411
        %v5910 = vpack.c.b16 %v5418, %v5412
        %v5911 = vpack.c.b16 %v5425, %v5419
        %v5912 = vpack.c.b16 %v5426, %v5420
        %v5913 = vpack.c.b16 %v5427, %v5421
        %v5914 = vpack.c.b16 %v5428, %v5422
        %v5915 = vpack.c.b16 %v5429, %v5423
        %v5916 = vpack.c.b16 %v5430, %v5424
        %v5917 = vpack.c.b16 %v5437, %v5431
        %v5918 = vpack.c.b16 %v5438, %v5432
        %v5919 = vpack.c.b16 %v5439, %v5433
        %v5920 = vpack.c.b16 %v5440, %v5434
        %v5921 = vpack.c.b16 %v5441, %v5435
        %v5922 = vpack.c.b16 %v5442, %v5436
        %v5923 = vpack.c.b16 %v5449, %v5443
        %v5924 = vpack.c.b16 %v5450, %v5444
        %v5925 = vpack.c.b16 %v5451, %v5445
        %v5926 = vpack.c.b16 %v5452, %v5446
        %v5927 = vpack.c.b16 %v5453, %v5447
        %v5928 = vpack.c.b16 %v5454, %v5448
        %v5929 = vpack.c.b16 %v5461, %v5455
        %v5930 = vpack.c.b16 %v5462, %v5456
        %v5931 = vpack.c.b16 %v5463, %v5457
        %v5932 = vpack.c.b16 %v5464, %v5458
        %v5933 = vpack.c.b16 %v5465, %v5459
        %v5934 = vpack.c.b16 %v5466, %v5460
        %v5935 = vpack.c.b16 %v5473, %v5467
        %v5936 = vpack.c.b16 %v5474, %v5468
        %v5937 = vpack.c.b16 %v5475, %v5469
        %v5938 = vpack.c.b16 %v5476, %v5470
        %v5939 = vpack.c.b16 %v5477, %v5471
        %v5940 = vpack.c.b16 %v5478, %v5472
        %v5941 = vpack.c.b16 %v5485, %v5479
        %v5942 = vpack.c.b16 %v5486, %v5480
        %v5943 = vpack.c.b16 %v5487, %v5481
        %v5944 = vpack.c.b16 %v5488, %v5482
        %v5945 = vpack.c.b16 %v5489, %v5483
        %v5946 = vpack.c.b16 %v5490, %v5484
        %v5947 = vpack.c.b16 %v5497, %v5491
        %v5948 = vpack.c.b16 %v5498, %v5492
        %v5949 = vpack.c.b16 %v5499, %v5493
        %v5950 = vpack.c.b16 %v5500, %v5494
        %v5951 = vpack.c.b16 %v5501, %v5495
        %v5952 = vpack.c.b16 %v5502, %v5496
        %v5953 = vpack.c.b16 %v5509, %v5503
        %v5954 = vpack.c.b16 %v5510, %v5504
        %v5955 = vpack.c.b16 %v5511, %v5505
        %v5956 = vpack.c.b16 %v5512, %v5506
        %v5957 = vpack.c.b16 %v5513, %v5507
        %v5958 = vpack.c.b16 %v5514, %v5508
        %v5959 = vpack.c.b16 %v5521, %v5515
        %v5960 = vpack.c.b16 %v5522, %v5516
        %v5961 = vpack.c.b16 %v5523, %v5517
        %v5962 = vpack.c.b16 %v5524, %v5518
        %v5963 = vpack.c.b16 %v5525, %v5519
        %v5964 = vpack.c.b16 %v5526, %v5520
        %v5965 = vpack.c.b16 %v5533, %v5527
        %v5966 = vpack.c.b16 %v5534, %v5528
        %v5967 = vpack.c.b16 %v5535, %v5529
        %v5968 = vpack.c.b16 %v5536, %v5530
        %v5969 = vpack.c.b16 %v5537, %v5531
        %v5970 = vpack.c.b16 %v5538, %v5532
        %v5971 = vpack.c.b16 %v5545, %v5539
        %v5972 = vpack.c.b16 %v5546, %v5540
        %v5973 = vpack.c.b16 %v5547, %v5541
        %v5974 = vpack.c.b16 %v5548, %v5542
        %v5975 = vpack.c.b16 %v5549, %v5543
        %v5976 = vpack.c.b16 %v5550, %v5544
        %v5977 = vpack.c.b16 %v5557, %v5551
        %v5978 = vpack.c.b16 %v5558, %v5552
        %v5979 = vpack.c.b16 %v5559, %v5553
        %v5980 = vpack.c.b16 %v5560, %v5554
        %v5981 = vpack.c.b16 %v5561, %v5555
        %v5982 = vpack.c.b16 %v5562, %v5556
        %v5983 = vpack.c.b16 %v5569, %v5563
        %v5984 = vpack.c.b16 %v5570, %v5564
        %v5985 = vpack.c.b16 %v5571, %v5565
        %v5986 = vpack.c.b16 %v5572, %v5566
        %v5987 = vpack.c.b16 %v5573, %v5567
        %v5988 = vpack.c.b16 %v5574, %v5568
        %v5989 = vpack.c.b16 %v5581, %v5575
        %v5990 = vpack.c.b16 %v5582, %v5576
        %v5991 = vpack.c.b16 %v5583, %v5577
        %v5992 = vpack.c.b16 %v5584, %v5578
        %v5993 = vpack.c.b16 %v5585, %v5579
        %v5994 = vpack.c.b16 %v5586, %v5580
        %v5995 = vpack.c.b16 %v5593, %v5587
        %v5996 = vpack.c.b16 %v5594, %v5588
        %v5997 = vpack.c.b16 %v5595, %v5589
        %v5998 = vpack.c.b16 %v5596, %v5590
        %v5999 = vpack.c.b16 %v5597, %v5591
        %v6000 = vpack.c.b16 %v5598, %v5592
        %v6001 = vpack.c.b16 %v5605, %v5599
        %v6002 = vpack.c.b16 %v5606, %v5600
        %v6003 = vpack.c.b16 %v5607, %v5601
        %v6004 = vpack.c.b16 %v5608, %v5602
        %v6005 = vpack.c.b16 %v5609, %v5603
        %v6006 = vpack.c.b16 %v5610, %v5604
        %v6007 = vpack.c.b16 %v5617, %v5611
        %v6008 = vpack.c.b16 %v5618, %v5612
        %v6009 = vpack.c.b16 %v5619, %v5613
        %v6010 = vpack.c.b16 %v5620, %v5614
        %v6011 = vpack.c.b16 %v5621, %v5615
        %v6012 = vpack.c.b16 %v5622, %v5616
        %v6013 = vpack.c.b16 %v5629, %v5623
        %v6014 = vpack.c.b16 %v5630, %v5624
        %v6015 = vpack.c.b16 %v5631, %v5625
        %v6016 = vpack.c.b16 %v5632, %v5626
        %v6017 = vpack.c.b16 %v5633, %v5627
        %v6018 = vpack.c.b16 %v5634, %v5628
        %6403 = vmatprep.subr.bf16.mxu0 %v5678
        %6404 = vmatpush1.bf16.msra.mxu0 %v5677
        %6405 = vmatprep.subr.bf16.mxu0 %v5672
        %6406 = vmatpush1.bf16.msra.mxu0 %v5671
        %6407 = vmatprep.subr.bf16.mxu0 %v5666
        %6408 = vmatpush1.bf16.msra.mxu0 %v5665
        %6409 = vmatprep.subr.bf16.mxu0 %v5660
        %6410 = vmatpush1.bf16.msra.mxu0 %v5659
        %6411 = vmatprep.subr.bf16.mxu0 %v5654
        %6412 = vmatpush1.bf16.msra.mxu0 %v5653
        %6413 = vmatprep.subr.bf16.mxu0 %v5648
        %6414 = vmatpush1.bf16.msra.mxu0 %v5647
        %6415 = vmatprep.subr.bf16.mxu0 %v5642
        %6416 = vmatpush1.bf16.msra.mxu0 %v5641
        %6417 = vmatprep.subr.bf16.mxu0 %v5636
        %6418 = vmatpush1.bf16.msra.mxu0 %v5635
        %6419 = vmatprep.subr.bf16.mxu0 %v5726
        %6420 = vmatpush2.bf16.msra.mxu0 %v5725
        %6421 = vmatprep.subr.bf16.mxu0 %v5720
        %6422 = vmatpush2.bf16.msra.mxu0 %v5719
        %6423 = vmatprep.subr.bf16.mxu0 %v5714
        %6424 = vmatpush2.bf16.msra.mxu0 %v5713
        %6425 = vmatprep.subr.bf16.mxu0 %v5708
        %6426 = vmatpush2.bf16.msra.mxu0 %v5707
        %6427 = vmatprep.subr.bf16.mxu0 %v5702
        %6428 = vmatpush2.bf16.msra.mxu0 %v5701
        %6429 = vmatprep.subr.bf16.mxu0 %v5696
        %6430 = vmatpush2.bf16.msra.mxu0 %v5695
        %6431 = vmatprep.subr.bf16.mxu0 %v5690
        %6432 = vmatpush2.bf16.msra.mxu0 %v5689
        %6433 = vmatprep.subr.bf16.mxu0 %v5684
        %6434 = vmatpush2.bf16.msra.mxu0 %v5683
        %6435 = vmatprep.mubr.bf16.mxu0 %v4068
        %6436 = vmatmul.mubr.bf16.gmra.mxu0 %v4067
        %v6437 = vpop.f32.mrf.mxu0
        %v6438 = vadd.f32 0.0, %v6437
        %v6439 = vpop.f32.mrf.mxu0
        %v6440 = vadd.f32 0.0, %v6439
        %v6441 = vpop.f32.mrf.mxu0
        %v6442 = vadd.f32 0.0, %v6441
        %v6443 = vpop.f32.mrf.mxu0
        %v6444 = vadd.f32 0.0, %v6443
        %6445 = vmatprep.mubr.bf16.mxu0 %v4076
        %6446 = vmatmul.mubr.bf16.gmra.mxu0 %v4075
        %v6447 = vpop.f32.mrf.mxu0
        %v6448 = vadd.f32 0.0, %v6447
        %v6449 = vpop.f32.mrf.mxu0
        %v6450 = vadd.f32 0.0, %v6449
        %v6451 = vpop.f32.mrf.mxu0
        %v6452 = vadd.f32 0.0, %v6451
        %v6453 = vpop.f32.mrf.mxu0
        %v6454 = vadd.f32 0.0, %v6453
        %6455 = vmatprep.mubr.bf16.mxu0 %v4084
        %6456 = vmatmul.mubr.bf16.gmra.mxu0 %v4083
        %v6457 = vpop.f32.mrf.mxu0
        %v6458 = vadd.f32 0.0, %v6457
        %v6459 = vpop.f32.mrf.mxu0
        %v6460 = vadd.f32 0.0, %v6459
        %v6461 = vpop.f32.mrf.mxu0
        %v6462 = vadd.f32 0.0, %v6461
        %v6463 = vpop.f32.mrf.mxu0
        %v6464 = vadd.f32 0.0, %v6463
        %6465 = vmatprep.mubr.bf16.mxu0 %v4092
        %6466 = vmatmul.mubr.bf16.gmra.mxu0 %v4091
        %v6467 = vpop.f32.mrf.mxu0
        %v6468 = vadd.f32 0.0, %v6467
        %v6469 = vpop.f32.mrf.mxu0
        %v6470 = vadd.f32 0.0, %v6469
        %v6471 = vpop.f32.mrf.mxu0
        %v6472 = vpop.f32.mrf.mxu0
        %6473 = vdwg.mxu0
        %6474 = vmatprep.subr.bf16.mxu0 %v5774
        %6475 = vmatpush1.bf16.msra.mxu0 %v5773
        %6476 = vmatprep.subr.bf16.mxu0 %v5768
        %6477 = vmatpush1.bf16.msra.mxu0 %v5767
        %6478 = vmatprep.subr.bf16.mxu0 %v5762
        %6479 = vmatpush1.bf16.msra.mxu0 %v5761
        %6480 = vmatprep.subr.bf16.mxu0 %v5756
        %6481 = vmatpush1.bf16.msra.mxu0 %v5755
        %6482 = vmatprep.subr.bf16.mxu0 %v5750
        %6483 = vmatpush1.bf16.msra.mxu0 %v5749
        %6484 = vmatprep.subr.bf16.mxu0 %v5744
        %6485 = vmatpush1.bf16.msra.mxu0 %v5743
        %6486 = vmatprep.subr.bf16.mxu0 %v5738
        %6487 = vmatpush1.bf16.msra.mxu0 %v5737
        %6488 = vmatprep.subr.bf16.mxu0 %v5732
        %6489 = vmatpush1.bf16.msra.mxu0 %v5731
        %6490 = vmatprep.subr.bf16.mxu0 %v5822
        %6491 = vmatpush2.bf16.msra.mxu0 %v5821
        %6492 = vmatprep.subr.bf16.mxu0 %v5816
        %6493 = vmatpush2.bf16.msra.mxu0 %v5815
        %6494 = vmatprep.subr.bf16.mxu0 %v5810
        %6495 = vmatpush2.bf16.msra.mxu0 %v5809
        %6496 = vmatprep.subr.bf16.mxu0 %v5804
        %6497 = vmatpush2.bf16.msra.mxu0 %v5803
        %6498 = vmatprep.subr.bf16.mxu0 %v5798
        %6499 = vmatpush2.bf16.msra.mxu0 %v5797
        %6500 = vmatprep.subr.bf16.mxu0 %v5792
        %6501 = vmatpush2.bf16.msra.mxu0 %v5791
        %6502 = vmatprep.subr.bf16.mxu0 %v5786
        %6503 = vmatpush2.bf16.msra.mxu0 %v5785
        %6504 = vmatprep.subr.bf16.mxu0 %v5780
        %6505 = vmatpush2.bf16.msra.mxu0 %v5779
        %6506 = vmatprep.mubr.bf16.mxu0 %v4070
        %6507 = vmatmul.mubr.bf16.gmra.mxu0 %v4069
        %v6508 = vpop.f32.mrf.mxu0
        %v6509 = vadd.f32 %v6438, %v6508
        %v6510 = vpop.f32.mrf.mxu0
        %v6511 = vadd.f32 %v6440, %v6510
        %v6512 = vpop.f32.mrf.mxu0
        %v6513 = vadd.f32 %v6442, %v6512
        %v6514 = vpop.f32.mrf.mxu0
        %v6515 = vadd.f32 %v6444, %v6514
        %6516 = vmatprep.mubr.bf16.mxu0 %v4078
        %6517 = vmatmul.mubr.bf16.gmra.mxu0 %v4077
        %v6518 = vpop.f32.mrf.mxu0
        %v6519 = vadd.f32 %v6448, %v6518
        %v6520 = vpop.f32.mrf.mxu0
        %v6521 = vadd.f32 %v6450, %v6520
        %v6522 = vpop.f32.mrf.mxu0
        %v6523 = vadd.f32 %v6452, %v6522
        %v6524 = vpop.f32.mrf.mxu0
        %v6525 = vadd.f32 %v6454, %v6524
        %6526 = vmatprep.mubr.bf16.mxu0 %v4086
        %6527 = vmatmul.mubr.bf16.gmra.mxu0 %v4085
        %v6528 = vpop.f32.mrf.mxu0
        %v6529 = vadd.f32 %v6458, %v6528
        %v6530 = vpop.f32.mrf.mxu0
        %v6531 = vadd.f32 %v6460, %v6530
        %v6532 = vpop.f32.mrf.mxu0
        %v6533 = vadd.f32 %v6462, %v6532
        %v6534 = vpop.f32.mrf.mxu0
        %v6535 = vadd.f32 %v6464, %v6534
        %6536 = vmatprep.mubr.bf16.mxu0 %v4094
        %6537 = vmatmul.mubr.bf16.gmra.mxu0 %v4093
        %v6538 = vpop.f32.mrf.mxu0
        %v6539 = vadd.f32 %v6468, %v6538
        %v6540 = vpop.f32.mrf.mxu0
        %v6541 = vadd.f32 %v6470, %v6540
        %v6542 = vpop.f32.mrf.mxu0
        %v6543 = vpop.f32.mrf.mxu0
        %6544 = vdwg.mxu0
        %6545 = vmatprep.subr.bf16.mxu0 %v5870
        %6546 = vmatpush1.bf16.msra.mxu0 %v5869
        %6547 = vmatprep.subr.bf16.mxu0 %v5864
        %6548 = vmatpush1.bf16.msra.mxu0 %v5863
        %6549 = vmatprep.subr.bf16.mxu0 %v5858
        %6550 = vmatpush1.bf16.msra.mxu0 %v5857
        %6551 = vmatprep.subr.bf16.mxu0 %v5852
        %6552 = vmatpush1.bf16.msra.mxu0 %v5851
        %6553 = vmatprep.subr.bf16.mxu0 %v5846
        %6554 = vmatpush1.bf16.msra.mxu0 %v5845
        %6555 = vmatprep.subr.bf16.mxu0 %v5840
        %6556 = vmatpush1.bf16.msra.mxu0 %v5839
        %6557 = vmatprep.subr.bf16.mxu0 %v5834
        %6558 = vmatpush1.bf16.msra.mxu0 %v5833
        %6559 = vmatprep.subr.bf16.mxu0 %v5828
        %6560 = vmatpush1.bf16.msra.mxu0 %v5827
        %6561 = vmatprep.subr.bf16.mxu0 %v5918
        %6562 = vmatpush2.bf16.msra.mxu0 %v5917
        %6563 = vmatprep.subr.bf16.mxu0 %v5912
        %6564 = vmatpush2.bf16.msra.mxu0 %v5911
        %6565 = vmatprep.subr.bf16.mxu0 %v5906
        %6566 = vmatpush2.bf16.msra.mxu0 %v5905
        %6567 = vmatprep.subr.bf16.mxu0 %v5900
        %6568 = vmatpush2.bf16.msra.mxu0 %v5899
        %6569 = vmatprep.subr.bf16.mxu0 %v5894
        %6570 = vmatpush2.bf16.msra.mxu0 %v5893
        %6571 = vmatprep.subr.bf16.mxu0 %v5888
        %6572 = vmatpush2.bf16.msra.mxu0 %v5887
        %6573 = vmatprep.subr.bf16.mxu0 %v5882
        %6574 = vmatpush2.bf16.msra.mxu0 %v5881
        %6575 = vmatprep.subr.bf16.mxu0 %v5876
        %6576 = vmatpush2.bf16.msra.mxu0 %v5875
        %6577 = vmatprep.mubr.bf16.mxu0 %v4072
        %6578 = vmatmul.mubr.bf16.gmra.mxu0 %v4071
        %v6579 = vpop.f32.mrf.mxu0
        %v6580 = vadd.f32 %v6509, %v6579
        %v6581 = vpop.f32.mrf.mxu0
        %v6582 = vadd.f32 %v6511, %v6581
        %v6583 = vpop.f32.mrf.mxu0
        %v6584 = vadd.f32 %v6513, %v6583
        %v6585 = vpop.f32.mrf.mxu0
        %v6586 = vadd.f32 %v6515, %v6585
        %6587 = vmatprep.mubr.bf16.mxu0 %v4080
        %6588 = vmatmul.mubr.bf16.gmra.mxu0 %v4079
        %v6589 = vpop.f32.mrf.mxu0
        %v6590 = vadd.f32 %v6519, %v6589
        %v6591 = vpop.f32.mrf.mxu0
        %v6592 = vadd.f32 %v6521, %v6591
        %v6593 = vpop.f32.mrf.mxu0
        %v6594 = vadd.f32 %v6523, %v6593
        %v6595 = vpop.f32.mrf.mxu0
        %v6596 = vadd.f32 %v6525, %v6595
        %6597 = vmatprep.mubr.bf16.mxu0 %v4088
        %6598 = vmatmul.mubr.bf16.gmra.mxu0 %v4087
        %v6599 = vpop.f32.mrf.mxu0
        %v6600 = vadd.f32 %v6529, %v6599
        %v6601 = vpop.f32.mrf.mxu0
        %v6602 = vadd.f32 %v6531, %v6601
        %v6603 = vpop.f32.mrf.mxu0
        %v6604 = vadd.f32 %v6533, %v6603
        %v6605 = vpop.f32.mrf.mxu0
        %v6606 = vadd.f32 %v6535, %v6605
        %6607 = vmatprep.mubr.bf16.mxu0 %v4096
        %6608 = vmatmul.mubr.bf16.gmra.mxu0 %v4095
        %v6609 = vpop.f32.mrf.mxu0
        %v6610 = vadd.f32 %v6539, %v6609
        %v6611 = vpop.f32.mrf.mxu0
        %v6612 = vadd.f32 %v6541, %v6611
        %v6613 = vpop.f32.mrf.mxu0
        %v6614 = vpop.f32.mrf.mxu0
        %6615 = vdwg.mxu0
        %6616 = vmatprep.subr.bf16.mxu0 %v5966
        %6617 = vmatpush1.bf16.msra.mxu0 %v5965
        %6618 = vmatprep.subr.bf16.mxu0 %v5960
        %6619 = vmatpush1.bf16.msra.mxu0 %v5959
        %6620 = vmatprep.subr.bf16.mxu0 %v5954
        %6621 = vmatpush1.bf16.msra.mxu0 %v5953
        %6622 = vmatprep.subr.bf16.mxu0 %v5948
        %6623 = vmatpush1.bf16.msra.mxu0 %v5947
        %6624 = vmatprep.subr.bf16.mxu0 %v5942
        %6625 = vmatpush1.bf16.msra.mxu0 %v5941
        %6626 = vmatprep.subr.bf16.mxu0 %v5936
        %6627 = vmatpush1.bf16.msra.mxu0 %v5935
        %6628 = vmatprep.subr.bf16.mxu0 %v5930
        %6629 = vmatpush1.bf16.msra.mxu0 %v5929
        %6630 = vmatprep.subr.bf16.mxu0 %v5924
        %6631 = vmatpush1.bf16.msra.mxu0 %v5923
        %6632 = vmatprep.subr.bf16.mxu0 %v6014
        %6633 = vmatpush2.bf16.msra.mxu0 %v6013
        %6634 = vmatprep.subr.bf16.mxu0 %v6008
        %6635 = vmatpush2.bf16.msra.mxu0 %v6007
        %6636 = vmatprep.subr.bf16.mxu0 %v6002
        %6637 = vmatpush2.bf16.msra.mxu0 %v6001
        %6638 = vmatprep.subr.bf16.mxu0 %v5996
        %6639 = vmatpush2.bf16.msra.mxu0 %v5995
        %6640 = vmatprep.subr.bf16.mxu0 %v5990
        %6641 = vmatpush2.bf16.msra.mxu0 %v5989
        %6642 = vmatprep.subr.bf16.mxu0 %v5984
        %6643 = vmatpush2.bf16.msra.mxu0 %v5983
        %6644 = vmatprep.subr.bf16.mxu0 %v5978
        %6645 = vmatpush2.bf16.msra.mxu0 %v5977
        %6646 = vmatprep.subr.bf16.mxu0 %v5972
        %6647 = vmatpush2.bf16.msra.mxu0 %v5971
        %6648 = vmatprep.mubr.bf16.mxu0 %v4074
        %6649 = vmatmul.mubr.bf16.gmra.mxu0 %v4073
        %v6650 = vpop.f32.mrf.mxu0
        %v6651 = vadd.f32 %v6580, %v6650
        %v6652 = vpop.f32.mrf.mxu0
        %v6653 = vadd.f32 %v6582, %v6652
        %v6654 = vpop.f32.mrf.mxu0
        %v6655 = vadd.f32 %v6584, %v6654
        %v6656 = vpop.f32.mrf.mxu0
        %v6657 = vadd.f32 %v6586, %v6656
        %6658 = vmatprep.mubr.bf16.mxu0 %v4082
        %6659 = vmatmul.mubr.bf16.gmra.mxu0 %v4081
        %v6660 = vpop.f32.mrf.mxu0
        %v6661 = vadd.f32 %v6590, %v6660
        %v6662 = vpop.f32.mrf.mxu0
        %v6663 = vadd.f32 %v6592, %v6662
        %v6664 = vpop.f32.mrf.mxu0
        %v6665 = vadd.f32 %v6594, %v6664
        %v6666 = vpop.f32.mrf.mxu0
        %v6667 = vadd.f32 %v6596, %v6666
        %6668 = vmatprep.mubr.bf16.mxu0 %v4090
        %6669 = vmatmul.mubr.bf16.gmra.mxu0 %v4089
        %v6670 = vpop.f32.mrf.mxu0
        %v6671 = vadd.f32 %v6600, %v6670
        %v6672 = vpop.f32.mrf.mxu0
        %v6673 = vadd.f32 %v6602, %v6672
        %v6674 = vpop.f32.mrf.mxu0
        %v6675 = vadd.f32 %v6604, %v6674
        %v6676 = vpop.f32.mrf.mxu0
        %v6677 = vadd.f32 %v6606, %v6676
        %6678 = vmatprep.mubr.bf16.mxu0 %v4098
        %6679 = vmatmul.mubr.bf16.gmra.mxu0 %v4097
        %v6680 = vpop.f32.mrf.mxu0
        %v6681 = vadd.f32 %v6610, %v6680
        %v6682 = vpop.f32.mrf.mxu0
        %v6683 = vadd.f32 %v6612, %v6682
        %v6684 = vpop.f32.mrf.mxu0
        %v6685 = vpop.f32.mrf.mxu0
        %6686 = vdwg.mxu0
        %6687 = vmatprep.subr.bf16.mxu0 %v5680
        %6688 = vmatpush1.bf16.msra.mxu0 %v5679
        %6689 = vmatprep.subr.bf16.mxu0 %v5674
        %6690 = vmatpush1.bf16.msra.mxu0 %v5673
        %6691 = vmatprep.subr.bf16.mxu0 %v5668
        %6692 = vmatpush1.bf16.msra.mxu0 %v5667
        %6693 = vmatprep.subr.bf16.mxu0 %v5662
        %6694 = vmatpush1.bf16.msra.mxu0 %v5661
        %6695 = vmatprep.subr.bf16.mxu0 %v5656
        %6696 = vmatpush1.bf16.msra.mxu0 %v5655
        %6697 = vmatprep.subr.bf16.mxu0 %v5650
        %6698 = vmatpush1.bf16.msra.mxu0 %v5649
        %6699 = vmatprep.subr.bf16.mxu0 %v5644
        %6700 = vmatpush1.bf16.msra.mxu0 %v5643
        %6701 = vmatprep.subr.bf16.mxu0 %v5638
        %6702 = vmatpush1.bf16.msra.mxu0 %v5637
        %6703 = vmatprep.subr.bf16.mxu0 %v5728
        %6704 = vmatpush2.bf16.msra.mxu0 %v5727
        %6705 = vmatprep.subr.bf16.mxu0 %v5722
        %6706 = vmatpush2.bf16.msra.mxu0 %v5721
        %6707 = vmatprep.subr.bf16.mxu0 %v5716
        %6708 = vmatpush2.bf16.msra.mxu0 %v5715
        %6709 = vmatprep.subr.bf16.mxu0 %v5710
        %6710 = vmatpush2.bf16.msra.mxu0 %v5709
        %6711 = vmatprep.subr.bf16.mxu0 %v5704
        %6712 = vmatpush2.bf16.msra.mxu0 %v5703
        %6713 = vmatprep.subr.bf16.mxu0 %v5698
        %6714 = vmatpush2.bf16.msra.mxu0 %v5697
        %6715 = vmatprep.subr.bf16.mxu0 %v5692
        %6716 = vmatpush2.bf16.msra.mxu0 %v5691
        %6717 = vmatprep.subr.bf16.mxu0 %v5686
        %6718 = vmatpush2.bf16.msra.mxu0 %v5685
        %6719 = vmatprep.mubr.bf16.mxu0 %v4068
        %6720 = vmatmul.mubr.bf16.gmra.mxu0 %v4067
        %v6721 = vpop.f32.mrf.mxu0
        %v6722 = vadd.f32 0.0, %v6721
        %v6723 = vpop.f32.mrf.mxu0
        %v6724 = vadd.f32 0.0, %v6723
        %v6725 = vpop.f32.mrf.mxu0
        %v6726 = vadd.f32 0.0, %v6725
        %v6727 = vpop.f32.mrf.mxu0
        %v6728 = vadd.f32 0.0, %v6727
        %6729 = vmatprep.mubr.bf16.mxu0 %v4076
        %6730 = vmatmul.mubr.bf16.gmra.mxu0 %v4075
        %v6731 = vpop.f32.mrf.mxu0
        %v6732 = vadd.f32 0.0, %v6731
        %v6733 = vpop.f32.mrf.mxu0
        %v6734 = vadd.f32 0.0, %v6733
        %v6735 = vpop.f32.mrf.mxu0
        %v6736 = vadd.f32 0.0, %v6735
        %v6737 = vpop.f32.mrf.mxu0
        %v6738 = vadd.f32 0.0, %v6737
        %6739 = vmatprep.mubr.bf16.mxu0 %v4084
        %6740 = vmatmul.mubr.bf16.gmra.mxu0 %v4083
        %v6741 = vpop.f32.mrf.mxu0
        %v6742 = vadd.f32 0.0, %v6741
        %v6743 = vpop.f32.mrf.mxu0
        %v6744 = vadd.f32 0.0, %v6743
        %v6745 = vpop.f32.mrf.mxu0
        %v6746 = vadd.f32 0.0, %v6745
        %v6747 = vpop.f32.mrf.mxu0
        %v6748 = vadd.f32 0.0, %v6747
        %6749 = vmatprep.mubr.bf16.mxu0 %v4092
        %6750 = vmatmul.mubr.bf16.gmra.mxu0 %v4091
        %v6751 = vpop.f32.mrf.mxu0
        %v6752 = vadd.f32 0.0, %v6751
        %v6753 = vpop.f32.mrf.mxu0
        %v6754 = vadd.f32 0.0, %v6753
        %v6755 = vpop.f32.mrf.mxu0
        %v6756 = vpop.f32.mrf.mxu0
        %6757 = vdwg.mxu0
        %6758 = vmatprep.subr.bf16.mxu0 %v5776
        %6759 = vmatpush1.bf16.msra.mxu0 %v5775
        %6760 = vmatprep.subr.bf16.mxu0 %v5770
        %6761 = vmatpush1.bf16.msra.mxu0 %v5769
        %6762 = vmatprep.subr.bf16.mxu0 %v5764
        %6763 = vmatpush1.bf16.msra.mxu0 %v5763
        %6764 = vmatprep.subr.bf16.mxu0 %v5758
        %6765 = vmatpush1.bf16.msra.mxu0 %v5757
        %6766 = vmatprep.subr.bf16.mxu0 %v5752
        %6767 = vmatpush1.bf16.msra.mxu0 %v5751
        %6768 = vmatprep.subr.bf16.mxu0 %v5746
        %6769 = vmatpush1.bf16.msra.mxu0 %v5745
        %6770 = vmatprep.subr.bf16.mxu0 %v5740
        %6771 = vmatpush1.bf16.msra.mxu0 %v5739
        %6772 = vmatprep.subr.bf16.mxu0 %v5734
        %6773 = vmatpush1.bf16.msra.mxu0 %v5733
        %6774 = vmatprep.subr.bf16.mxu0 %v5824
        %6775 = vmatpush2.bf16.msra.mxu0 %v5823
        %6776 = vmatprep.subr.bf16.mxu0 %v5818
        %6777 = vmatpush2.bf16.msra.mxu0 %v5817
        %6778 = vmatprep.subr.bf16.mxu0 %v5812
        %6779 = vmatpush2.bf16.msra.mxu0 %v5811
        %6780 = vmatprep.subr.bf16.mxu0 %v5806
        %6781 = vmatpush2.bf16.msra.mxu0 %v5805
        %6782 = vmatprep.subr.bf16.mxu0 %v5800
        %6783 = vmatpush2.bf16.msra.mxu0 %v5799
        %6784 = vmatprep.subr.bf16.mxu0 %v5794
        %6785 = vmatpush2.bf16.msra.mxu0 %v5793
        %6786 = vmatprep.subr.bf16.mxu0 %v5788
        %6787 = vmatpush2.bf16.msra.mxu0 %v5787
        %6788 = vmatprep.subr.bf16.mxu0 %v5782
        %6789 = vmatpush2.bf16.msra.mxu0 %v5781
        %6790 = vmatprep.mubr.bf16.mxu0 %v4070
        %6791 = vmatmul.mubr.bf16.gmra.mxu0 %v4069
        %v6792 = vpop.f32.mrf.mxu0
        %v6793 = vadd.f32 %v6722, %v6792
        %v6794 = vpop.f32.mrf.mxu0
        %v6795 = vadd.f32 %v6724, %v6794
        %v6796 = vpop.f32.mrf.mxu0
        %v6797 = vadd.f32 %v6726, %v6796
        %v6798 = vpop.f32.mrf.mxu0
        %v6799 = vadd.f32 %v6728, %v6798
        %6800 = vmatprep.mubr.bf16.mxu0 %v4078
        %6801 = vmatmul.mubr.bf16.gmra.mxu0 %v4077
        %v6802 = vpop.f32.mrf.mxu0
        %v6803 = vadd.f32 %v6732, %v6802
        %v6804 = vpop.f32.mrf.mxu0
        %v6805 = vadd.f32 %v6734, %v6804
        %v6806 = vpop.f32.mrf.mxu0
        %v6807 = vadd.f32 %v6736, %v6806
        %v6808 = vpop.f32.mrf.mxu0
        %v6809 = vadd.f32 %v6738, %v6808
        %6810 = vmatprep.mubr.bf16.mxu0 %v4086
        %6811 = vmatmul.mubr.bf16.gmra.mxu0 %v4085
        %v6812 = vpop.f32.mrf.mxu0
        %v6813 = vadd.f32 %v6742, %v6812
        %v6814 = vpop.f32.mrf.mxu0
        %v6815 = vadd.f32 %v6744, %v6814
        %v6816 = vpop.f32.mrf.mxu0
        %v6817 = vadd.f32 %v6746, %v6816
        %v6818 = vpop.f32.mrf.mxu0
        %v6819 = vadd.f32 %v6748, %v6818
        %6820 = vmatprep.mubr.bf16.mxu0 %v4094
        %6821 = vmatmul.mubr.bf16.gmra.mxu0 %v4093
        %v6822 = vpop.f32.mrf.mxu0
        %v6823 = vadd.f32 %v6752, %v6822
        %v6824 = vpop.f32.mrf.mxu0
        %v6825 = vadd.f32 %v6754, %v6824
        %v6826 = vpop.f32.mrf.mxu0
        %v6827 = vpop.f32.mrf.mxu0
        %6828 = vdwg.mxu0
        %6829 = vmatprep.subr.bf16.mxu0 %v5872
        %6830 = vmatpush1.bf16.msra.mxu0 %v5871
        %6831 = vmatprep.subr.bf16.mxu0 %v5866
        %6832 = vmatpush1.bf16.msra.mxu0 %v5865
        %6833 = vmatprep.subr.bf16.mxu0 %v5860
        %6834 = vmatpush1.bf16.msra.mxu0 %v5859
        %6835 = vmatprep.subr.bf16.mxu0 %v5854
        %6836 = vmatpush1.bf16.msra.mxu0 %v5853
        %6837 = vmatprep.subr.bf16.mxu0 %v5848
        %6838 = vmatpush1.bf16.msra.mxu0 %v5847
        %6839 = vmatprep.subr.bf16.mxu0 %v5842
        %6840 = vmatpush1.bf16.msra.mxu0 %v5841
        %6841 = vmatprep.subr.bf16.mxu0 %v5836
        %6842 = vmatpush1.bf16.msra.mxu0 %v5835
        %6843 = vmatprep.subr.bf16.mxu0 %v5830
        %6844 = vmatpush1.bf16.msra.mxu0 %v5829
        %6845 = vmatprep.subr.bf16.mxu0 %v5920
        %6846 = vmatpush2.bf16.msra.mxu0 %v5919
        %6847 = vmatprep.subr.bf16.mxu0 %v5914
        %6848 = vmatpush2.bf16.msra.mxu0 %v5913
        %6849 = vmatprep.subr.bf16.mxu0 %v5908
        %6850 = vmatpush2.bf16.msra.mxu0 %v5907
        %6851 = vmatprep.subr.bf16.mxu0 %v5902
        %6852 = vmatpush2.bf16.msra.mxu0 %v5901
        %6853 = vmatprep.subr.bf16.mxu0 %v5896
        %6854 = vmatpush2.bf16.msra.mxu0 %v5895
        %6855 = vmatprep.subr.bf16.mxu0 %v5890
        %6856 = vmatpush2.bf16.msra.mxu0 %v5889
        %6857 = vmatprep.subr.bf16.mxu0 %v5884
        %6858 = vmatpush2.bf16.msra.mxu0 %v5883
        %6859 = vmatprep.subr.bf16.mxu0 %v5878
        %6860 = vmatpush2.bf16.msra.mxu0 %v5877
        %6861 = vmatprep.mubr.bf16.mxu0 %v4072
        %6862 = vmatmul.mubr.bf16.gmra.mxu0 %v4071
        %v6863 = vpop.f32.mrf.mxu0
        %v6864 = vadd.f32 %v6793, %v6863
        %v6865 = vpop.f32.mrf.mxu0
        %v6866 = vadd.f32 %v6795, %v6865
        %v6867 = vpop.f32.mrf.mxu0
        %v6868 = vadd.f32 %v6797, %v6867
        %v6869 = vpop.f32.mrf.mxu0
        %v6870 = vadd.f32 %v6799, %v6869
        %6871 = vmatprep.mubr.bf16.mxu0 %v4080
        %6872 = vmatmul.mubr.bf16.gmra.mxu0 %v4079
        %v6873 = vpop.f32.mrf.mxu0
        %v6874 = vadd.f32 %v6803, %v6873
        %v6875 = vpop.f32.mrf.mxu0
        %v6876 = vadd.f32 %v6805, %v6875
        %v6877 = vpop.f32.mrf.mxu0
        %v6878 = vadd.f32 %v6807, %v6877
        %v6879 = vpop.f32.mrf.mxu0
        %v6880 = vadd.f32 %v6809, %v6879
        %6881 = vmatprep.mubr.bf16.mxu0 %v4088
        %6882 = vmatmul.mubr.bf16.gmra.mxu0 %v4087
        %v6883 = vpop.f32.mrf.mxu0
        %v6884 = vadd.f32 %v6813, %v6883
        %v6885 = vpop.f32.mrf.mxu0
        %v6886 = vadd.f32 %v6815, %v6885
        %v6887 = vpop.f32.mrf.mxu0
        %v6888 = vadd.f32 %v6817, %v6887
        %v6889 = vpop.f32.mrf.mxu0
        %v6890 = vadd.f32 %v6819, %v6889
        %6891 = vmatprep.mubr.bf16.mxu0 %v4096
        %6892 = vmatmul.mubr.bf16.gmra.mxu0 %v4095
        %v6893 = vpop.f32.mrf.mxu0
        %v6894 = vadd.f32 %v6823, %v6893
        %v6895 = vpop.f32.mrf.mxu0
        %v6896 = vadd.f32 %v6825, %v6895
        %v6897 = vpop.f32.mrf.mxu0
        %v6898 = vpop.f32.mrf.mxu0
        %6899 = vdwg.mxu0
        %6900 = vmatprep.subr.bf16.mxu0 %v5968
        %6901 = vmatpush1.bf16.msra.mxu0 %v5967
        %6902 = vmatprep.subr.bf16.mxu0 %v5962
        %6903 = vmatpush1.bf16.msra.mxu0 %v5961
        %6904 = vmatprep.subr.bf16.mxu0 %v5956
        %6905 = vmatpush1.bf16.msra.mxu0 %v5955
        %6906 = vmatprep.subr.bf16.mxu0 %v5950
        %6907 = vmatpush1.bf16.msra.mxu0 %v5949
        %6908 = vmatprep.subr.bf16.mxu0 %v5944
        %6909 = vmatpush1.bf16.msra.mxu0 %v5943
        %6910 = vmatprep.subr.bf16.mxu0 %v5938
        %6911 = vmatpush1.bf16.msra.mxu0 %v5937
        %6912 = vmatprep.subr.bf16.mxu0 %v5932
        %6913 = vmatpush1.bf16.msra.mxu0 %v5931
        %6914 = vmatprep.subr.bf16.mxu0 %v5926
        %6915 = vmatpush1.bf16.msra.mxu0 %v5925
        %6916 = vmatprep.subr.bf16.mxu0 %v6016
        %6917 = vmatpush2.bf16.msra.mxu0 %v6015
        %6918 = vmatprep.subr.bf16.mxu0 %v6010
        %6919 = vmatpush2.bf16.msra.mxu0 %v6009
        %6920 = vmatprep.subr.bf16.mxu0 %v6004
        %6921 = vmatpush2.bf16.msra.mxu0 %v6003
        %6922 = vmatprep.subr.bf16.mxu0 %v5998
        %6923 = vmatpush2.bf16.msra.mxu0 %v5997
        %6924 = vmatprep.subr.bf16.mxu0 %v5992
        %6925 = vmatpush2.bf16.msra.mxu0 %v5991
        %6926 = vmatprep.subr.bf16.mxu0 %v5986
        %6927 = vmatpush2.bf16.msra.mxu0 %v5985
        %6928 = vmatprep.subr.bf16.mxu0 %v5980
        %6929 = vmatpush2.bf16.msra.mxu0 %v5979
        %6930 = vmatprep.subr.bf16.mxu0 %v5974
        %6931 = vmatpush2.bf16.msra.mxu0 %v5973
        %6932 = vmatprep.mubr.bf16.mxu0 %v4074
        %6933 = vmatmul.mubr.bf16.gmra.mxu0 %v4073
        %v6934 = vpop.f32.mrf.mxu0
        %v6935 = vadd.f32 %v6864, %v6934
        %v6936 = vpop.f32.mrf.mxu0
        %v6937 = vadd.f32 %v6866, %v6936
        %v6938 = vpop.f32.mrf.mxu0
        %v6939 = vadd.f32 %v6868, %v6938
        %v6940 = vpop.f32.mrf.mxu0
        %v6941 = vadd.f32 %v6870, %v6940
        %6942 = vmatprep.mubr.bf16.mxu0 %v4082
        %6943 = vmatmul.mubr.bf16.gmra.mxu0 %v4081
        %v6944 = vpop.f32.mrf.mxu0
        %v6945 = vadd.f32 %v6874, %v6944
        %v6946 = vpop.f32.mrf.mxu0
        %v6947 = vadd.f32 %v6876, %v6946
        %v6948 = vpop.f32.mrf.mxu0
        %v6949 = vadd.f32 %v6878, %v6948
        %v6950 = vpop.f32.mrf.mxu0
        %v6951 = vadd.f32 %v6880, %v6950
        %6952 = vmatprep.mubr.bf16.mxu0 %v4090
        %6953 = vmatmul.mubr.bf16.gmra.mxu0 %v4089
        %v6954 = vpop.f32.mrf.mxu0
        %v6955 = vadd.f32 %v6884, %v6954
        %v6956 = vpop.f32.mrf.mxu0
        %v6957 = vadd.f32 %v6886, %v6956
        %v6958 = vpop.f32.mrf.mxu0
        %v6959 = vadd.f32 %v6888, %v6958
        %v6960 = vpop.f32.mrf.mxu0
        %v6961 = vadd.f32 %v6890, %v6960
        %6962 = vmatprep.mubr.bf16.mxu0 %v4098
        %6963 = vmatmul.mubr.bf16.gmra.mxu0 %v4097
        %v6964 = vpop.f32.mrf.mxu0
        %v6965 = vadd.f32 %v6894, %v6964
        %v6966 = vpop.f32.mrf.mxu0
        %v6967 = vadd.f32 %v6896, %v6966
        %v6968 = vpop.f32.mrf.mxu0
        %v6969 = vpop.f32.mrf.mxu0
        %6970 = vdwg.mxu0
        %6971 = vmatprep.subr.bf16.mxu0 %v5682
        %6972 = vmatpush1.bf16.msra.mxu0 %v5681
        %6973 = vmatprep.subr.bf16.mxu0 %v5676
        %6974 = vmatpush1.bf16.msra.mxu0 %v5675
        %6975 = vmatprep.subr.bf16.mxu0 %v5670
        %6976 = vmatpush1.bf16.msra.mxu0 %v5669
        %6977 = vmatprep.subr.bf16.mxu0 %v5664
        %6978 = vmatpush1.bf16.msra.mxu0 %v5663
        %6979 = vmatprep.subr.bf16.mxu0 %v5658
        %6980 = vmatpush1.bf16.msra.mxu0 %v5657
        %6981 = vmatprep.subr.bf16.mxu0 %v5652
        %6982 = vmatpush1.bf16.msra.mxu0 %v5651
        %6983 = vmatprep.subr.bf16.mxu0 %v5646
        %6984 = vmatpush1.bf16.msra.mxu0 %v5645
        %6985 = vmatprep.subr.bf16.mxu0 %v5640
        %6986 = vmatpush1.bf16.msra.mxu0 %v5639
        %6987 = vmatprep.subr.bf16.mxu0 %v5730
        %6988 = vmatpush2.bf16.msra.mxu0 %v5729
        %6989 = vmatprep.subr.bf16.mxu0 %v5724
        %6990 = vmatpush2.bf16.msra.mxu0 %v5723
        %6991 = vmatprep.subr.bf16.mxu0 %v5718
        %6992 = vmatpush2.bf16.msra.mxu0 %v5717
        %6993 = vmatprep.subr.bf16.mxu0 %v5712
        %6994 = vmatpush2.bf16.msra.mxu0 %v5711
        %6995 = vmatprep.subr.bf16.mxu0 %v5706
        %6996 = vmatpush2.bf16.msra.mxu0 %v5705
        %6997 = vmatprep.subr.bf16.mxu0 %v5700
        %6998 = vmatpush2.bf16.msra.mxu0 %v5699
        %6999 = vmatprep.subr.bf16.mxu0 %v5694
        %7000 = vmatpush2.bf16.msra.mxu0 %v5693
        %7001 = vmatprep.subr.bf16.mxu0 %v5688
        %7002 = vmatpush2.bf16.msra.mxu0 %v5687
        %7003 = vmatprep.mubr.bf16.mxu0 %v4068
        %7004 = vmatmul.mubr.bf16.gmra.mxu0 %v4067
        %v7005 = vpop.f32.mrf.mxu0
        %v7006 = vadd.f32 0.0, %v7005
        %v7007 = vpop.f32.mrf.mxu0
        %v7008 = vadd.f32 0.0, %v7007
        %v7009 = vpop.f32.mrf.mxu0
        %v7010 = vadd.f32 0.0, %v7009
        %v7011 = vpop.f32.mrf.mxu0
        %v7012 = vadd.f32 0.0, %v7011
        %7013 = vmatprep.mubr.bf16.mxu0 %v4076
        %7014 = vmatmul.mubr.bf16.gmra.mxu0 %v4075
        %v7015 = vpop.f32.mrf.mxu0
        %v7016 = vadd.f32 0.0, %v7015
        %v7017 = vpop.f32.mrf.mxu0
        %v7018 = vadd.f32 0.0, %v7017
        %v7019 = vpop.f32.mrf.mxu0
        %v7020 = vadd.f32 0.0, %v7019
        %v7021 = vpop.f32.mrf.mxu0
        %v7022 = vadd.f32 0.0, %v7021
        %7023 = vmatprep.mubr.bf16.mxu0 %v4084
        %7024 = vmatmul.mubr.bf16.gmra.mxu0 %v4083
        %v7025 = vpop.f32.mrf.mxu0
        %v7026 = vadd.f32 0.0, %v7025
        %v7027 = vpop.f32.mrf.mxu0
        %v7028 = vadd.f32 0.0, %v7027
        %v7029 = vpop.f32.mrf.mxu0
        %v7030 = vadd.f32 0.0, %v7029
        %v7031 = vpop.f32.mrf.mxu0
        %v7032 = vadd.f32 0.0, %v7031
        %7033 = vmatprep.mubr.bf16.mxu0 %v4092
        %7034 = vmatmul.mubr.bf16.gmra.mxu0 %v4091
        %v7035 = vpop.f32.mrf.mxu0
        %v7036 = vadd.f32 0.0, %v7035
        %v7037 = vpop.f32.mrf.mxu0
        %v7038 = vadd.f32 0.0, %v7037
        %v7039 = vpop.f32.mrf.mxu0
        %v7040 = vpop.f32.mrf.mxu0
        %7041 = vdwg.mxu0
        %7042 = vmatprep.subr.bf16.mxu0 %v5778
        %7043 = vmatpush1.bf16.msra.mxu0 %v5777
        %7044 = vmatprep.subr.bf16.mxu0 %v5772
        %7045 = vmatpush1.bf16.msra.mxu0 %v5771
        %7046 = vmatprep.subr.bf16.mxu0 %v5766
        %7047 = vmatpush1.bf16.msra.mxu0 %v5765
        %7048 = vmatprep.subr.bf16.mxu0 %v5760
        %7049 = vmatpush1.bf16.msra.mxu0 %v5759
        %7050 = vmatprep.subr.bf16.mxu0 %v5754
        %7051 = vmatpush1.bf16.msra.mxu0 %v5753
        %7052 = vmatprep.subr.bf16.mxu0 %v5748
        %7053 = vmatpush1.bf16.msra.mxu0 %v5747
        %7054 = vmatprep.subr.bf16.mxu0 %v5742
        %7055 = vmatpush1.bf16.msra.mxu0 %v5741
        %7056 = vmatprep.subr.bf16.mxu0 %v5736
        %7057 = vmatpush1.bf16.msra.mxu0 %v5735
        %7058 = vmatprep.subr.bf16.mxu0 %v5826
        %7059 = vmatpush2.bf16.msra.mxu0 %v5825
        %7060 = vmatprep.subr.bf16.mxu0 %v5820
        %7061 = vmatpush2.bf16.msra.mxu0 %v5819
        %7062 = vmatprep.subr.bf16.mxu0 %v5814
        %7063 = vmatpush2.bf16.msra.mxu0 %v5813
        %7064 = vmatprep.subr.bf16.mxu0 %v5808
        %7065 = vmatpush2.bf16.msra.mxu0 %v5807
        %7066 = vmatprep.subr.bf16.mxu0 %v5802
        %7067 = vmatpush2.bf16.msra.mxu0 %v5801
        %7068 = vmatprep.subr.bf16.mxu0 %v5796
        %7069 = vmatpush2.bf16.msra.mxu0 %v5795
        %7070 = vmatprep.subr.bf16.mxu0 %v5790
        %7071 = vmatpush2.bf16.msra.mxu0 %v5789
        %7072 = vmatprep.subr.bf16.mxu0 %v5784
        %7073 = vmatpush2.bf16.msra.mxu0 %v5783
        %7074 = vmatprep.mubr.bf16.mxu0 %v4070
        %7075 = vmatmul.mubr.bf16.gmra.mxu0 %v4069
        %v7076 = vpop.f32.mrf.mxu0
        %v7077 = vadd.f32 %v7006, %v7076
        %v7078 = vpop.f32.mrf.mxu0
        %v7079 = vadd.f32 %v7008, %v7078
        %v7080 = vpop.f32.mrf.mxu0
        %v7081 = vadd.f32 %v7010, %v7080
        %v7082 = vpop.f32.mrf.mxu0
        %v7083 = vadd.f32 %v7012, %v7082
        %7084 = vmatprep.mubr.bf16.mxu0 %v4078
        %7085 = vmatmul.mubr.bf16.gmra.mxu0 %v4077
        %v7086 = vpop.f32.mrf.mxu0
        %v7087 = vadd.f32 %v7016, %v7086
        %v7088 = vpop.f32.mrf.mxu0
        %v7089 = vadd.f32 %v7018, %v7088
        %v7090 = vpop.f32.mrf.mxu0
        %v7091 = vadd.f32 %v7020, %v7090
        %v7092 = vpop.f32.mrf.mxu0
        %v7093 = vadd.f32 %v7022, %v7092
        %7094 = vmatprep.mubr.bf16.mxu0 %v4086
        %7095 = vmatmul.mubr.bf16.gmra.mxu0 %v4085
        %v7096 = vpop.f32.mrf.mxu0
        %v7097 = vadd.f32 %v7026, %v7096
        %v7098 = vpop.f32.mrf.mxu0
        %v7099 = vadd.f32 %v7028, %v7098
        %v7100 = vpop.f32.mrf.mxu0
        %v7101 = vadd.f32 %v7030, %v7100
        %v7102 = vpop.f32.mrf.mxu0
        %v7103 = vadd.f32 %v7032, %v7102
        %7104 = vmatprep.mubr.bf16.mxu0 %v4094
        %7105 = vmatmul.mubr.bf16.gmra.mxu0 %v4093
        %v7106 = vpop.f32.mrf.mxu0
        %v7107 = vadd.f32 %v7036, %v7106
        %v7108 = vpop.f32.mrf.mxu0
        %v7109 = vadd.f32 %v7038, %v7108
        %v7110 = vpop.f32.mrf.mxu0
        %v7111 = vpop.f32.mrf.mxu0
        %7112 = vdwg.mxu0
        %7113 = vmatprep.subr.bf16.mxu0 %v5874
        %7114 = vmatpush1.bf16.msra.mxu0 %v5873
        %7115 = vmatprep.subr.bf16.mxu0 %v5868
        %7116 = vmatpush1.bf16.msra.mxu0 %v5867
        %7117 = vmatprep.subr.bf16.mxu0 %v5862
        %7118 = vmatpush1.bf16.msra.mxu0 %v5861
        %7119 = vmatprep.subr.bf16.mxu0 %v5856
        %7120 = vmatpush1.bf16.msra.mxu0 %v5855
        %7121 = vmatprep.subr.bf16.mxu0 %v5850
        %7122 = vmatpush1.bf16.msra.mxu0 %v5849
        %7123 = vmatprep.subr.bf16.mxu0 %v5844
        %7124 = vmatpush1.bf16.msra.mxu0 %v5843
        %7125 = vmatprep.subr.bf16.mxu0 %v5838
        %7126 = vmatpush1.bf16.msra.mxu0 %v5837
        %7127 = vmatprep.subr.bf16.mxu0 %v5832
        %7128 = vmatpush1.bf16.msra.mxu0 %v5831
        %7129 = vmatprep.subr.bf16.mxu0 %v5922
        %7130 = vmatpush2.bf16.msra.mxu0 %v5921
        %7131 = vmatprep.subr.bf16.mxu0 %v5916
        %7132 = vmatpush2.bf16.msra.mxu0 %v5915
        %7133 = vmatprep.subr.bf16.mxu0 %v5910
        %7134 = vmatpush2.bf16.msra.mxu0 %v5909
        %7135 = vmatprep.subr.bf16.mxu0 %v5904
        %7136 = vmatpush2.bf16.msra.mxu0 %v5903
        %7137 = vmatprep.subr.bf16.mxu0 %v5898
        %7138 = vmatpush2.bf16.msra.mxu0 %v5897
        %7139 = vmatprep.subr.bf16.mxu0 %v5892
        %7140 = vmatpush2.bf16.msra.mxu0 %v5891
        %7141 = vmatprep.subr.bf16.mxu0 %v5886
        %7142 = vmatpush2.bf16.msra.mxu0 %v5885
        %7143 = vmatprep.subr.bf16.mxu0 %v5880
        %7144 = vmatpush2.bf16.msra.mxu0 %v5879
        %7145 = vmatprep.mubr.bf16.mxu0 %v4072
        %7146 = vmatmul.mubr.bf16.gmra.mxu0 %v4071
        %v7147 = vpop.f32.mrf.mxu0
        %v7148 = vadd.f32 %v7077, %v7147
        %v7149 = vpop.f32.mrf.mxu0
        %v7150 = vadd.f32 %v7079, %v7149
        %v7151 = vpop.f32.mrf.mxu0
        %v7152 = vadd.f32 %v7081, %v7151
        %v7153 = vpop.f32.mrf.mxu0
        %v7154 = vadd.f32 %v7083, %v7153
        %7155 = vmatprep.mubr.bf16.mxu0 %v4080
        %7156 = vmatmul.mubr.bf16.gmra.mxu0 %v4079
        %v7157 = vpop.f32.mrf.mxu0
        %v7158 = vadd.f32 %v7087, %v7157
        %v7159 = vpop.f32.mrf.mxu0
        %v7160 = vadd.f32 %v7089, %v7159
        %v7161 = vpop.f32.mrf.mxu0
        %v7162 = vadd.f32 %v7091, %v7161
        %v7163 = vpop.f32.mrf.mxu0
        %v7164 = vadd.f32 %v7093, %v7163
        %7165 = vmatprep.mubr.bf16.mxu0 %v4088
        %7166 = vmatmul.mubr.bf16.gmra.mxu0 %v4087
        %v7167 = vpop.f32.mrf.mxu0
        %v7168 = vadd.f32 %v7097, %v7167
        %v7169 = vpop.f32.mrf.mxu0
        %v7170 = vadd.f32 %v7099, %v7169
        %v7171 = vpop.f32.mrf.mxu0
        %v7172 = vadd.f32 %v7101, %v7171
        %v7173 = vpop.f32.mrf.mxu0
        %v7174 = vadd.f32 %v7103, %v7173
        %7175 = vmatprep.mubr.bf16.mxu0 %v4096
        %7176 = vmatmul.mubr.bf16.gmra.mxu0 %v4095
        %v7177 = vpop.f32.mrf.mxu0
        %v7178 = vadd.f32 %v7107, %v7177
        %v7179 = vpop.f32.mrf.mxu0
        %v7180 = vadd.f32 %v7109, %v7179
        %v7181 = vpop.f32.mrf.mxu0
        %v7182 = vpop.f32.mrf.mxu0
        %7183 = vdwg.mxu0
        %7184 = vmatprep.subr.bf16.mxu0 %v5970
        %7185 = vmatpush1.bf16.msra.mxu0 %v5969
        %7186 = vmatprep.subr.bf16.mxu0 %v5964
        %7187 = vmatpush1.bf16.msra.mxu0 %v5963
        %7188 = vmatprep.subr.bf16.mxu0 %v5958
        %7189 = vmatpush1.bf16.msra.mxu0 %v5957
        %7190 = vmatprep.subr.bf16.mxu0 %v5952
        %7191 = vmatpush1.bf16.msra.mxu0 %v5951
        %7192 = vmatprep.subr.bf16.mxu0 %v5946
        %7193 = vmatpush1.bf16.msra.mxu0 %v5945
        %7194 = vmatprep.subr.bf16.mxu0 %v5940
        %7195 = vmatpush1.bf16.msra.mxu0 %v5939
        %7196 = vmatprep.subr.bf16.mxu0 %v5934
        %7197 = vmatpush1.bf16.msra.mxu0 %v5933
        %7198 = vmatprep.subr.bf16.mxu0 %v5928
        %7199 = vmatpush1.bf16.msra.mxu0 %v5927
        %7200 = vmatprep.subr.bf16.mxu0 %v6018
        %7201 = vmatpush2.bf16.msra.mxu0 %v6017
        %7202 = vmatprep.subr.bf16.mxu0 %v6012
        %7203 = vmatpush2.bf16.msra.mxu0 %v6011
        %7204 = vmatprep.subr.bf16.mxu0 %v6006
        %7205 = vmatpush2.bf16.msra.mxu0 %v6005
        %7206 = vmatprep.subr.bf16.mxu0 %v6000
        %7207 = vmatpush2.bf16.msra.mxu0 %v5999
        %7208 = vmatprep.subr.bf16.mxu0 %v5994
        %7209 = vmatpush2.bf16.msra.mxu0 %v5993
        %7210 = vmatprep.subr.bf16.mxu0 %v5988
        %7211 = vmatpush2.bf16.msra.mxu0 %v5987
        %7212 = vmatprep.subr.bf16.mxu0 %v5982
        %7213 = vmatpush2.bf16.msra.mxu0 %v5981
        %7214 = vmatprep.subr.bf16.mxu0 %v5976
        %7215 = vmatpush2.bf16.msra.mxu0 %v5975
        %7216 = vmatprep.mubr.bf16.mxu0 %v4074
        %7217 = vmatmul.mubr.bf16.gmra.mxu0 %v4073
        %v7218 = vpop.f32.mrf.mxu0
        %v7219 = vadd.f32 %v7148, %v7218
        %v7220 = vpop.f32.mrf.mxu0
        %v7221 = vadd.f32 %v7150, %v7220
        %v7222 = vpop.f32.mrf.mxu0
        %v7223 = vadd.f32 %v7152, %v7222
        %v7224 = vpop.f32.mrf.mxu0
        %v7225 = vadd.f32 %v7154, %v7224
        %7226 = vmatprep.mubr.bf16.mxu0 %v4082
        %7227 = vmatmul.mubr.bf16.gmra.mxu0 %v4081
        %v7228 = vpop.f32.mrf.mxu0
        %v7229 = vadd.f32 %v7158, %v7228
        %v7230 = vpop.f32.mrf.mxu0
        %v7231 = vadd.f32 %v7160, %v7230
        %v7232 = vpop.f32.mrf.mxu0
        %v7233 = vadd.f32 %v7162, %v7232
        %v7234 = vpop.f32.mrf.mxu0
        %v7235 = vadd.f32 %v7164, %v7234
        %7236 = vmatprep.mubr.bf16.mxu0 %v4090
        %7237 = vmatmul.mubr.bf16.gmra.mxu0 %v4089
        %v7238 = vpop.f32.mrf.mxu0
        %v7239 = vadd.f32 %v7168, %v7238
        %v7240 = vpop.f32.mrf.mxu0
        %v7241 = vadd.f32 %v7170, %v7240
        %v7242 = vpop.f32.mrf.mxu0
        %v7243 = vadd.f32 %v7172, %v7242
        %v7244 = vpop.f32.mrf.mxu0
        %v7245 = vadd.f32 %v7174, %v7244
        %7246 = vmatprep.mubr.bf16.mxu0 %v4098
        %7247 = vmatmul.mubr.bf16.gmra.mxu0 %v4097
        %v7248 = vpop.f32.mrf.mxu0
        %v7249 = vadd.f32 %v7178, %v7248
        %v7250 = vpop.f32.mrf.mxu0
        %v7251 = vadd.f32 %v7180, %v7250
        %v7252 = vpop.f32.mrf.mxu0
        %v7253 = vpop.f32.mrf.mxu0
        %7254 = vdwg.mxu0
        %v7255 = vadd.f32 %v4025, %v6651
        %v7256 = vadd.f32 %v4026, %v6653
        %v7257 = vadd.f32 %v4027, %v6935
        %v7258 = vadd.f32 %v4028, %v6937
        %v7259 = vadd.f32 %v4029, %v7219
        %v7260 = vadd.f32 %v4030, %v7221
        %v7261 = vadd.f32 %v4031, %v6655
        %v7262 = vadd.f32 %v4032, %v6657
        %v7263 = vadd.f32 %v4033, %v6939
        %v7264 = vadd.f32 %v4034, %v6941
        %v7265 = vadd.f32 %v4035, %v7223
        %v7266 = vadd.f32 %v4036, %v7225
        %v7267 = vadd.f32 %v4037, %v6661
        %v7268 = vadd.f32 %v4038, %v6663
        %v7269 = vadd.f32 %v4039, %v6945
        %v7270 = vadd.f32 %v4040, %v6947
        %v7271 = vadd.f32 %v4041, %v7229
        %v7272 = vadd.f32 %v4042, %v7231
        %v7273 = vadd.f32 %v4043, %v6665
        %v7274 = vadd.f32 %v4044, %v6667
        %v7275 = vadd.f32 %v4045, %v6949
        %v7276 = vadd.f32 %v4046, %v6951
        %v7277 = vadd.f32 %v4047, %v7233
        %v7278 = vadd.f32 %v4048, %v7235
        %v7279 = vadd.f32 %v4049, %v6671
        %v7280 = vadd.f32 %v4050, %v6673
        %v7281 = vadd.f32 %v4051, %v6955
        %v7282 = vadd.f32 %v4052, %v6957
        %v7283 = vadd.f32 %v4053, %v7239
        %v7284 = vadd.f32 %v4054, %v7241
        %v7285 = vadd.f32 %v4055, %v6675
        %v7286 = vadd.f32 %v4056, %v6677
        %v7287 = vadd.f32 %v4057, %v6959
        %v7288 = vadd.f32 %v4058, %v6961
        %v7289 = vadd.f32 %v4059, %v7243
        %v7290 = vadd.f32 %v4060, %v7245
        %v7291 = vadd.f32 %v4061, %v6681
        %v7292 = vadd.f32 %v4062, %v6683
        %v7293 = vadd.f32 %v4063, %v6965
        %v7294 = vadd.f32 %v4064, %v6967
        %v7295 = vadd.f32 %v4065, %v7249
        %v7296 = vadd.f32 %v4066, %v7251
        %7297 = vst [vmem:[#allocation2] sm:$0xff] %v7255
        %7298 = vst [vmem:[#allocation2 + $0x8] sm:$0xff] %v7256
        %7299 = vst [vmem:[#allocation2 + $0x10] sm:$0xff] %v7257
        %7300 = vst [vmem:[#allocation2 + $0x18] sm:$0xff] %v7258
        %7301 = vst [vmem:[#allocation2 + $0x20] sm:$0xff] %v7259
        %7302 = vst [vmem:[#allocation2 + $0x28] sm:$0xff] %v7260
        %7303 = vst [vmem:[#allocation2 + $0x30] sm:$0xff] %v7261
        %7304 = vst [vmem:[#allocation2 + $0x38] sm:$0xff] %v7262
        %7305 = vst [vmem:[#allocation2 + $0x40] sm:$0xff] %v7263
        %7306 = vst [vmem:[#allocation2 + $0x48] sm:$0xff] %v7264
        %7307 = vst [vmem:[#allocation2 + $0x50] sm:$0xff] %v7265
        %7308 = vst [vmem:[#allocation2 + $0x58] sm:$0xff] %v7266
        %7309 = vst [vmem:[#allocation2 + $0x60] sm:$0xff] %v7267
        %7310 = vst [vmem:[#allocation2 + $0x68] sm:$0xff] %v7268
        %7311 = vst [vmem:[#allocation2 + $0x70] sm:$0xff] %v7269
        %7312 = vst [vmem:[#allocation2 + $0x78] sm:$0xff] %v7270
        %7313 = vst [vmem:[#allocation2 + $0x80] sm:$0xff] %v7271
        %7314 = vst [vmem:[#allocation2 + $0x88] sm:$0xff] %v7272
        %7315 = vst [vmem:[#allocation2 + $0x90] sm:$0xff] %v7273
        %7316 = vst [vmem:[#allocation2 + $0x98] sm:$0xff] %v7274
        %7317 = vst [vmem:[#allocation2 + $0xa0] sm:$0xff] %v7275
        %7318 = vst [vmem:[#allocation2 + $0xa8] sm:$0xff] %v7276
        %7319 = vst [vmem:[#allocation2 + $0xb0] sm:$0xff] %v7277
        %7320 = vst [vmem:[#allocation2 + $0xb8] sm:$0xff] %v7278
        %7321 = vst [vmem:[#allocation2 + $0xc0] sm:$0xff] %v7279
        %7322 = vst [vmem:[#allocation2 + $0xc8] sm:$0xff] %v7280
        %7323 = vst [vmem:[#allocation2 + $0xd0] sm:$0xff] %v7281
        %7324 = vst [vmem:[#allocation2 + $0xd8] sm:$0xff] %v7282
        %7325 = vst [vmem:[#allocation2 + $0xe0] sm:$0xff] %v7283
        %7326 = vst [vmem:[#allocation2 + $0xe8] sm:$0xff] %v7284
        %7327 = vst [vmem:[#allocation2 + $0xf0] sm:$0xff] %v7285
        %7328 = vst [vmem:[#allocation2 + $0xf8] sm:$0xff] %v7286
        %7329 = vst [vmem:[#allocation2 + $0x100] sm:$0xff] %v7287
        %7330 = vst [vmem:[#allocation2 + $0x108] sm:$0xff] %v7288
        %7331 = vst [vmem:[#allocation2 + $0x110] sm:$0xff] %v7289
        %7332 = vst [vmem:[#allocation2 + $0x118] sm:$0xff] %v7290
        %7333 = vst [vmem:[#allocation2 + $0x120] sm:$0x1] %v7291
        %7334 = vst [vmem:[#allocation2 + $0x128] sm:$0x1] %v7292
        %7335 = vst [vmem:[#allocation2 + $0x130] sm:$0x1] %v7293
        %7336 = vst [vmem:[#allocation2 + $0x138] sm:$0x1] %v7294
        %7337 = vst [vmem:[#allocation2 + $0x140] sm:$0x1] %v7295
        %7338 = vst [vmem:[#allocation2 + $0x148] sm:$0x1] %v7296
        %p7339 = scmp.eq.s32.totalorder %s24, 2
        // Predicated region
        $region65: #{tpu_custom_call.1} parent=39 // pred_check
          %p7340 = pneg %p7339
        $region66: #{tpu_custom_call.1} parent=39 // pred_check_branch
          %7342 = sbr.rel (%p7340) target = $region68
        $region67: #{tpu_custom_call.1} parent=39 // pred_region
          %v7343 = vld [vmem:[#allocation2] sm:$0xff]
          %v7344 = vld [vmem:[#allocation2 + $0x8] sm:$0xff]
          %v7345 = vld [vmem:[#allocation2 + $0x10] sm:$0xff]
          %v7346 = vld [vmem:[#allocation2 + $0x18] sm:$0xff]
          %v7347 = vld [vmem:[#allocation2 + $0x20] sm:$0xff]
          %v7348 = vld [vmem:[#allocation2 + $0x28] sm:$0xff]
          %v7349 = vld [vmem:[#allocation2 + $0x30] sm:$0xff]
          %v7350 = vld [vmem:[#allocation2 + $0x38] sm:$0xff]
          %v7351 = vld [vmem:[#allocation2 + $0x40] sm:$0xff]
          %v7352 = vld [vmem:[#allocation2 + $0x48] sm:$0xff]
          %v7353 = vld [vmem:[#allocation2 + $0x50] sm:$0xff]
          %v7354 = vld [vmem:[#allocation2 + $0x58] sm:$0xff]
          %v7355 = vld [vmem:[#allocation2 + $0x60] sm:$0xff]
          %v7356 = vld [vmem:[#allocation2 + $0x68] sm:$0xff]
          %v7357 = vld [vmem:[#allocation2 + $0x70] sm:$0xff]
          %v7358 = vld [vmem:[#allocation2 + $0x78] sm:$0xff]
          %v7359 = vld [vmem:[#allocation2 + $0x80] sm:$0xff]
          %v7360 = vld [vmem:[#allocation2 + $0x88] sm:$0xff]
          %v7361 = vld [vmem:[#allocation2 + $0x90] sm:$0xff]
          %v7362 = vld [vmem:[#allocation2 + $0x98] sm:$0xff]
          %v7363 = vld [vmem:[#allocation2 + $0xa0] sm:$0xff]
          %v7364 = vld [vmem:[#allocation2 + $0xa8] sm:$0xff]
          %v7365 = vld [vmem:[#allocation2 + $0xb0] sm:$0xff]
          %v7366 = vld [vmem:[#allocation2 + $0xb8] sm:$0xff]
          %v7367 = vld [vmem:[#allocation2 + $0xc0] sm:$0xff]
          %v7368 = vld [vmem:[#allocation2 + $0xc8] sm:$0xff]
          %v7369 = vld [vmem:[#allocation2 + $0xd0] sm:$0xff]
          %v7370 = vld [vmem:[#allocation2 + $0xd8] sm:$0xff]
          %v7371 = vld [vmem:[#allocation2 + $0xe0] sm:$0xff]
          %v7372 = vld [vmem:[#allocation2 + $0xe8] sm:$0xff]
          %v7373 = vld [vmem:[#allocation2 + $0xf0] sm:$0xff]
          %v7374 = vld [vmem:[#allocation2 + $0xf8] sm:$0xff]
          %v7375 = vld [vmem:[#allocation2 + $0x100] sm:$0xff]
          %v7376 = vld [vmem:[#allocation2 + $0x108] sm:$0xff]
          %v7377 = vld [vmem:[#allocation2 + $0x110] sm:$0xff]
          %v7378 = vld [vmem:[#allocation2 + $0x118] sm:$0xff]
          %v7379 = vld [vmem:[#allocation2 + $0x120] sm:$0x1]
          %v7380 = vld [vmem:[#allocation2 + $0x128] sm:$0x1]
          %v7381 = vld [vmem:[#allocation2 + $0x130] sm:$0x1]
          %v7382 = vld [vmem:[#allocation2 + $0x138] sm:$0x1]
          %v7383 = vld [vmem:[#allocation2 + $0x140] sm:$0x1]
          %v7384 = vld [vmem:[#allocation2 + $0x148] sm:$0x1]
          %7385 = vst [vmem:[#allocation12] sm:$0xff] %v7343
          %7386 = vst [vmem:[#allocation12 + $0x8] sm:$0xff] %v7344
          %7387 = vst [vmem:[#allocation12 + $0x10] sm:$0xff] %v7345
          %7388 = vst [vmem:[#allocation12 + $0x18] sm:$0xff] %v7346
          %7389 = vst [vmem:[#allocation12 + $0x20] sm:$0xff] %v7347
          %7390 = vst [vmem:[#allocation12 + $0x28] sm:$0xff] %v7348
          %7391 = vst [vmem:[#allocation12 + $0x30] sm:$0xff] %v7349
          %7392 = vst [vmem:[#allocation12 + $0x38] sm:$0xff] %v7350
          %7393 = vst [vmem:[#allocation12 + $0x40] sm:$0xff] %v7351
          %7394 = vst [vmem:[#allocation12 + $0x48] sm:$0xff] %v7352
          %7395 = vst [vmem:[#allocation12 + $0x50] sm:$0xff] %v7353
          %7396 = vst [vmem:[#allocation12 + $0x58] sm:$0xff] %v7354
          %7397 = vst [vmem:[#allocation12 + $0x60] sm:$0xff] %v7355
          %7398 = vst [vmem:[#allocation12 + $0x68] sm:$0xff] %v7356
          %7399 = vst [vmem:[#allocation12 + $0x70] sm:$0xff] %v7357
          %7400 = vst [vmem:[#allocation12 + $0x78] sm:$0xff] %v7358
          %7401 = vst [vmem:[#allocation12 + $0x80] sm:$0xff] %v7359
          %7402 = vst [vmem:[#allocation12 + $0x88] sm:$0xff] %v7360
          %7403 = vst [vmem:[#allocation12 + $0x90] sm:$0xff] %v7361
          %7404 = vst [vmem:[#allocation12 + $0x98] sm:$0xff] %v7362
          %7405 = vst [vmem:[#allocation12 + $0xa0] sm:$0xff] %v7363
          %7406 = vst [vmem:[#allocation12 + $0xa8] sm:$0xff] %v7364
          %7407 = vst [vmem:[#allocation12 + $0xb0] sm:$0xff] %v7365
          %7408 = vst [vmem:[#allocation12 + $0xb8] sm:$0xff] %v7366
          %7409 = vst [vmem:[#allocation12 + $0xc0] sm:$0xff] %v7367
          %7410 = vst [vmem:[#allocation12 + $0xc8] sm:$0xff] %v7368
          %7411 = vst [vmem:[#allocation12 + $0xd0] sm:$0xff] %v7369
          %7412 = vst [vmem:[#allocation12 + $0xd8] sm:$0xff] %v7370
          %7413 = vst [vmem:[#allocation12 + $0xe0] sm:$0xff] %v7371
          %7414 = vst [vmem:[#allocation12 + $0xe8] sm:$0xff] %v7372
          %7415 = vst [vmem:[#allocation12 + $0xf0] sm:$0xff] %v7373
          %7416 = vst [vmem:[#allocation12 + $0xf8] sm:$0xff] %v7374
          %7417 = vst [vmem:[#allocation12 + $0x100] sm:$0xff] %v7375
          %7418 = vst [vmem:[#allocation12 + $0x108] sm:$0xff] %v7376
          %7419 = vst [vmem:[#allocation12 + $0x110] sm:$0xff] %v7377
          %7420 = vst [vmem:[#allocation12 + $0x118] sm:$0xff] %v7378
          %7421 = vst [vmem:[#allocation12 + $0x120] sm:$0x1] %v7379
          %7422 = vst [vmem:[#allocation12 + $0x128] sm:$0x1] %v7380
          %7423 = vst [vmem:[#allocation12 + $0x130] sm:$0x1] %v7381
          %7424 = vst [vmem:[#allocation12 + $0x138] sm:$0x1] %v7382
          %7425 = vst [vmem:[#allocation12 + $0x140] sm:$0x1] %v7383
          %7426 = vst [vmem:[#allocation12 + $0x148] sm:$0x1] %v7384
        $region68: #{tpu_custom_call.1} parent=39 // pred_fallthru
          _
        // Predicated region
        $region69: #{tpu_custom_call.1} parent=39 // pred_check
          %p7427 = pneg %p157
        $region70: #{tpu_custom_call.1} parent=39 // pred_check_branch
          %7429 = sbr.rel (%p7427) target = $region72
        $region71: #{tpu_custom_call.1} parent=39 // pred_region
          %s7431 = ssub.s32 5376, 5376
          %7432 = vsyncadd [#allocation5], %s7431
          %s7433 = sshll.u32 [#allocation12], 4
          %s7434 = int_to_ptr.vmem [resolvable:$true] %s7433
          %7439 = dma.vmem_to_hbm [thread:$0]  %s7434, 5376, %s5, [#allocation5], 768, 768, 48
        $region72: #{tpu_custom_call.1} parent=39 // pred_fallthru
          _
        // Predicated region
        $region73: #{tpu_custom_call.1} parent=39 // pred_check
          %p7440 = pneg %p157
        $region74: #{tpu_custom_call.1} parent=39 // pred_check_branch
          %7442 = sbr.rel (%p7440) target = $region76
        $region75: #{tpu_custom_call.1} parent=39 // pred_region
          %7443 = dma.done [#allocation5], 5376
        $region76: #{tpu_custom_call.1} parent=39 // pred_fallthru
          _
      $region40: #{tpu_custom_call.1} parent=5 // pred_fallthru
        _
      %p7444 = scmp.le.s32.totalorder 2, %s19
      // Predicated region
      $region77: #{tpu_custom_call.1} parent=5 // pred_check
        %p7445 = pneg %p7444
      $region78: #{tpu_custom_call.1} parent=5 // pred_check_branch
        %7447 = sbr.rel (%p7445) target = $region80
      $region79: #{tpu_custom_call.1} parent=5 // pred_region
        %s7448 = ssub.s32 %s19, 2
      $region80: #{tpu_custom_call.1} parent=5 // pred_fallthru
        _
    $region6: #{tpu_custom_call.1} parent=1 // loop_footer
      %s23 = sadd.s32 1, %s19
    $region7: #{tpu_custom_call.1} parent=1 // loop_footer_branch
      %18 = sbr.rel target = $region3
    $region8: #{tpu_custom_call.1} parent=1 // loop_exit
      _
    %7449 = vsyncpa [#allocation4], 1
    %s7450 = scalar_lea.sflag [#allocation4], 1
    %7451 = vsyncpa %s7450, 1
    %7452 = vsyncpa [#allocation7], 1
    %s7453 = scalar_lea.sflag [#allocation7], 1
    %7454 = vsyncpa %s7453, 1
    %7455 = vsyncpa [#allocation10], 1
    %s7456 = scalar_lea.sflag [#allocation10], 1
    %7457 = vsyncpa %s7456, 1
    %7458 = vsyncpa [#allocation5], 1
    %s7459 = scalar_lea.sflag [#allocation5], 1
    %7460 = vsyncpa %s7459, 1

</llo_original>
